<compile_context>
chip_gen: v6e
topology: v6e:2x2x1
jax: 0.10.0
libtpu: 0.0.40
codegen_flags: <defaults>
</compile_context>

<pallas_src>
import functools

import jax
import jax.numpy as jnp
from jax.experimental import pallas as pl
from jax.experimental.pallas import tpu as pltpu

D_MODEL = 32
NHEAD = 4
HEAD_DIM = D_MODEL // NHEAD
DIM_FF = 64
NUM_LAYERS = 2
EPS = 1e-5
_VEC_ROWS = 12           # packed per-layer bias / norm vectors
_VEC_W = 128             # lane width of the packed vector slab
_NEG_INF = -1e30

# packed-vector slab must be wide enough for the largest bias row
assert 3 * D_MODEL <= _VEC_W and DIM_FF <= _VEC_W, "widen _VEC_W for larger models"


# ---------------------------------------------------------------- in-kernel helpers
def _layernorm(x, w, b):
    # Single-pass moments: mean(x) and mean(x*x) are independent lane-reduces
    # (they can overlap on the XLU instead of serializing via (x - mu)**2).
    mu = jnp.mean(x, axis=-1, keepdims=True)
    var = jnp.maximum(jnp.mean(x * x, axis=-1, keepdims=True) - mu * mu, 0.0)
    return (x - mu) * jax.lax.rsqrt(var + EPS) * w + b


def _attention(q, k, v, bias, w_out_ref, widx):
    """Per-head attention with the output projection folded into the head loop.

    * q/k/v matmul operands are cast to bf16 (f32 accumulation); softmax is f32.
    * `bias` is an additive block-diagonal mask (0 / -1e30): one vadd per head.
    * out += ctx_h @ Wout[h] rides the MXU instead of a lane-concat of heads.
    * q arrives pre-scaled (1/sqrt(head_dim) folded into Wq / bq on the host).
    * The per-head (8-wide) out-projection dot stays f32 (zero-risk tile-aligned
      f32 weight blocks; K=8 so the bf16 saving there is negligible).
    """
    q_bf = q.astype(jnp.bfloat16)
    k_bf = k.astype(jnp.bfloat16)
    v_bf = v.astype(jnp.bfloat16)
    out = None
    for h in range(NHEAD):
        cols = slice(h * HEAD_DIM, (h + 1) * HEAD_DIM)
        # NT contraction (same form as JAX's TPU flash/splash attention kernels).
        s = jax.lax.dot_general(q_bf[:, cols], k_bf[:, cols],
                                (((1,), (1,)), ((), ())),
                                preferred_element_type=jnp.float32)   # (Rq, Rk)
        s = s + bias
        s = s - jnp.max(s, axis=-1, keepdims=True)
        e = jnp.exp(s)
        p = e * pl.reciprocal(jnp.sum(e, axis=-1, keepdims=True), approx=True)
        ctx = jnp.dot(p.astype(jnp.bfloat16), v_bf[:, cols],
                      preferred_element_type=jnp.float32)             # (Rq, HD)
        part = jnp.dot(ctx, w_out_ref[widx, h],
                       preferred_element_type=jnp.float32)            # (Rq, D)
        out = part if out is None else out + part
    return out


# ---------------------------------------------------------------- fused kernel
def fused_decoder_kernel(acts_ref, bias_sa_ref, bias_ca_ref,
                         w_qkv_ref, w_out_ref, w_ff1_ref, w_ff2_ref, vec_ref,
                         out_ref, *, batch, t_len, s_len):
    D = D_MODEL
    BT = batch * t_len
    BS = batch * s_len

    acts = acts_ref[...]                            # (2*BT + 2*BS, D) f32
    x = acts[0:BT]                                  # tgt
    q_pos = acts[BT:2 * BT]                         # query_pos
    mem = acts[2 * BT:2 * BT + BS]                  # memory
    mem_k = acts[2 * BT + BS:2 * BT + 2 * BS]       # memory + pos (host pre-added)

    bias_sa = bias_sa_ref[...]                      # (BT, BT) additive mask
    bias_ca = bias_ca_ref[...]                      # (BT, BS) additive mask

    # constant across layers -> cast to bf16 once
    mem_bf = mem.astype(jnp.bfloat16)
    memk_bf = mem_k.astype(jnp.bfloat16)

    for l in range(NUM_LAYERS):      # static unroll, all weights VMEM-resident
        vec = vec_ref[l]                            # (12, 128) f32
        bq_sa, bv_sa = vec[0:1, :D], vec[0:1, 2 * D:3 * D]
        bq_ca, bv_ca = vec[1:2, :D], vec[1:2, 2 * D:3 * D]
        b_out_sa = vec[2:3, :D]
        b_out_ca = vec[3:4, :D]
        b_ff1 = vec[4:5, :DIM_FF]
        b_ff2 = vec[5:6, :D]
        n1_w, n1_b = vec[6:7, :D], vec[7:8, :D]
        n2_w, n2_b = vec[8:9, :D], vec[9:10, :D]
        n3_w, n3_b = vec[10:11, :D], vec[11:12, :D]

        # ---- self-attention: q = k = x + query_pos, v = x -----------------
        qin_bf = (x + q_pos).astype(jnp.bfloat16)
        x_bf = x.astype(jnp.bfloat16)
        w_sa = w_qkv_ref[l, 0]                      # (D, 3D) bf16, cols [q|k|v]
        qk = jnp.dot(qin_bf, w_sa[:, :2 * D],       # packed q & k projection
                     preferred_element_type=jnp.float32)
        q = qk[:, :D] + bq_sa                       # scale folded into Wq / bq
        k = qk[:, D:]                               # k-bias dropped (softmax-invariant)
        v = jnp.dot(x_bf, w_sa[:, 2 * D:],
                    preferred_element_type=jnp.float32) + bv_sa
        sa = _attention(q, k, v, bias_sa, w_out_ref, 2 * l + 0) + b_out_sa
        x = _layernorm(x + sa, n1_w, n1_b)

        # ---- cross-attention: q = x + query_pos, k = memory + pos, v = memory
        qin2_bf = (x + q_pos).astype(jnp.bfloat16)
        w_ca = w_qkv_ref[l, 1]
        q2 = jnp.dot(qin2_bf, w_ca[:, :D],
                     preferred_element_type=jnp.float32) + bq_ca
        k2 = jnp.dot(memk_bf, w_ca[:, D:2 * D],
                     preferred_element_type=jnp.float32)    # k-bias dropped
        v2 = jnp.dot(mem_bf, w_ca[:, 2 * D:],
                     preferred_element_type=jnp.float32) + bv_ca
        ca = _attention(q2, k2, v2, bias_ca, w_out_ref, 2 * l + 1) + b_out_ca
        x = _layernorm(x + ca, n2_w, n2_b)

        # ---- FFN: linear1 -> relu -> linear2 -------------------------------
        h = jnp.maximum(
            jnp.dot(x.astype(jnp.bfloat16), w_ff1_ref[l],
                    preferred_element_type=jnp.float32) + b_ff1, 0.0)
        ff = jnp.dot(h.astype(jnp.bfloat16), w_ff2_ref[l],
                     preferred_element_type=jnp.float32) + b_ff2
        x = _layernorm(x + ff, n3_w, n3_b)

    # final LayerNorm (TransformerDecoder.norm)
    out_ref[...] = _layernorm(x, vec_ref[NUM_LAYERS, 0:1, :D],
                              vec_ref[NUM_LAYERS, 1:2, :D])


# ---------------------------------------------------------------- wrapper
def transformer_decoder(tgt, memory, query_pos, pos, packed_params):
    B, T, D = tgt.shape
    S = memory.shape[1]
    BT, BS = B * T, B * S
    w_qkv, w_out, w_ff1, w_ff2, vec = packed_params

    # One packed activation slab (fewer DMAs): [tgt; query_pos; memory; memory+pos]
    acts = jnp.concatenate(
        [tgt.reshape(BT, D), query_pos.reshape(BT, D),
         memory.reshape(BS, D), (memory + pos).reshape(BS, D)], axis=0)

    # Host-precomputed additive same-batch (block-diagonal) attention biases.
    def batch_bias(rq, rk):
        bi = jnp.repeat(jnp.arange(B), rq)[:, None]
        bj = jnp.repeat(jnp.arange(B), rk)[None, :]
        return jnp.where(bi == bj, 0.0, _NEG_INF).astype(jnp.float32)

    kernel = functools.partial(fused_decoder_kernel, batch=B, t_len=T, s_len=S)
    vmem = pl.BlockSpec(memory_space=pltpu.MemorySpace.VMEM)
    out_flat = pl.pallas_call(
        kernel,
        out_shape=jax.ShapeDtypeStruct((BT, D), jnp.float32),
        in_specs=[vmem] * 8,
        out_specs=vmem,
        compiler_params=pltpu.CompilerParams(vmem_limit_bytes=8 * 1024 * 1024),
    )(acts, batch_bias(T, T), batch_bias(T, S),
      w_qkv, w_out, w_ff1, w_ff2, vec)
    return out_flat.reshape(B, T, D)


# ---------------------------------------------------------------- host-side packing
def _padvec(v):
    v = jnp.asarray(v, jnp.float32).reshape(-1)
    assert v.shape[0] <= _VEC_W, "bias / norm vector wider than packed slab"
    return jnp.pad(v, (0, _VEC_W - v.shape[0]))


def pack_params(all_layer_params, final_norm_wb):
    """Pre-transpose to x@W form, fold 1/sqrt(head_dim) into Wq/bq, stack per layer.

    Matmul weights (in_proj, FFN) are stored in bf16; the per-head out_proj
    blocks and all bias / norm vectors stay f32.
    """
    scale = 1.0 / (HEAD_DIM ** 0.5)
    D = D_MODEL
    w_qkv, w_out, w_ff1, w_ff2, vec = [], [], [], [], []
    for p in all_layer_params:
        (sa_in_w, sa_in_b, sa_out_w, sa_out_b,
         ca_in_w, ca_in_b, ca_out_w, ca_out_b,
         l1_w, l1_b, l2_w, l2_b,
         n1_w, n1_b, n2_w, n2_b, n3_w, n3_b) = p

        def fold_qkv(in_w, in_b):
            # in_w: (3D, D) rows stacked [q | k | v]  (PyTorch in_proj layout)
            wt = in_w.T                              # (D, 3D) cols = [q | k | v]
            wt = wt.at[:, :D].multiply(scale)        # fold softmax scale into Wq
            bb = in_b.at[:D].multiply(scale)         # ... and into bq
            return wt, bb

        sa_w, sa_b = fold_qkv(sa_in_w, sa_in_b)
        ca_w, ca_b = fold_qkv(ca_in_w, ca_in_b)
        w_qkv.append(jnp.stack([sa_w, ca_w]))                  # (2, D, 3D)
        # out_proj.weight (D, D) -> x@W layout, split per head along the input dim
        w_out.append(sa_out_w.T.reshape(NHEAD, HEAD_DIM, D))   # (NHEAD, HD, D)
        w_out.append(ca_out_w.T.reshape(NHEAD, HEAD_DIM, D))
        w_ff1.append(l1_w.T)                                   # (D, FF)
        w_ff2.append(l2_w.T)                                   # (FF, D)
        vec.append(jnp.stack([_padvec(r) for r in
                              (sa_b, ca_b, sa_out_b, ca_out_b, l1_b, l2_b,
                               n1_w, n1_b, n2_w, n2_b, n3_w, n3_b)]))
    fw, fb = final_norm_wb
    vec.append(jnp.stack([_padvec(fw), _padvec(fb)]
                         + [jnp.zeros((_VEC_W,), jnp.float32)] * (_VEC_ROWS - 2)))
    return (jnp.stack(w_qkv).astype(jnp.bfloat16),     # (L, 2, D, 3D) bf16
            jnp.stack(w_out).astype(jnp.float32),      # (2L, NHEAD, HD, D) f32
            jnp.stack(w_ff1).astype(jnp.bfloat16),     # (L, D, FF) bf16
            jnp.stack(w_ff2).astype(jnp.bfloat16),     # (L, FF, D) bf16
            jnp.stack(vec))                            # (L+1, 12, 128) f32


# ---------------------------------------------------------------- params (PyTorch layout)
def init_layer_params(key):
    ks = jax.random.split(key, 18)
    s, sb, sn = 0.05, 0.02, 0.1
    D, FF = D_MODEL, DIM_FF

    def norm_pair(kw, kb):
        return (1.0 + sn * jax.random.normal(kw, (D,), jnp.float32),
                sn * jax.random.normal(kb, (D,), jnp.float32))

    n1 = norm_pair(ks[12], ks[13])
    n2 = norm_pair(ks[14], ks[15])
    n3 = norm_pair(ks[16], ks[17])
    return [
        s * jax.random.normal(ks[0], (3 * D, D), jnp.float32),   # self in_proj_weight
        sb * jax.random.normal(ks[1], (3 * D,), jnp.float32),    # self in_proj_bias
        s * jax.random.normal(ks[2], (D, D), jnp.float32),       # self out_proj.weight
        sb * jax.random.normal(ks[3], (D,), jnp.float32),        # self out_proj.bias
        s * jax.random.normal(ks[4], (3 * D, D), jnp.float32),   # cross in_proj_weight
        sb * jax.random.normal(ks[5], (3 * D,), jnp.float32),    # cross in_proj_bias
        s * jax.random.normal(ks[6], (D, D), jnp.float32),       # cross out_proj.weight
        sb * jax.random.normal(ks[7], (D,), jnp.float32),        # cross out_proj.bias
        s * jax.random.normal(ks[8], (FF, D), jnp.float32),      # linear1.weight
        sb * jax.random.normal(ks[9], (FF,), jnp.float32),       # linear1.bias
        s * jax.random.normal(ks[10], (D, FF), jnp.float32),     # linear2.weight
        sb * jax.random.normal(ks[11], (D,), jnp.float32),       # linear2.bias
        n1[0], n1[1], n2[0], n2[1], n3[0], n3[1],                # norm1/2/3 weight,bias
    ]


# ---------------------------------------------------------------- pure-JAX reference
def reference_decoder(tgt, memory, query_pos, pos, all_layer_params, final_norm_wb):
    D = D_MODEL

    def mha(q_in, k_in, v_in, in_w, in_b, out_w, out_b):
        q = q_in @ in_w[:D].T + in_b[:D]
        k = k_in @ in_w[D:2 * D].T + in_b[D:2 * D]
        v = v_in @ in_w[2 * D:].T + in_b[2 * D:]
        B, T, _ = q.shape
        S = k.shape[1]
        q = q.reshape(B, T, NHEAD, HEAD_DIM).transpose(0, 2, 1, 3)
        k = k.reshape(B, S, NHEAD, HEAD_DIM).transpose(0, 2, 1, 3)
        v = v.reshape(B, S, NHEAD, HEAD_DIM).transpose(0, 2, 1, 3)
        sc = jnp.einsum('bhtd,bhsd->bhts', q, k) / (HEAD_DIM ** 0.5)
        p = jax.nn.softmax(sc, axis=-1)
        ctx = jnp.einsum('bhts,bhsd->bhtd', p, v).transpose(0, 2, 1, 3).reshape(B, T, D)
        return ctx @ out_w.T + out_b

    def ln(x, w, b):
        mu = x.mean(-1, keepdims=True)
        var = ((x - mu) ** 2).mean(-1, keepdims=True)
        return (x - mu) / jnp.sqrt(var + EPS) * w + b

    x = tgt
    for p in all_layer_params:
        (sa_in_w, sa_in_b, sa_out_w, sa_out_b,
         ca_in_w, ca_in_b, ca_out_w, ca_out_b,
         l1_w, l1_b, l2_w, l2_b,
         n1_w, n1_b, n2_w, n2_b, n3_w, n3_b) = p
        q_in = x + query_pos
        x = ln(x + mha(q_in, q_in, x, sa_in_w, sa_in_b, sa_out_w, sa_out_b), n1_w, n1_b)
        x = ln(x + mha(x + query_pos, memory + pos, memory,
                       ca_in_w, ca_in_b, ca_out_w, ca_out_b), n2_w, n2_b)
        h = jax.nn.relu(x @ l1_w.T + l1_b)
        x = ln(x + (h @ l2_w.T + l2_b), n3_w, n3_b)
    fw, fb = final_norm_wb
    return ln(x, fw, fb)


if __name__ == "__main__":
    key = jax.random.PRNGKey(0)
    B, T, S = 2, 8, 16
    k_in = jax.random.split(key, 5)
    tgt = jax.random.normal(k_in[0], (B, T, D_MODEL), jnp.float32)
    memory = jax.random.normal(k_in[1], (B, S, D_MODEL), jnp.float32)
    query_pos = jax.random.normal(k_in[2], (B, T, D_MODEL), jnp.float32)
    pos = jax.random.normal(k_in[3], (B, S, D_MODEL), jnp.float32)

    param_keys = jax.random.split(k_in[4], NUM_LAYERS + 2)
    all_layer_params = [init_layer_params(k) for k in param_keys[:NUM_LAYERS]]
    final_norm_wb = (
        1.0 + 0.1 * jax.random.normal(param_keys[NUM_LAYERS], (D_MODEL,), jnp.float32),
        0.1 * jax.random.normal(param_keys[NUM_LAYERS + 1], (D_MODEL,), jnp.float32))

    packed = pack_params(all_layer_params, final_norm_wb)
    out = transformer_decoder(tgt, memory, query_pos, pos, packed)
    out = jax.block_until_ready(out)

    assert out.shape == (B, T, D_MODEL)
    assert bool(jnp.all(jnp.isfinite(out)))

    ref = reference_decoder(tgt, memory, query_pos, pos,
                            all_layer_params, final_norm_wb)
    # bf16 matmul operands (f32 accumulate) + approx reciprocal => ~1e-2 level diffs
    max_diff = float(jnp.max(jnp.abs(out - ref)))
    assert max_diff < 5e-2, f"kernel vs reference max|diff| = {max_diff}"
    print("KERNEL_OK")
</pallas_src>

<mosaic_0001>
module attributes {stable_mosaic.version = 11 : i64} {
  func.func @fused_decoder_kernel(%arg0: memref<96x32xf32, #tpu.memory_space<vmem>>, %arg1: memref<16x16xf32, #tpu.memory_space<vmem>>, %arg2: memref<16x32xf32, #tpu.memory_space<vmem>>, %arg3: memref<2x2x32x96xbf16, #tpu.memory_space<vmem>>, %arg4: memref<4x4x8x32xf32, #tpu.memory_space<vmem>>, %arg5: memref<2x32x64xbf16, #tpu.memory_space<vmem>>, %arg6: memref<2x64x32xbf16, #tpu.memory_space<vmem>>, %arg7: memref<3x12x128xf32, #tpu.memory_space<vmem>>, %arg8: memref<16x32xf32, #tpu.memory_space<vmem>>) attributes {dimension_semantics = [], scalar_prefetch = 0 : i64, scratch_operands = 0 : i64, tpu.core_type = #tpu.core_type<tc>} {
    %c0 = arith.constant 0 : index
    %c0_0 = arith.constant 0 : index
    %0 = vector.load %arg0[%c0, %c0_0] : memref<96x32xf32, #tpu.memory_space<vmem>>, vector<96x32xf32>
    %1 = vector.extract_strided_slice %0 {offsets = [0, 0], sizes = [16, 32], strides = [1, 1]} : vector<96x32xf32> to vector<16x32xf32>
    %2 = vector.extract_strided_slice %0 {offsets = [16, 0], sizes = [16, 32], strides = [1, 1]} : vector<96x32xf32> to vector<16x32xf32>
    %3 = vector.extract_strided_slice %0 {offsets = [32, 0], sizes = [32, 32], strides = [1, 1]} : vector<96x32xf32> to vector<32x32xf32>
    %4 = vector.extract_strided_slice %0 {offsets = [64, 0], sizes = [32, 32], strides = [1, 1]} : vector<96x32xf32> to vector<32x32xf32>
    %c0_1 = arith.constant 0 : index
    %c0_2 = arith.constant 0 : index
    %5 = vector.load %arg1[%c0_1, %c0_2] : memref<16x16xf32, #tpu.memory_space<vmem>>, vector<16x16xf32>
    %c0_3 = arith.constant 0 : index
    %c0_4 = arith.constant 0 : index
    %6 = vector.load %arg2[%c0_3, %c0_4] : memref<16x32xf32, #tpu.memory_space<vmem>>, vector<16x32xf32>
    %7 = arith.truncf %3 : vector<32x32xf32> to vector<32x32xbf16>
    %8 = arith.truncf %4 : vector<32x32xf32> to vector<32x32xbf16>
    %c0_5 = arith.constant 0 : index
    %c0_6 = arith.constant 0 : index
    %c0_7 = arith.constant 0 : index
    %9 = vector.load %arg7[%c0_5, %c0_6, %c0_7] : memref<3x12x128xf32, #tpu.memory_space<vmem>>, vector<1x12x128xf32>
    %10 = vector.shape_cast %9 : vector<1x12x128xf32> to vector<12x128xf32>
    %11 = vector.extract_strided_slice %10 {offsets = [0, 0], sizes = [1, 32], strides = [1, 1]} : vector<12x128xf32> to vector<1x32xf32>
    %12 = vector.extract_strided_slice %10 {offsets = [0, 64], sizes = [1, 32], strides = [1, 1]} : vector<12x128xf32> to vector<1x32xf32>
    %13 = vector.extract_strided_slice %10 {offsets = [1, 0], sizes = [1, 32], strides = [1, 1]} : vector<12x128xf32> to vector<1x32xf32>
    %14 = vector.extract_strided_slice %10 {offsets = [1, 64], sizes = [1, 32], strides = [1, 1]} : vector<12x128xf32> to vector<1x32xf32>
    %15 = vector.extract_strided_slice %10 {offsets = [2, 0], sizes = [1, 32], strides = [1, 1]} : vector<12x128xf32> to vector<1x32xf32>
    %16 = vector.extract_strided_slice %10 {offsets = [3, 0], sizes = [1, 32], strides = [1, 1]} : vector<12x128xf32> to vector<1x32xf32>
    %17 = vector.extract_strided_slice %10 {offsets = [4, 0], sizes = [1, 64], strides = [1, 1]} : vector<12x128xf32> to vector<1x64xf32>
    %18 = vector.extract_strided_slice %10 {offsets = [5, 0], sizes = [1, 32], strides = [1, 1]} : vector<12x128xf32> to vector<1x32xf32>
    %19 = vector.extract_strided_slice %10 {offsets = [6, 0], sizes = [1, 32], strides = [1, 1]} : vector<12x128xf32> to vector<1x32xf32>
    %20 = vector.extract_strided_slice %10 {offsets = [7, 0], sizes = [1, 32], strides = [1, 1]} : vector<12x128xf32> to vector<1x32xf32>
    %21 = vector.extract_strided_slice %10 {offsets = [8, 0], sizes = [1, 32], strides = [1, 1]} : vector<12x128xf32> to vector<1x32xf32>
    %22 = vector.extract_strided_slice %10 {offsets = [9, 0], sizes = [1, 32], strides = [1, 1]} : vector<12x128xf32> to vector<1x32xf32>
    %23 = vector.extract_strided_slice %10 {offsets = [10, 0], sizes = [1, 32], strides = [1, 1]} : vector<12x128xf32> to vector<1x32xf32>
    %24 = vector.extract_strided_slice %10 {offsets = [11, 0], sizes = [1, 32], strides = [1, 1]} : vector<12x128xf32> to vector<1x32xf32>
    %25 = arith.addf %1, %2 : vector<16x32xf32>
    %26 = arith.truncf %25 : vector<16x32xf32> to vector<16x32xbf16>
    %27 = arith.truncf %1 : vector<16x32xf32> to vector<16x32xbf16>
    %c0_8 = arith.constant 0 : index
    %c0_9 = arith.constant 0 : index
    %c0_10 = arith.constant 0 : index
    %c0_11 = arith.constant 0 : index
    %28 = vector.load %arg3[%c0_8, %c0_9, %c0_10, %c0_11] : memref<2x2x32x96xbf16, #tpu.memory_space<vmem>>, vector<1x1x32x96xbf16>
    %29 = vector.shape_cast %28 : vector<1x1x32x96xbf16> to vector<32x96xbf16>
    %30 = vector.extract_strided_slice %29 {offsets = [0, 0], sizes = [32, 64], strides = [1, 1]} : vector<32x96xbf16> to vector<32x64xbf16>
    %cst = arith.constant dense<0.000000e+00> : vector<16x64xf32>
    %31 = tpu.matmul %26, %30, %cst {dimension_numbers = #tpu.dot_dimension_numbers<[1], [0], [0], [1], [0, 0, 1, 1], [], []>} : vector<16x32xbf16>, vector<32x64xbf16>, vector<16x64xf32> -> vector<16x64xf32>
    %32 = vector.extract_strided_slice %31 {offsets = [0, 0], sizes = [16, 32], strides = [1, 1]} : vector<16x64xf32> to vector<16x32xf32>
    %33 = vector.broadcast %11 : vector<1x32xf32> to vector<16x32xf32>
    %34 = arith.addf %32, %33 : vector<16x32xf32>
    %35 = vector.extract_strided_slice %31 {offsets = [0, 32], sizes = [16, 32], strides = [1, 1]} : vector<16x64xf32> to vector<16x32xf32>
    %36 = vector.extract_strided_slice %29 {offsets = [0, 64], sizes = [32, 32], strides = [1, 1]} : vector<32x96xbf16> to vector<32x32xbf16>
    %cst_12 = arith.constant dense<0.000000e+00> : vector<16x32xf32>
    %37 = tpu.matmul %27, %36, %cst_12 {dimension_numbers = #tpu.dot_dimension_numbers<[1], [0], [0], [1], [0, 0, 1, 1], [], []>} : vector<16x32xbf16>, vector<32x32xbf16>, vector<16x32xf32> -> vector<16x32xf32>
    %38 = vector.broadcast %12 : vector<1x32xf32> to vector<16x32xf32>
    %39 = arith.addf %37, %38 : vector<16x32xf32>
    %40 = arith.truncf %34 : vector<16x32xf32> to vector<16x32xbf16>
    %41 = arith.truncf %35 : vector<16x32xf32> to vector<16x32xbf16>
    %42 = arith.truncf %39 : vector<16x32xf32> to vector<16x32xbf16>
    %43 = vector.extract_strided_slice %40 {offsets = [0, 0], sizes = [16, 8], strides = [1, 1]} : vector<16x32xbf16> to vector<16x8xbf16>
    %44 = vector.extract_strided_slice %41 {offsets = [0, 0], sizes = [16, 8], strides = [1, 1]} : vector<16x32xbf16> to vector<16x8xbf16>
    %cst_13 = arith.constant dense<0.000000e+00> : vector<16x16xf32>
    %45 = tpu.matmul %43, %44, %cst_13 {dimension_numbers = #tpu.dot_dimension_numbers<[1], [1], [0], [0], [0, 0, 1, 0], [], []>} : vector<16x8xbf16>, vector<16x8xbf16>, vector<16x16xf32> -> vector<16x16xf32>
    %46 = arith.addf %45, %5 : vector<16x16xf32>
    %cst_14 = arith.constant dense<0xFF800000> : vector<16xf32>
    %47 = vector.multi_reduction <maximumf>, %46, %cst_14 [1] : vector<16x16xf32> to vector<16xf32>
    %48 = vector.shape_cast %47 : vector<16xf32> to vector<16x1xf32>
    %49 = vector.broadcast %48 : vector<16x1xf32> to vector<16x16xf32>
    %50 = arith.subf %46, %49 : vector<16x16xf32>
    %51 = math.exp %50 : vector<16x16xf32>
    %cst_15 = arith.constant dense<0.000000e+00> : vector<16xf32>
    %52 = vector.multi_reduction <add>, %51, %cst_15 [1] : vector<16x16xf32> to vector<16xf32>
    %53 = vector.shape_cast %52 : vector<16xf32> to vector<16x1xf32>
    %54 = tpu.reciprocal %53 {approx = true} : vector<16x1xf32> -> vector<16x1xf32>
    %55 = vector.broadcast %54 : vector<16x1xf32> to vector<16x16xf32>
    %56 = arith.mulf %51, %55 : vector<16x16xf32>
    %57 = arith.truncf %56 : vector<16x16xf32> to vector<16x16xbf16>
    %58 = vector.extract_strided_slice %42 {offsets = [0, 0], sizes = [16, 8], strides = [1, 1]} : vector<16x32xbf16> to vector<16x8xbf16>
    %cst_16 = arith.constant dense<0.000000e+00> : vector<16x8xf32>
    %59 = tpu.matmul %57, %58, %cst_16 {dimension_numbers = #tpu.dot_dimension_numbers<[1], [0], [0], [1], [0, 0, 1, 1], [], []>} : vector<16x16xbf16>, vector<16x8xbf16>, vector<16x8xf32> -> vector<16x8xf32>
    %c0_17 = arith.constant 0 : index
    %c0_18 = arith.constant 0 : index
    %c0_19 = arith.constant 0 : index
    %c0_20 = arith.constant 0 : index
    %60 = vector.load %arg4[%c0_17, %c0_18, %c0_19, %c0_20] : memref<4x4x8x32xf32, #tpu.memory_space<vmem>>, vector<1x1x8x32xf32>
    %61 = vector.shape_cast %60 : vector<1x1x8x32xf32> to vector<8x32xf32>
    %cst_21 = arith.constant dense<0.000000e+00> : vector<16x32xf32>
    %62 = tpu.matmul %59, %61, %cst_21 {dimension_numbers = #tpu.dot_dimension_numbers<[1], [0], [0], [1], [0, 0, 1, 1], [], []>} : vector<16x8xf32>, vector<8x32xf32>, vector<16x32xf32> -> vector<16x32xf32>
    %63 = vector.extract_strided_slice %40 {offsets = [0, 8], sizes = [16, 8], strides = [1, 1]} : vector<16x32xbf16> to vector<16x8xbf16>
    %64 = vector.extract_strided_slice %41 {offsets = [0, 8], sizes = [16, 8], strides = [1, 1]} : vector<16x32xbf16> to vector<16x8xbf16>
    %cst_22 = arith.constant dense<0.000000e+00> : vector<16x16xf32>
    %65 = tpu.matmul %63, %64, %cst_22 {dimension_numbers = #tpu.dot_dimension_numbers<[1], [1], [0], [0], [0, 0, 1, 0], [], []>} : vector<16x8xbf16>, vector<16x8xbf16>, vector<16x16xf32> -> vector<16x16xf32>
    %66 = arith.addf %65, %5 : vector<16x16xf32>
    %cst_23 = arith.constant dense<0xFF800000> : vector<16xf32>
    %67 = vector.multi_reduction <maximumf>, %66, %cst_23 [1] : vector<16x16xf32> to vector<16xf32>
    %68 = vector.shape_cast %67 : vector<16xf32> to vector<16x1xf32>
    %69 = vector.broadcast %68 : vector<16x1xf32> to vector<16x16xf32>
    %70 = arith.subf %66, %69 : vector<16x16xf32>
    %71 = math.exp %70 : vector<16x16xf32>
    %cst_24 = arith.constant dense<0.000000e+00> : vector<16xf32>
    %72 = vector.multi_reduction <add>, %71, %cst_24 [1] : vector<16x16xf32> to vector<16xf32>
    %73 = vector.shape_cast %72 : vector<16xf32> to vector<16x1xf32>
    %74 = tpu.reciprocal %73 {approx = true} : vector<16x1xf32> -> vector<16x1xf32>
    %75 = vector.broadcast %74 : vector<16x1xf32> to vector<16x16xf32>
    %76 = arith.mulf %71, %75 : vector<16x16xf32>
    %77 = arith.truncf %76 : vector<16x16xf32> to vector<16x16xbf16>
    %78 = vector.extract_strided_slice %42 {offsets = [0, 8], sizes = [16, 8], strides = [1, 1]} : vector<16x32xbf16> to vector<16x8xbf16>
    %cst_25 = arith.constant dense<0.000000e+00> : vector<16x8xf32>
    %79 = tpu.matmul %77, %78, %cst_25 {dimension_numbers = #tpu.dot_dimension_numbers<[1], [0], [0], [1], [0, 0, 1, 1], [], []>} : vector<16x16xbf16>, vector<16x8xbf16>, vector<16x8xf32> -> vector<16x8xf32>
    %c0_26 = arith.constant 0 : index
    %c1 = arith.constant 1 : index
    %c0_27 = arith.constant 0 : index
    %c0_28 = arith.constant 0 : index
    %80 = vector.load %arg4[%c0_26, %c1, %c0_27, %c0_28] : memref<4x4x8x32xf32, #tpu.memory_space<vmem>>, vector<1x1x8x32xf32>
    %81 = vector.shape_cast %80 : vector<1x1x8x32xf32> to vector<8x32xf32>
    %cst_29 = arith.constant dense<0.000000e+00> : vector<16x32xf32>
    %82 = tpu.matmul %79, %81, %cst_29 {dimension_numbers = #tpu.dot_dimension_numbers<[1], [0], [0], [1], [0, 0, 1, 1], [], []>} : vector<16x8xf32>, vector<8x32xf32>, vector<16x32xf32> -> vector<16x32xf32>
    %83 = arith.addf %62, %82 : vector<16x32xf32>
    %84 = vector.extract_strided_slice %40 {offsets = [0, 16], sizes = [16, 8], strides = [1, 1]} : vector<16x32xbf16> to vector<16x8xbf16>
    %85 = vector.extract_strided_slice %41 {offsets = [0, 16], sizes = [16, 8], strides = [1, 1]} : vector<16x32xbf16> to vector<16x8xbf16>
    %cst_30 = arith.constant dense<0.000000e+00> : vector<16x16xf32>
    %86 = tpu.matmul %84, %85, %cst_30 {dimension_numbers = #tpu.dot_dimension_numbers<[1], [1], [0], [0], [0, 0, 1, 0], [], []>} : vector<16x8xbf16>, vector<16x8xbf16>, vector<16x16xf32> -> vector<16x16xf32>
    %87 = arith.addf %86, %5 : vector<16x16xf32>
    %cst_31 = arith.constant dense<0xFF800000> : vector<16xf32>
    %88 = vector.multi_reduction <maximumf>, %87, %cst_31 [1] : vector<16x16xf32> to vector<16xf32>
    %89 = vector.shape_cast %88 : vector<16xf32> to vector<16x1xf32>
    %90 = vector.broadcast %89 : vector<16x1xf32> to vector<16x16xf32>
    %91 = arith.subf %87, %90 : vector<16x16xf32>
    %92 = math.exp %91 : vector<16x16xf32>
    %cst_32 = arith.constant dense<0.000000e+00> : vector<16xf32>
    %93 = vector.multi_reduction <add>, %92, %cst_32 [1] : vector<16x16xf32> to vector<16xf32>
    %94 = vector.shape_cast %93 : vector<16xf32> to vector<16x1xf32>
    %95 = tpu.reciprocal %94 {approx = true} : vector<16x1xf32> -> vector<16x1xf32>
    %96 = vector.broadcast %95 : vector<16x1xf32> to vector<16x16xf32>
    %97 = arith.mulf %92, %96 : vector<16x16xf32>
    %98 = arith.truncf %97 : vector<16x16xf32> to vector<16x16xbf16>
    %99 = vector.extract_strided_slice %42 {offsets = [0, 16], sizes = [16, 8], strides = [1, 1]} : vector<16x32xbf16> to vector<16x8xbf16>
    %cst_33 = arith.constant dense<0.000000e+00> : vector<16x8xf32>
    %100 = tpu.matmul %98, %99, %cst_33 {dimension_numbers = #tpu.dot_dimension_numbers<[1], [0], [0], [1], [0, 0, 1, 1], [], []>} : vector<16x16xbf16>, vector<16x8xbf16>, vector<16x8xf32> -> vector<16x8xf32>
    %c0_34 = arith.constant 0 : index
    %c2 = arith.constant 2 : index
    %c0_35 = arith.constant 0 : index
    %c0_36 = arith.constant 0 : index
    %101 = vector.load %arg4[%c0_34, %c2, %c0_35, %c0_36] : memref<4x4x8x32xf32, #tpu.memory_space<vmem>>, vector<1x1x8x32xf32>
    %102 = vector.shape_cast %101 : vector<1x1x8x32xf32> to vector<8x32xf32>
    %cst_37 = arith.constant dense<0.000000e+00> : vector<16x32xf32>
    %103 = tpu.matmul %100, %102, %cst_37 {dimension_numbers = #tpu.dot_dimension_numbers<[1], [0], [0], [1], [0, 0, 1, 1], [], []>} : vector<16x8xf32>, vector<8x32xf32>, vector<16x32xf32> -> vector<16x32xf32>
    %104 = arith.addf %83, %103 : vector<16x32xf32>
    %105 = vector.extract_strided_slice %40 {offsets = [0, 24], sizes = [16, 8], strides = [1, 1]} : vector<16x32xbf16> to vector<16x8xbf16>
    %106 = vector.extract_strided_slice %41 {offsets = [0, 24], sizes = [16, 8], strides = [1, 1]} : vector<16x32xbf16> to vector<16x8xbf16>
    %cst_38 = arith.constant dense<0.000000e+00> : vector<16x16xf32>
    %107 = tpu.matmul %105, %106, %cst_38 {dimension_numbers = #tpu.dot_dimension_numbers<[1], [1], [0], [0], [0, 0, 1, 0], [], []>} : vector<16x8xbf16>, vector<16x8xbf16>, vector<16x16xf32> -> vector<16x16xf32>
    %108 = arith.addf %107, %5 : vector<16x16xf32>
    %cst_39 = arith.constant dense<0xFF800000> : vector<16xf32>
    %109 = vector.multi_reduction <maximumf>, %108, %cst_39 [1] : vector<16x16xf32> to vector<16xf32>
    %110 = vector.shape_cast %109 : vector<16xf32> to vector<16x1xf32>
    %111 = vector.broadcast %110 : vector<16x1xf32> to vector<16x16xf32>
    %112 = arith.subf %108, %111 : vector<16x16xf32>
    %113 = math.exp %112 : vector<16x16xf32>
    %cst_40 = arith.constant dense<0.000000e+00> : vector<16xf32>
    %114 = vector.multi_reduction <add>, %113, %cst_40 [1] : vector<16x16xf32> to vector<16xf32>
    %115 = vector.shape_cast %114 : vector<16xf32> to vector<16x1xf32>
    %116 = tpu.reciprocal %115 {approx = true} : vector<16x1xf32> -> vector<16x1xf32>
    %117 = vector.broadcast %116 : vector<16x1xf32> to vector<16x16xf32>
    %118 = arith.mulf %113, %117 : vector<16x16xf32>
    %119 = arith.truncf %118 : vector<16x16xf32> to vector<16x16xbf16>
    %120 = vector.extract_strided_slice %42 {offsets = [0, 24], sizes = [16, 8], strides = [1, 1]} : vector<16x32xbf16> to vector<16x8xbf16>
    %cst_41 = arith.constant dense<0.000000e+00> : vector<16x8xf32>
    %121 = tpu.matmul %119, %120, %cst_41 {dimension_numbers = #tpu.dot_dimension_numbers<[1], [0], [0], [1], [0, 0, 1, 1], [], []>} : vector<16x16xbf16>, vector<16x8xbf16>, vector<16x8xf32> -> vector<16x8xf32>
    %c0_42 = arith.constant 0 : index
    %c3 = arith.constant 3 : index
    %c0_43 = arith.constant 0 : index
    %c0_44 = arith.constant 0 : index
    %122 = vector.load %arg4[%c0_42, %c3, %c0_43, %c0_44] : memref<4x4x8x32xf32, #tpu.memory_space<vmem>>, vector<1x1x8x32xf32>
    %123 = vector.shape_cast %122 : vector<1x1x8x32xf32> to vector<8x32xf32>
    %cst_45 = arith.constant dense<0.000000e+00> : vector<16x32xf32>
    %124 = tpu.matmul %121, %123, %cst_45 {dimension_numbers = #tpu.dot_dimension_numbers<[1], [0], [0], [1], [0, 0, 1, 1], [], []>} : vector<16x8xf32>, vector<8x32xf32>, vector<16x32xf32> -> vector<16x32xf32>
    %125 = arith.addf %104, %124 : vector<16x32xf32>
    %126 = vector.broadcast %15 : vector<1x32xf32> to vector<16x32xf32>
    %127 = arith.addf %125, %126 : vector<16x32xf32>
    %128 = arith.addf %1, %127 : vector<16x32xf32>
    %cst_46 = arith.constant dense<0.000000e+00> : vector<16xf32>
    %129 = vector.multi_reduction <add>, %128, %cst_46 [1] : vector<16x32xf32> to vector<16xf32>
    %130 = vector.shape_cast %129 : vector<16xf32> to vector<16x1xf32>
    %cst_47 = arith.constant 3.200000e+01 : f32
    %131 = vector.broadcast %cst_47 : f32 to vector<16x1xf32>
    %132 = arith.divf %130, %131 : vector<16x1xf32>
    %133 = arith.mulf %128, %128 : vector<16x32xf32>
    %cst_48 = arith.constant dense<0.000000e+00> : vector<16xf32>
    %134 = vector.multi_reduction <add>, %133, %cst_48 [1] : vector<16x32xf32> to vector<16xf32>
    %135 = vector.shape_cast %134 : vector<16xf32> to vector<16x1xf32>
    %cst_49 = arith.constant 3.200000e+01 : f32
    %136 = vector.broadcast %cst_49 : f32 to vector<16x1xf32>
    %137 = arith.divf %135, %136 : vector<16x1xf32>
    %138 = arith.mulf %132, %132 : vector<16x1xf32>
    %139 = arith.subf %137, %138 : vector<16x1xf32>
    %cst_50 = arith.constant 0.000000e+00 : f32
    %140 = vector.broadcast %cst_50 : f32 to vector<16x1xf32>
    %141 = arith.maximumf %139, %140 : vector<16x1xf32>
    %142 = vector.broadcast %132 : vector<16x1xf32> to vector<16x32xf32>
    %143 = arith.subf %128, %142 : vector<16x32xf32>
    %cst_51 = arith.constant 9.99999974E-6 : f32
    %144 = vector.broadcast %cst_51 : f32 to vector<16x1xf32>
    %145 = arith.addf %141, %144 : vector<16x1xf32>
    %146 = math.rsqrt %145 : vector<16x1xf32>
    %147 = vector.broadcast %146 : vector<16x1xf32> to vector<16x32xf32>
    %148 = arith.mulf %143, %147 : vector<16x32xf32>
    %149 = vector.broadcast %19 : vector<1x32xf32> to vector<16x32xf32>
    %150 = arith.mulf %148, %149 : vector<16x32xf32>
    %151 = vector.broadcast %20 : vector<1x32xf32> to vector<16x32xf32>
    %152 = arith.addf %150, %151 : vector<16x32xf32>
    %153 = arith.addf %152, %2 : vector<16x32xf32>
    %154 = arith.truncf %153 : vector<16x32xf32> to vector<16x32xbf16>
    %c0_52 = arith.constant 0 : index
    %c1_53 = arith.constant 1 : index
    %c0_54 = arith.constant 0 : index
    %c0_55 = arith.constant 0 : index
    %155 = vector.load %arg3[%c0_52, %c1_53, %c0_54, %c0_55] : memref<2x2x32x96xbf16, #tpu.memory_space<vmem>>, vector<1x1x32x96xbf16>
    %156 = vector.shape_cast %155 : vector<1x1x32x96xbf16> to vector<32x96xbf16>
    %157 = vector.extract_strided_slice %156 {offsets = [0, 0], sizes = [32, 32], strides = [1, 1]} : vector<32x96xbf16> to vector<32x32xbf16>
    %cst_56 = arith.constant dense<0.000000e+00> : vector<16x32xf32>
    %158 = tpu.matmul %154, %157, %cst_56 {dimension_numbers = #tpu.dot_dimension_numbers<[1], [0], [0], [1], [0, 0, 1, 1], [], []>} : vector<16x32xbf16>, vector<32x32xbf16>, vector<16x32xf32> -> vector<16x32xf32>
    %159 = vector.broadcast %13 : vector<1x32xf32> to vector<16x32xf32>
    %160 = arith.addf %158, %159 : vector<16x32xf32>
    %161 = vector.extract_strided_slice %156 {offsets = [0, 32], sizes = [32, 32], strides = [1, 1]} : vector<32x96xbf16> to vector<32x32xbf16>
    %cst_57 = arith.constant dense<0.000000e+00> : vector<32x32xf32>
    %162 = tpu.matmul %8, %161, %cst_57 {dimension_numbers = #tpu.dot_dimension_numbers<[1], [0], [0], [1], [0, 0, 1, 1], [], []>} : vector<32x32xbf16>, vector<32x32xbf16>, vector<32x32xf32> -> vector<32x32xf32>
    %163 = vector.extract_strided_slice %156 {offsets = [0, 64], sizes = [32, 32], strides = [1, 1]} : vector<32x96xbf16> to vector<32x32xbf16>
    %cst_58 = arith.constant dense<0.000000e+00> : vector<32x32xf32>
    %164 = tpu.matmul %7, %163, %cst_58 {dimension_numbers = #tpu.dot_dimension_numbers<[1], [0], [0], [1], [0, 0, 1, 1], [], []>} : vector<32x32xbf16>, vector<32x32xbf16>, vector<32x32xf32> -> vector<32x32xf32>
    %165 = vector.broadcast %14 : vector<1x32xf32> to vector<32x32xf32>
    %166 = arith.addf %164, %165 : vector<32x32xf32>
    %167 = arith.truncf %160 : vector<16x32xf32> to vector<16x32xbf16>
    %168 = arith.truncf %162 : vector<32x32xf32> to vector<32x32xbf16>
    %169 = arith.truncf %166 : vector<32x32xf32> to vector<32x32xbf16>
    %170 = vector.extract_strided_slice %167 {offsets = [0, 0], sizes = [16, 8], strides = [1, 1]} : vector<16x32xbf16> to vector<16x8xbf16>
    %171 = vector.extract_strided_slice %168 {offsets = [0, 0], sizes = [32, 8], strides = [1, 1]} : vector<32x32xbf16> to vector<32x8xbf16>
    %cst_59 = arith.constant dense<0.000000e+00> : vector<16x32xf32>
    %172 = tpu.matmul %170, %171, %cst_59 {dimension_numbers = #tpu.dot_dimension_numbers<[1], [1], [0], [0], [0, 0, 1, 0], [], []>} : vector<16x8xbf16>, vector<32x8xbf16>, vector<16x32xf32> -> vector<16x32xf32>
    %173 = arith.addf %172, %6 : vector<16x32xf32>
    %cst_60 = arith.constant dense<0xFF800000> : vector<16xf32>
    %174 = vector.multi_reduction <maximumf>, %173, %cst_60 [1] : vector<16x32xf32> to vector<16xf32>
    %175 = vector.shape_cast %174 : vector<16xf32> to vector<16x1xf32>
    %176 = vector.broadcast %175 : vector<16x1xf32> to vector<16x32xf32>
    %177 = arith.subf %173, %176 : vector<16x32xf32>
    %178 = math.exp %177 : vector<16x32xf32>
    %cst_61 = arith.constant dense<0.000000e+00> : vector<16xf32>
    %179 = vector.multi_reduction <add>, %178, %cst_61 [1] : vector<16x32xf32> to vector<16xf32>
    %180 = vector.shape_cast %179 : vector<16xf32> to vector<16x1xf32>
    %181 = tpu.reciprocal %180 {approx = true} : vector<16x1xf32> -> vector<16x1xf32>
    %182 = vector.broadcast %181 : vector<16x1xf32> to vector<16x32xf32>
    %183 = arith.mulf %178, %182 : vector<16x32xf32>
    %184 = arith.truncf %183 : vector<16x32xf32> to vector<16x32xbf16>
    %185 = vector.extract_strided_slice %169 {offsets = [0, 0], sizes = [32, 8], strides = [1, 1]} : vector<32x32xbf16> to vector<32x8xbf16>
    %cst_62 = arith.constant dense<0.000000e+00> : vector<16x8xf32>
    %186 = tpu.matmul %184, %185, %cst_62 {dimension_numbers = #tpu.dot_dimension_numbers<[1], [0], [0], [1], [0, 0, 1, 1], [], []>} : vector<16x32xbf16>, vector<32x8xbf16>, vector<16x8xf32> -> vector<16x8xf32>
    %c1_63 = arith.constant 1 : index
    %c0_64 = arith.constant 0 : index
    %c0_65 = arith.constant 0 : index
    %c0_66 = arith.constant 0 : index
    %187 = vector.load %arg4[%c1_63, %c0_64, %c0_65, %c0_66] : memref<4x4x8x32xf32, #tpu.memory_space<vmem>>, vector<1x1x8x32xf32>
    %188 = vector.shape_cast %187 : vector<1x1x8x32xf32> to vector<8x32xf32>
    %cst_67 = arith.constant dense<0.000000e+00> : vector<16x32xf32>
    %189 = tpu.matmul %186, %188, %cst_67 {dimension_numbers = #tpu.dot_dimension_numbers<[1], [0], [0], [1], [0, 0, 1, 1], [], []>} : vector<16x8xf32>, vector<8x32xf32>, vector<16x32xf32> -> vector<16x32xf32>
    %190 = vector.extract_strided_slice %167 {offsets = [0, 8], sizes = [16, 8], strides = [1, 1]} : vector<16x32xbf16> to vector<16x8xbf16>
    %191 = vector.extract_strided_slice %168 {offsets = [0, 8], sizes = [32, 8], strides = [1, 1]} : vector<32x32xbf16> to vector<32x8xbf16>
    %cst_68 = arith.constant dense<0.000000e+00> : vector<16x32xf32>
    %192 = tpu.matmul %190, %191, %cst_68 {dimension_numbers = #tpu.dot_dimension_numbers<[1], [1], [0], [0], [0, 0, 1, 0], [], []>} : vector<16x8xbf16>, vector<32x8xbf16>, vector<16x32xf32> -> vector<16x32xf32>
    %193 = arith.addf %192, %6 : vector<16x32xf32>
    %cst_69 = arith.constant dense<0xFF800000> : vector<16xf32>
    %194 = vector.multi_reduction <maximumf>, %193, %cst_69 [1] : vector<16x32xf32> to vector<16xf32>
    %195 = vector.shape_cast %194 : vector<16xf32> to vector<16x1xf32>
    %196 = vector.broadcast %195 : vector<16x1xf32> to vector<16x32xf32>
    %197 = arith.subf %193, %196 : vector<16x32xf32>
    %198 = math.exp %197 : vector<16x32xf32>
    %cst_70 = arith.constant dense<0.000000e+00> : vector<16xf32>
    %199 = vector.multi_reduction <add>, %198, %cst_70 [1] : vector<16x32xf32> to vector<16xf32>
    %200 = vector.shape_cast %199 : vector<16xf32> to vector<16x1xf32>
    %201 = tpu.reciprocal %200 {approx = true} : vector<16x1xf32> -> vector<16x1xf32>
    %202 = vector.broadcast %201 : vector<16x1xf32> to vector<16x32xf32>
    %203 = arith.mulf %198, %202 : vector<16x32xf32>
    %204 = arith.truncf %203 : vector<16x32xf32> to vector<16x32xbf16>
    %205 = vector.extract_strided_slice %169 {offsets = [0, 8], sizes = [32, 8], strides = [1, 1]} : vector<32x32xbf16> to vector<32x8xbf16>
    %cst_71 = arith.constant dense<0.000000e+00> : vector<16x8xf32>
    %206 = tpu.matmul %204, %205, %cst_71 {dimension_numbers = #tpu.dot_dimension_numbers<[1], [0], [0], [1], [0, 0, 1, 1], [], []>} : vector<16x32xbf16>, vector<32x8xbf16>, vector<16x8xf32> -> vector<16x8xf32>
    %c1_72 = arith.constant 1 : index
    %c1_73 = arith.constant 1 : index
    %c0_74 = arith.constant 0 : index
    %c0_75 = arith.constant 0 : index
    %207 = vector.load %arg4[%c1_72, %c1_73, %c0_74, %c0_75] : memref<4x4x8x32xf32, #tpu.memory_space<vmem>>, vector<1x1x8x32xf32>
    %208 = vector.shape_cast %207 : vector<1x1x8x32xf32> to vector<8x32xf32>
    %cst_76 = arith.constant dense<0.000000e+00> : vector<16x32xf32>
    %209 = tpu.matmul %206, %208, %cst_76 {dimension_numbers = #tpu.dot_dimension_numbers<[1], [0], [0], [1], [0, 0, 1, 1], [], []>} : vector<16x8xf32>, vector<8x32xf32>, vector<16x32xf32> -> vector<16x32xf32>
    %210 = arith.addf %189, %209 : vector<16x32xf32>
    %211 = vector.extract_strided_slice %167 {offsets = [0, 16], sizes = [16, 8], strides = [1, 1]} : vector<16x32xbf16> to vector<16x8xbf16>
    %212 = vector.extract_strided_slice %168 {offsets = [0, 16], sizes = [32, 8], strides = [1, 1]} : vector<32x32xbf16> to vector<32x8xbf16>
    %cst_77 = arith.constant dense<0.000000e+00> : vector<16x32xf32>
    %213 = tpu.matmul %211, %212, %cst_77 {dimension_numbers = #tpu.dot_dimension_numbers<[1], [1], [0], [0], [0, 0, 1, 0], [], []>} : vector<16x8xbf16>, vector<32x8xbf16>, vector<16x32xf32> -> vector<16x32xf32>
    %214 = arith.addf %213, %6 : vector<16x32xf32>
    %cst_78 = arith.constant dense<0xFF800000> : vector<16xf32>
    %215 = vector.multi_reduction <maximumf>, %214, %cst_78 [1] : vector<16x32xf32> to vector<16xf32>
    %216 = vector.shape_cast %215 : vector<16xf32> to vector<16x1xf32>
    %217 = vector.broadcast %216 : vector<16x1xf32> to vector<16x32xf32>
    %218 = arith.subf %214, %217 : vector<16x32xf32>
    %219 = math.exp %218 : vector<16x32xf32>
    %cst_79 = arith.constant dense<0.000000e+00> : vector<16xf32>
    %220 = vector.multi_reduction <add>, %219, %cst_79 [1] : vector<16x32xf32> to vector<16xf32>
    %221 = vector.shape_cast %220 : vector<16xf32> to vector<16x1xf32>
    %222 = tpu.reciprocal %221 {approx = true} : vector<16x1xf32> -> vector<16x1xf32>
    %223 = vector.broadcast %222 : vector<16x1xf32> to vector<16x32xf32>
    %224 = arith.mulf %219, %223 : vector<16x32xf32>
    %225 = arith.truncf %224 : vector<16x32xf32> to vector<16x32xbf16>
    %226 = vector.extract_strided_slice %169 {offsets = [0, 16], sizes = [32, 8], strides = [1, 1]} : vector<32x32xbf16> to vector<32x8xbf16>
    %cst_80 = arith.constant dense<0.000000e+00> : vector<16x8xf32>
    %227 = tpu.matmul %225, %226, %cst_80 {dimension_numbers = #tpu.dot_dimension_numbers<[1], [0], [0], [1], [0, 0, 1, 1], [], []>} : vector<16x32xbf16>, vector<32x8xbf16>, vector<16x8xf32> -> vector<16x8xf32>
    %c1_81 = arith.constant 1 : index
    %c2_82 = arith.constant 2 : index
    %c0_83 = arith.constant 0 : index
    %c0_84 = arith.constant 0 : index
    %228 = vector.load %arg4[%c1_81, %c2_82, %c0_83, %c0_84] : memref<4x4x8x32xf32, #tpu.memory_space<vmem>>, vector<1x1x8x32xf32>
    %229 = vector.shape_cast %228 : vector<1x1x8x32xf32> to vector<8x32xf32>
    %cst_85 = arith.constant dense<0.000000e+00> : vector<16x32xf32>
    %230 = tpu.matmul %227, %229, %cst_85 {dimension_numbers = #tpu.dot_dimension_numbers<[1], [0], [0], [1], [0, 0, 1, 1], [], []>} : vector<16x8xf32>, vector<8x32xf32>, vector<16x32xf32> -> vector<16x32xf32>
    %231 = arith.addf %210, %230 : vector<16x32xf32>
    %232 = vector.extract_strided_slice %167 {offsets = [0, 24], sizes = [16, 8], strides = [1, 1]} : vector<16x32xbf16> to vector<16x8xbf16>
    %233 = vector.extract_strided_slice %168 {offsets = [0, 24], sizes = [32, 8], strides = [1, 1]} : vector<32x32xbf16> to vector<32x8xbf16>
    %cst_86 = arith.constant dense<0.000000e+00> : vector<16x32xf32>
    %234 = tpu.matmul %232, %233, %cst_86 {dimension_numbers = #tpu.dot_dimension_numbers<[1], [1], [0], [0], [0, 0, 1, 0], [], []>} : vector<16x8xbf16>, vector<32x8xbf16>, vector<16x32xf32> -> vector<16x32xf32>
    %235 = arith.addf %234, %6 : vector<16x32xf32>
    %cst_87 = arith.constant dense<0xFF800000> : vector<16xf32>
    %236 = vector.multi_reduction <maximumf>, %235, %cst_87 [1] : vector<16x32xf32> to vector<16xf32>
    %237 = vector.shape_cast %236 : vector<16xf32> to vector<16x1xf32>
    %238 = vector.broadcast %237 : vector<16x1xf32> to vector<16x32xf32>
    %239 = arith.subf %235, %238 : vector<16x32xf32>
    %240 = math.exp %239 : vector<16x32xf32>
    %cst_88 = arith.constant dense<0.000000e+00> : vector<16xf32>
    %241 = vector.multi_reduction <add>, %240, %cst_88 [1] : vector<16x32xf32> to vector<16xf32>
    %242 = vector.shape_cast %241 : vector<16xf32> to vector<16x1xf32>
    %243 = tpu.reciprocal %242 {approx = true} : vector<16x1xf32> -> vector<16x1xf32>
    %244 = vector.broadcast %243 : vector<16x1xf32> to vector<16x32xf32>
    %245 = arith.mulf %240, %244 : vector<16x32xf32>
    %246 = arith.truncf %245 : vector<16x32xf32> to vector<16x32xbf16>
    %247 = vector.extract_strided_slice %169 {offsets = [0, 24], sizes = [32, 8], strides = [1, 1]} : vector<32x32xbf16> to vector<32x8xbf16>
    %cst_89 = arith.constant dense<0.000000e+00> : vector<16x8xf32>
    %248 = tpu.matmul %246, %247, %cst_89 {dimension_numbers = #tpu.dot_dimension_numbers<[1], [0], [0], [1], [0, 0, 1, 1], [], []>} : vector<16x32xbf16>, vector<32x8xbf16>, vector<16x8xf32> -> vector<16x8xf32>
    %c1_90 = arith.constant 1 : index
    %c3_91 = arith.constant 3 : index
    %c0_92 = arith.constant 0 : index
    %c0_93 = arith.constant 0 : index
    %249 = vector.load %arg4[%c1_90, %c3_91, %c0_92, %c0_93] : memref<4x4x8x32xf32, #tpu.memory_space<vmem>>, vector<1x1x8x32xf32>
    %250 = vector.shape_cast %249 : vector<1x1x8x32xf32> to vector<8x32xf32>
    %cst_94 = arith.constant dense<0.000000e+00> : vector<16x32xf32>
    %251 = tpu.matmul %248, %250, %cst_94 {dimension_numbers = #tpu.dot_dimension_numbers<[1], [0], [0], [1], [0, 0, 1, 1], [], []>} : vector<16x8xf32>, vector<8x32xf32>, vector<16x32xf32> -> vector<16x32xf32>
    %252 = arith.addf %231, %251 : vector<16x32xf32>
    %253 = vector.broadcast %16 : vector<1x32xf32> to vector<16x32xf32>
    %254 = arith.addf %252, %253 : vector<16x32xf32>
    %255 = arith.addf %152, %254 : vector<16x32xf32>
    %cst_95 = arith.constant dense<0.000000e+00> : vector<16xf32>
    %256 = vector.multi_reduction <add>, %255, %cst_95 [1] : vector<16x32xf32> to vector<16xf32>
    %257 = vector.shape_cast %256 : vector<16xf32> to vector<16x1xf32>
    %cst_96 = arith.constant 3.200000e+01 : f32
    %258 = vector.broadcast %cst_96 : f32 to vector<16x1xf32>
    %259 = arith.divf %257, %258 : vector<16x1xf32>
    %260 = arith.mulf %255, %255 : vector<16x32xf32>
    %cst_97 = arith.constant dense<0.000000e+00> : vector<16xf32>
    %261 = vector.multi_reduction <add>, %260, %cst_97 [1] : vector<16x32xf32> to vector<16xf32>
    %262 = vector.shape_cast %261 : vector<16xf32> to vector<16x1xf32>
    %cst_98 = arith.constant 3.200000e+01 : f32
    %263 = vector.broadcast %cst_98 : f32 to vector<16x1xf32>
    %264 = arith.divf %262, %263 : vector<16x1xf32>
    %265 = arith.mulf %259, %259 : vector<16x1xf32>
    %266 = arith.subf %264, %265 : vector<16x1xf32>
    %cst_99 = arith.constant 0.000000e+00 : f32
    %267 = vector.broadcast %cst_99 : f32 to vector<16x1xf32>
    %268 = arith.maximumf %266, %267 : vector<16x1xf32>
    %269 = vector.broadcast %259 : vector<16x1xf32> to vector<16x32xf32>
    %270 = arith.subf %255, %269 : vector<16x32xf32>
    %cst_100 = arith.constant 9.99999974E-6 : f32
    %271 = vector.broadcast %cst_100 : f32 to vector<16x1xf32>
    %272 = arith.addf %268, %271 : vector<16x1xf32>
    %273 = math.rsqrt %272 : vector<16x1xf32>
    %274 = vector.broadcast %273 : vector<16x1xf32> to vector<16x32xf32>
    %275 = arith.mulf %270, %274 : vector<16x32xf32>
    %276 = vector.broadcast %21 : vector<1x32xf32> to vector<16x32xf32>
    %277 = arith.mulf %275, %276 : vector<16x32xf32>
    %278 = vector.broadcast %22 : vector<1x32xf32> to vector<16x32xf32>
    %279 = arith.addf %277, %278 : vector<16x32xf32>
    %280 = arith.truncf %279 : vector<16x32xf32> to vector<16x32xbf16>
    %c0_101 = arith.constant 0 : index
    %c0_102 = arith.constant 0 : index
    %c0_103 = arith.constant 0 : index
    %281 = vector.load %arg5[%c0_101, %c0_102, %c0_103] : memref<2x32x64xbf16, #tpu.memory_space<vmem>>, vector<1x32x64xbf16>
    %282 = vector.shape_cast %281 : vector<1x32x64xbf16> to vector<32x64xbf16>
    %cst_104 = arith.constant dense<0.000000e+00> : vector<16x64xf32>
    %283 = tpu.matmul %280, %282, %cst_104 {dimension_numbers = #tpu.dot_dimension_numbers<[1], [0], [0], [1], [0, 0, 1, 1], [], []>} : vector<16x32xbf16>, vector<32x64xbf16>, vector<16x64xf32> -> vector<16x64xf32>
    %284 = vector.broadcast %17 : vector<1x64xf32> to vector<16x64xf32>
    %285 = arith.addf %283, %284 : vector<16x64xf32>
    %cst_105 = arith.constant 0.000000e+00 : f32
    %286 = vector.broadcast %cst_105 : f32 to vector<16x64xf32>
    %287 = arith.maximumf %285, %286 : vector<16x64xf32>
    %288 = arith.truncf %287 : vector<16x64xf32> to vector<16x64xbf16>
    %c0_106 = arith.constant 0 : index
    %c0_107 = arith.constant 0 : index
    %c0_108 = arith.constant 0 : index
    %289 = vector.load %arg6[%c0_106, %c0_107, %c0_108] : memref<2x64x32xbf16, #tpu.memory_space<vmem>>, vector<1x64x32xbf16>
    %290 = vector.shape_cast %289 : vector<1x64x32xbf16> to vector<64x32xbf16>
    %cst_109 = arith.constant dense<0.000000e+00> : vector<16x32xf32>
    %291 = tpu.matmul %288, %290, %cst_109 {dimension_numbers = #tpu.dot_dimension_numbers<[1], [0], [0], [1], [0, 0, 1, 1], [], []>} : vector<16x64xbf16>, vector<64x32xbf16>, vector<16x32xf32> -> vector<16x32xf32>
    %292 = vector.broadcast %18 : vector<1x32xf32> to vector<16x32xf32>
    %293 = arith.addf %291, %292 : vector<16x32xf32>
    %294 = arith.addf %279, %293 : vector<16x32xf32>
    %cst_110 = arith.constant dense<0.000000e+00> : vector<16xf32>
    %295 = vector.multi_reduction <add>, %294, %cst_110 [1] : vector<16x32xf32> to vector<16xf32>
    %296 = vector.shape_cast %295 : vector<16xf32> to vector<16x1xf32>
    %cst_111 = arith.constant 3.200000e+01 : f32
    %297 = vector.broadcast %cst_111 : f32 to vector<16x1xf32>
    %298 = arith.divf %296, %297 : vector<16x1xf32>
    %299 = arith.mulf %294, %294 : vector<16x32xf32>
    %cst_112 = arith.constant dense<0.000000e+00> : vector<16xf32>
    %300 = vector.multi_reduction <add>, %299, %cst_112 [1] : vector<16x32xf32> to vector<16xf32>
    %301 = vector.shape_cast %300 : vector<16xf32> to vector<16x1xf32>
    %cst_113 = arith.constant 3.200000e+01 : f32
    %302 = vector.broadcast %cst_113 : f32 to vector<16x1xf32>
    %303 = arith.divf %301, %302 : vector<16x1xf32>
    %304 = arith.mulf %298, %298 : vector<16x1xf32>
    %305 = arith.subf %303, %304 : vector<16x1xf32>
    %cst_114 = arith.constant 0.000000e+00 : f32
    %306 = vector.broadcast %cst_114 : f32 to vector<16x1xf32>
    %307 = arith.maximumf %305, %306 : vector<16x1xf32>
    %308 = vector.broadcast %298 : vector<16x1xf32> to vector<16x32xf32>
    %309 = arith.subf %294, %308 : vector<16x32xf32>
    %cst_115 = arith.constant 9.99999974E-6 : f32
    %310 = vector.broadcast %cst_115 : f32 to vector<16x1xf32>
    %311 = arith.addf %307, %310 : vector<16x1xf32>
    %312 = math.rsqrt %311 : vector<16x1xf32>
    %313 = vector.broadcast %312 : vector<16x1xf32> to vector<16x32xf32>
    %314 = arith.mulf %309, %313 : vector<16x32xf32>
    %315 = vector.broadcast %23 : vector<1x32xf32> to vector<16x32xf32>
    %316 = arith.mulf %314, %315 : vector<16x32xf32>
    %317 = vector.broadcast %24 : vector<1x32xf32> to vector<16x32xf32>
    %318 = arith.addf %316, %317 : vector<16x32xf32>
    %c1_116 = arith.constant 1 : index
    %c0_117 = arith.constant 0 : index
    %c0_118 = arith.constant 0 : index
    %319 = vector.load %arg7[%c1_116, %c0_117, %c0_118] : memref<3x12x128xf32, #tpu.memory_space<vmem>>, vector<1x12x128xf32>
    %320 = vector.shape_cast %319 : vector<1x12x128xf32> to vector<12x128xf32>
    %321 = vector.extract_strided_slice %320 {offsets = [0, 0], sizes = [1, 32], strides = [1, 1]} : vector<12x128xf32> to vector<1x32xf32>
    %322 = vector.extract_strided_slice %320 {offsets = [0, 64], sizes = [1, 32], strides = [1, 1]} : vector<12x128xf32> to vector<1x32xf32>
    %323 = vector.extract_strided_slice %320 {offsets = [1, 0], sizes = [1, 32], strides = [1, 1]} : vector<12x128xf32> to vector<1x32xf32>
    %324 = vector.extract_strided_slice %320 {offsets = [1, 64], sizes = [1, 32], strides = [1, 1]} : vector<12x128xf32> to vector<1x32xf32>
    %325 = vector.extract_strided_slice %320 {offsets = [2, 0], sizes = [1, 32], strides = [1, 1]} : vector<12x128xf32> to vector<1x32xf32>
    %326 = vector.extract_strided_slice %320 {offsets = [3, 0], sizes = [1, 32], strides = [1, 1]} : vector<12x128xf32> to vector<1x32xf32>
    %327 = vector.extract_strided_slice %320 {offsets = [4, 0], sizes = [1, 64], strides = [1, 1]} : vector<12x128xf32> to vector<1x64xf32>
    %328 = vector.extract_strided_slice %320 {offsets = [5, 0], sizes = [1, 32], strides = [1, 1]} : vector<12x128xf32> to vector<1x32xf32>
    %329 = vector.extract_strided_slice %320 {offsets = [6, 0], sizes = [1, 32], strides = [1, 1]} : vector<12x128xf32> to vector<1x32xf32>
    %330 = vector.extract_strided_slice %320 {offsets = [7, 0], sizes = [1, 32], strides = [1, 1]} : vector<12x128xf32> to vector<1x32xf32>
    %331 = vector.extract_strided_slice %320 {offsets = [8, 0], sizes = [1, 32], strides = [1, 1]} : vector<12x128xf32> to vector<1x32xf32>
    %332 = vector.extract_strided_slice %320 {offsets = [9, 0], sizes = [1, 32], strides = [1, 1]} : vector<12x128xf32> to vector<1x32xf32>
    %333 = vector.extract_strided_slice %320 {offsets = [10, 0], sizes = [1, 32], strides = [1, 1]} : vector<12x128xf32> to vector<1x32xf32>
    %334 = vector.extract_strided_slice %320 {offsets = [11, 0], sizes = [1, 32], strides = [1, 1]} : vector<12x128xf32> to vector<1x32xf32>
    %335 = arith.addf %318, %2 : vector<16x32xf32>
    %336 = arith.truncf %335 : vector<16x32xf32> to vector<16x32xbf16>
    %337 = arith.truncf %318 : vector<16x32xf32> to vector<16x32xbf16>
    %c1_119 = arith.constant 1 : index
    %c0_120 = arith.constant 0 : index
    %c0_121 = arith.constant 0 : index
    %c0_122 = arith.constant 0 : index
    %338 = vector.load %arg3[%c1_119, %c0_120, %c0_121, %c0_122] : memref<2x2x32x96xbf16, #tpu.memory_space<vmem>>, vector<1x1x32x96xbf16>
    %339 = vector.shape_cast %338 : vector<1x1x32x96xbf16> to vector<32x96xbf16>
    %340 = vector.extract_strided_slice %339 {offsets = [0, 0], sizes = [32, 64], strides = [1, 1]} : vector<32x96xbf16> to vector<32x64xbf16>
    %cst_123 = arith.constant dense<0.000000e+00> : vector<16x64xf32>
    %341 = tpu.matmul %336, %340, %cst_123 {dimension_numbers = #tpu.dot_dimension_numbers<[1], [0], [0], [1], [0, 0, 1, 1], [], []>} : vector<16x32xbf16>, vector<32x64xbf16>, vector<16x64xf32> -> vector<16x64xf32>
    %342 = vector.extract_strided_slice %341 {offsets = [0, 0], sizes = [16, 32], strides = [1, 1]} : vector<16x64xf32> to vector<16x32xf32>
    %343 = vector.broadcast %321 : vector<1x32xf32> to vector<16x32xf32>
    %344 = arith.addf %342, %343 : vector<16x32xf32>
    %345 = vector.extract_strided_slice %341 {offsets = [0, 32], sizes = [16, 32], strides = [1, 1]} : vector<16x64xf32> to vector<16x32xf32>
    %346 = vector.extract_strided_slice %339 {offsets = [0, 64], sizes = [32, 32], strides = [1, 1]} : vector<32x96xbf16> to vector<32x32xbf16>
    %cst_124 = arith.constant dense<0.000000e+00> : vector<16x32xf32>
    %347 = tpu.matmul %337, %346, %cst_124 {dimension_numbers = #tpu.dot_dimension_numbers<[1], [0], [0], [1], [0, 0, 1, 1], [], []>} : vector<16x32xbf16>, vector<32x32xbf16>, vector<16x32xf32> -> vector<16x32xf32>
    %348 = vector.broadcast %322 : vector<1x32xf32> to vector<16x32xf32>
    %349 = arith.addf %347, %348 : vector<16x32xf32>
    %350 = arith.truncf %344 : vector<16x32xf32> to vector<16x32xbf16>
    %351 = arith.truncf %345 : vector<16x32xf32> to vector<16x32xbf16>
    %352 = arith.truncf %349 : vector<16x32xf32> to vector<16x32xbf16>
    %353 = vector.extract_strided_slice %350 {offsets = [0, 0], sizes = [16, 8], strides = [1, 1]} : vector<16x32xbf16> to vector<16x8xbf16>
    %354 = vector.extract_strided_slice %351 {offsets = [0, 0], sizes = [16, 8], strides = [1, 1]} : vector<16x32xbf16> to vector<16x8xbf16>
    %cst_125 = arith.constant dense<0.000000e+00> : vector<16x16xf32>
    %355 = tpu.matmul %353, %354, %cst_125 {dimension_numbers = #tpu.dot_dimension_numbers<[1], [1], [0], [0], [0, 0, 1, 0], [], []>} : vector<16x8xbf16>, vector<16x8xbf16>, vector<16x16xf32> -> vector<16x16xf32>
    %356 = arith.addf %355, %5 : vector<16x16xf32>
    %cst_126 = arith.constant dense<0xFF800000> : vector<16xf32>
    %357 = vector.multi_reduction <maximumf>, %356, %cst_126 [1] : vector<16x16xf32> to vector<16xf32>
    %358 = vector.shape_cast %357 : vector<16xf32> to vector<16x1xf32>
    %359 = vector.broadcast %358 : vector<16x1xf32> to vector<16x16xf32>
    %360 = arith.subf %356, %359 : vector<16x16xf32>
    %361 = math.exp %360 : vector<16x16xf32>
    %cst_127 = arith.constant dense<0.000000e+00> : vector<16xf32>
    %362 = vector.multi_reduction <add>, %361, %cst_127 [1] : vector<16x16xf32> to vector<16xf32>
    %363 = vector.shape_cast %362 : vector<16xf32> to vector<16x1xf32>
    %364 = tpu.reciprocal %363 {approx = true} : vector<16x1xf32> -> vector<16x1xf32>
    %365 = vector.broadcast %364 : vector<16x1xf32> to vector<16x16xf32>
    %366 = arith.mulf %361, %365 : vector<16x16xf32>
    %367 = arith.truncf %366 : vector<16x16xf32> to vector<16x16xbf16>
    %368 = vector.extract_strided_slice %352 {offsets = [0, 0], sizes = [16, 8], strides = [1, 1]} : vector<16x32xbf16> to vector<16x8xbf16>
    %cst_128 = arith.constant dense<0.000000e+00> : vector<16x8xf32>
    %369 = tpu.matmul %367, %368, %cst_128 {dimension_numbers = #tpu.dot_dimension_numbers<[1], [0], [0], [1], [0, 0, 1, 1], [], []>} : vector<16x16xbf16>, vector<16x8xbf16>, vector<16x8xf32> -> vector<16x8xf32>
    %c2_129 = arith.constant 2 : index
    %c0_130 = arith.constant 0 : index
    %c0_131 = arith.constant 0 : index
    %c0_132 = arith.constant 0 : index
    %370 = vector.load %arg4[%c2_129, %c0_130, %c0_131, %c0_132] : memref<4x4x8x32xf32, #tpu.memory_space<vmem>>, vector<1x1x8x32xf32>
    %371 = vector.shape_cast %370 : vector<1x1x8x32xf32> to vector<8x32xf32>
    %cst_133 = arith.constant dense<0.000000e+00> : vector<16x32xf32>
    %372 = tpu.matmul %369, %371, %cst_133 {dimension_numbers = #tpu.dot_dimension_numbers<[1], [0], [0], [1], [0, 0, 1, 1], [], []>} : vector<16x8xf32>, vector<8x32xf32>, vector<16x32xf32> -> vector<16x32xf32>
    %373 = vector.extract_strided_slice %350 {offsets = [0, 8], sizes = [16, 8], strides = [1, 1]} : vector<16x32xbf16> to vector<16x8xbf16>
    %374 = vector.extract_strided_slice %351 {offsets = [0, 8], sizes = [16, 8], strides = [1, 1]} : vector<16x32xbf16> to vector<16x8xbf16>
    %cst_134 = arith.constant dense<0.000000e+00> : vector<16x16xf32>
    %375 = tpu.matmul %373, %374, %cst_134 {dimension_numbers = #tpu.dot_dimension_numbers<[1], [1], [0], [0], [0, 0, 1, 0], [], []>} : vector<16x8xbf16>, vector<16x8xbf16>, vector<16x16xf32> -> vector<16x16xf32>
    %376 = arith.addf %375, %5 : vector<16x16xf32>
    %cst_135 = arith.constant dense<0xFF800000> : vector<16xf32>
    %377 = vector.multi_reduction <maximumf>, %376, %cst_135 [1] : vector<16x16xf32> to vector<16xf32>
    %378 = vector.shape_cast %377 : vector<16xf32> to vector<16x1xf32>
    %379 = vector.broadcast %378 : vector<16x1xf32> to vector<16x16xf32>
    %380 = arith.subf %376, %379 : vector<16x16xf32>
    %381 = math.exp %380 : vector<16x16xf32>
    %cst_136 = arith.constant dense<0.000000e+00> : vector<16xf32>
    %382 = vector.multi_reduction <add>, %381, %cst_136 [1] : vector<16x16xf32> to vector<16xf32>
    %383 = vector.shape_cast %382 : vector<16xf32> to vector<16x1xf32>
    %384 = tpu.reciprocal %383 {approx = true} : vector<16x1xf32> -> vector<16x1xf32>
    %385 = vector.broadcast %384 : vector<16x1xf32> to vector<16x16xf32>
    %386 = arith.mulf %381, %385 : vector<16x16xf32>
    %387 = arith.truncf %386 : vector<16x16xf32> to vector<16x16xbf16>
    %388 = vector.extract_strided_slice %352 {offsets = [0, 8], sizes = [16, 8], strides = [1, 1]} : vector<16x32xbf16> to vector<16x8xbf16>
    %cst_137 = arith.constant dense<0.000000e+00> : vector<16x8xf32>
    %389 = tpu.matmul %387, %388, %cst_137 {dimension_numbers = #tpu.dot_dimension_numbers<[1], [0], [0], [1], [0, 0, 1, 1], [], []>} : vector<16x16xbf16>, vector<16x8xbf16>, vector<16x8xf32> -> vector<16x8xf32>
    %c2_138 = arith.constant 2 : index
    %c1_139 = arith.constant 1 : index
    %c0_140 = arith.constant 0 : index
    %c0_141 = arith.constant 0 : index
    %390 = vector.load %arg4[%c2_138, %c1_139, %c0_140, %c0_141] : memref<4x4x8x32xf32, #tpu.memory_space<vmem>>, vector<1x1x8x32xf32>
    %391 = vector.shape_cast %390 : vector<1x1x8x32xf32> to vector<8x32xf32>
    %cst_142 = arith.constant dense<0.000000e+00> : vector<16x32xf32>
    %392 = tpu.matmul %389, %391, %cst_142 {dimension_numbers = #tpu.dot_dimension_numbers<[1], [0], [0], [1], [0, 0, 1, 1], [], []>} : vector<16x8xf32>, vector<8x32xf32>, vector<16x32xf32> -> vector<16x32xf32>
    %393 = arith.addf %372, %392 : vector<16x32xf32>
    %394 = vector.extract_strided_slice %350 {offsets = [0, 16], sizes = [16, 8], strides = [1, 1]} : vector<16x32xbf16> to vector<16x8xbf16>
    %395 = vector.extract_strided_slice %351 {offsets = [0, 16], sizes = [16, 8], strides = [1, 1]} : vector<16x32xbf16> to vector<16x8xbf16>
    %cst_143 = arith.constant dense<0.000000e+00> : vector<16x16xf32>
    %396 = tpu.matmul %394, %395, %cst_143 {dimension_numbers = #tpu.dot_dimension_numbers<[1], [1], [0], [0], [0, 0, 1, 0], [], []>} : vector<16x8xbf16>, vector<16x8xbf16>, vector<16x16xf32> -> vector<16x16xf32>
    %397 = arith.addf %396, %5 : vector<16x16xf32>
    %cst_144 = arith.constant dense<0xFF800000> : vector<16xf32>
    %398 = vector.multi_reduction <maximumf>, %397, %cst_144 [1] : vector<16x16xf32> to vector<16xf32>
    %399 = vector.shape_cast %398 : vector<16xf32> to vector<16x1xf32>
    %400 = vector.broadcast %399 : vector<16x1xf32> to vector<16x16xf32>
    %401 = arith.subf %397, %400 : vector<16x16xf32>
    %402 = math.exp %401 : vector<16x16xf32>
    %cst_145 = arith.constant dense<0.000000e+00> : vector<16xf32>
    %403 = vector.multi_reduction <add>, %402, %cst_145 [1] : vector<16x16xf32> to vector<16xf32>
    %404 = vector.shape_cast %403 : vector<16xf32> to vector<16x1xf32>
    %405 = tpu.reciprocal %404 {approx = true} : vector<16x1xf32> -> vector<16x1xf32>
    %406 = vector.broadcast %405 : vector<16x1xf32> to vector<16x16xf32>
    %407 = arith.mulf %402, %406 : vector<16x16xf32>
    %408 = arith.truncf %407 : vector<16x16xf32> to vector<16x16xbf16>
    %409 = vector.extract_strided_slice %352 {offsets = [0, 16], sizes = [16, 8], strides = [1, 1]} : vector<16x32xbf16> to vector<16x8xbf16>
    %cst_146 = arith.constant dense<0.000000e+00> : vector<16x8xf32>
    %410 = tpu.matmul %408, %409, %cst_146 {dimension_numbers = #tpu.dot_dimension_numbers<[1], [0], [0], [1], [0, 0, 1, 1], [], []>} : vector<16x16xbf16>, vector<16x8xbf16>, vector<16x8xf32> -> vector<16x8xf32>
    %c2_147 = arith.constant 2 : index
    %c2_148 = arith.constant 2 : index
    %c0_149 = arith.constant 0 : index
    %c0_150 = arith.constant 0 : index
    %411 = vector.load %arg4[%c2_147, %c2_148, %c0_149, %c0_150] : memref<4x4x8x32xf32, #tpu.memory_space<vmem>>, vector<1x1x8x32xf32>
    %412 = vector.shape_cast %411 : vector<1x1x8x32xf32> to vector<8x32xf32>
    %cst_151 = arith.constant dense<0.000000e+00> : vector<16x32xf32>
    %413 = tpu.matmul %410, %412, %cst_151 {dimension_numbers = #tpu.dot_dimension_numbers<[1], [0], [0], [1], [0, 0, 1, 1], [], []>} : vector<16x8xf32>, vector<8x32xf32>, vector<16x32xf32> -> vector<16x32xf32>
    %414 = arith.addf %393, %413 : vector<16x32xf32>
    %415 = vector.extract_strided_slice %350 {offsets = [0, 24], sizes = [16, 8], strides = [1, 1]} : vector<16x32xbf16> to vector<16x8xbf16>
    %416 = vector.extract_strided_slice %351 {offsets = [0, 24], sizes = [16, 8], strides = [1, 1]} : vector<16x32xbf16> to vector<16x8xbf16>
    %cst_152 = arith.constant dense<0.000000e+00> : vector<16x16xf32>
    %417 = tpu.matmul %415, %416, %cst_152 {dimension_numbers = #tpu.dot_dimension_numbers<[1], [1], [0], [0], [0, 0, 1, 0], [], []>} : vector<16x8xbf16>, vector<16x8xbf16>, vector<16x16xf32> -> vector<16x16xf32>
    %418 = arith.addf %417, %5 : vector<16x16xf32>
    %cst_153 = arith.constant dense<0xFF800000> : vector<16xf32>
    %419 = vector.multi_reduction <maximumf>, %418, %cst_153 [1] : vector<16x16xf32> to vector<16xf32>
    %420 = vector.shape_cast %419 : vector<16xf32> to vector<16x1xf32>
    %421 = vector.broadcast %420 : vector<16x1xf32> to vector<16x16xf32>
    %422 = arith.subf %418, %421 : vector<16x16xf32>
    %423 = math.exp %422 : vector<16x16xf32>
    %cst_154 = arith.constant dense<0.000000e+00> : vector<16xf32>
    %424 = vector.multi_reduction <add>, %423, %cst_154 [1] : vector<16x16xf32> to vector<16xf32>
    %425 = vector.shape_cast %424 : vector<16xf32> to vector<16x1xf32>
    %426 = tpu.reciprocal %425 {approx = true} : vector<16x1xf32> -> vector<16x1xf32>
    %427 = vector.broadcast %426 : vector<16x1xf32> to vector<16x16xf32>
    %428 = arith.mulf %423, %427 : vector<16x16xf32>
    %429 = arith.truncf %428 : vector<16x16xf32> to vector<16x16xbf16>
    %430 = vector.extract_strided_slice %352 {offsets = [0, 24], sizes = [16, 8], strides = [1, 1]} : vector<16x32xbf16> to vector<16x8xbf16>
    %cst_155 = arith.constant dense<0.000000e+00> : vector<16x8xf32>
    %431 = tpu.matmul %429, %430, %cst_155 {dimension_numbers = #tpu.dot_dimension_numbers<[1], [0], [0], [1], [0, 0, 1, 1], [], []>} : vector<16x16xbf16>, vector<16x8xbf16>, vector<16x8xf32> -> vector<16x8xf32>
    %c2_156 = arith.constant 2 : index
    %c3_157 = arith.constant 3 : index
    %c0_158 = arith.constant 0 : index
    %c0_159 = arith.constant 0 : index
    %432 = vector.load %arg4[%c2_156, %c3_157, %c0_158, %c0_159] : memref<4x4x8x32xf32, #tpu.memory_space<vmem>>, vector<1x1x8x32xf32>
    %433 = vector.shape_cast %432 : vector<1x1x8x32xf32> to vector<8x32xf32>
    %cst_160 = arith.constant dense<0.000000e+00> : vector<16x32xf32>
    %434 = tpu.matmul %431, %433, %cst_160 {dimension_numbers = #tpu.dot_dimension_numbers<[1], [0], [0], [1], [0, 0, 1, 1], [], []>} : vector<16x8xf32>, vector<8x32xf32>, vector<16x32xf32> -> vector<16x32xf32>
    %435 = arith.addf %414, %434 : vector<16x32xf32>
    %436 = vector.broadcast %325 : vector<1x32xf32> to vector<16x32xf32>
    %437 = arith.addf %435, %436 : vector<16x32xf32>
    %438 = arith.addf %318, %437 : vector<16x32xf32>
    %cst_161 = arith.constant dense<0.000000e+00> : vector<16xf32>
    %439 = vector.multi_reduction <add>, %438, %cst_161 [1] : vector<16x32xf32> to vector<16xf32>
    %440 = vector.shape_cast %439 : vector<16xf32> to vector<16x1xf32>
    %cst_162 = arith.constant 3.200000e+01 : f32
    %441 = vector.broadcast %cst_162 : f32 to vector<16x1xf32>
    %442 = arith.divf %440, %441 : vector<16x1xf32>
    %443 = arith.mulf %438, %438 : vector<16x32xf32>
    %cst_163 = arith.constant dense<0.000000e+00> : vector<16xf32>
    %444 = vector.multi_reduction <add>, %443, %cst_163 [1] : vector<16x32xf32> to vector<16xf32>
    %445 = vector.shape_cast %444 : vector<16xf32> to vector<16x1xf32>
    %cst_164 = arith.constant 3.200000e+01 : f32
    %446 = vector.broadcast %cst_164 : f32 to vector<16x1xf32>
    %447 = arith.divf %445, %446 : vector<16x1xf32>
    %448 = arith.mulf %442, %442 : vector<16x1xf32>
    %449 = arith.subf %447, %448 : vector<16x1xf32>
    %cst_165 = arith.constant 0.000000e+00 : f32
    %450 = vector.broadcast %cst_165 : f32 to vector<16x1xf32>
    %451 = arith.maximumf %449, %450 : vector<16x1xf32>
    %452 = vector.broadcast %442 : vector<16x1xf32> to vector<16x32xf32>
    %453 = arith.subf %438, %452 : vector<16x32xf32>
    %cst_166 = arith.constant 9.99999974E-6 : f32
    %454 = vector.broadcast %cst_166 : f32 to vector<16x1xf32>
    %455 = arith.addf %451, %454 : vector<16x1xf32>
    %456 = math.rsqrt %455 : vector<16x1xf32>
    %457 = vector.broadcast %456 : vector<16x1xf32> to vector<16x32xf32>
    %458 = arith.mulf %453, %457 : vector<16x32xf32>
    %459 = vector.broadcast %329 : vector<1x32xf32> to vector<16x32xf32>
    %460 = arith.mulf %458, %459 : vector<16x32xf32>
    %461 = vector.broadcast %330 : vector<1x32xf32> to vector<16x32xf32>
    %462 = arith.addf %460, %461 : vector<16x32xf32>
    %463 = arith.addf %462, %2 : vector<16x32xf32>
    %464 = arith.truncf %463 : vector<16x32xf32> to vector<16x32xbf16>
    %c1_167 = arith.constant 1 : index
    %c1_168 = arith.constant 1 : index
    %c0_169 = arith.constant 0 : index
    %c0_170 = arith.constant 0 : index
    %465 = vector.load %arg3[%c1_167, %c1_168, %c0_169, %c0_170] : memref<2x2x32x96xbf16, #tpu.memory_space<vmem>>, vector<1x1x32x96xbf16>
    %466 = vector.shape_cast %465 : vector<1x1x32x96xbf16> to vector<32x96xbf16>
    %467 = vector.extract_strided_slice %466 {offsets = [0, 0], sizes = [32, 32], strides = [1, 1]} : vector<32x96xbf16> to vector<32x32xbf16>
    %cst_171 = arith.constant dense<0.000000e+00> : vector<16x32xf32>
    %468 = tpu.matmul %464, %467, %cst_171 {dimension_numbers = #tpu.dot_dimension_numbers<[1], [0], [0], [1], [0, 0, 1, 1], [], []>} : vector<16x32xbf16>, vector<32x32xbf16>, vector<16x32xf32> -> vector<16x32xf32>
    %469 = vector.broadcast %323 : vector<1x32xf32> to vector<16x32xf32>
    %470 = arith.addf %468, %469 : vector<16x32xf32>
    %471 = vector.extract_strided_slice %466 {offsets = [0, 32], sizes = [32, 32], strides = [1, 1]} : vector<32x96xbf16> to vector<32x32xbf16>
    %cst_172 = arith.constant dense<0.000000e+00> : vector<32x32xf32>
    %472 = tpu.matmul %8, %471, %cst_172 {dimension_numbers = #tpu.dot_dimension_numbers<[1], [0], [0], [1], [0, 0, 1, 1], [], []>} : vector<32x32xbf16>, vector<32x32xbf16>, vector<32x32xf32> -> vector<32x32xf32>
    %473 = vector.extract_strided_slice %466 {offsets = [0, 64], sizes = [32, 32], strides = [1, 1]} : vector<32x96xbf16> to vector<32x32xbf16>
    %cst_173 = arith.constant dense<0.000000e+00> : vector<32x32xf32>
    %474 = tpu.matmul %7, %473, %cst_173 {dimension_numbers = #tpu.dot_dimension_numbers<[1], [0], [0], [1], [0, 0, 1, 1], [], []>} : vector<32x32xbf16>, vector<32x32xbf16>, vector<32x32xf32> -> vector<32x32xf32>
    %475 = vector.broadcast %324 : vector<1x32xf32> to vector<32x32xf32>
    %476 = arith.addf %474, %475 : vector<32x32xf32>
    %477 = arith.truncf %470 : vector<16x32xf32> to vector<16x32xbf16>
    %478 = arith.truncf %472 : vector<32x32xf32> to vector<32x32xbf16>
    %479 = arith.truncf %476 : vector<32x32xf32> to vector<32x32xbf16>
    %480 = vector.extract_strided_slice %477 {offsets = [0, 0], sizes = [16, 8], strides = [1, 1]} : vector<16x32xbf16> to vector<16x8xbf16>
    %481 = vector.extract_strided_slice %478 {offsets = [0, 0], sizes = [32, 8], strides = [1, 1]} : vector<32x32xbf16> to vector<32x8xbf16>
    %cst_174 = arith.constant dense<0.000000e+00> : vector<16x32xf32>
    %482 = tpu.matmul %480, %481, %cst_174 {dimension_numbers = #tpu.dot_dimension_numbers<[1], [1], [0], [0], [0, 0, 1, 0], [], []>} : vector<16x8xbf16>, vector<32x8xbf16>, vector<16x32xf32> -> vector<16x32xf32>
    %483 = arith.addf %482, %6 : vector<16x32xf32>
    %cst_175 = arith.constant dense<0xFF800000> : vector<16xf32>
    %484 = vector.multi_reduction <maximumf>, %483, %cst_175 [1] : vector<16x32xf32> to vector<16xf32>
    %485 = vector.shape_cast %484 : vector<16xf32> to vector<16x1xf32>
    %486 = vector.broadcast %485 : vector<16x1xf32> to vector<16x32xf32>
    %487 = arith.subf %483, %486 : vector<16x32xf32>
    %488 = math.exp %487 : vector<16x32xf32>
    %cst_176 = arith.constant dense<0.000000e+00> : vector<16xf32>
    %489 = vector.multi_reduction <add>, %488, %cst_176 [1] : vector<16x32xf32> to vector<16xf32>
    %490 = vector.shape_cast %489 : vector<16xf32> to vector<16x1xf32>
    %491 = tpu.reciprocal %490 {approx = true} : vector<16x1xf32> -> vector<16x1xf32>
    %492 = vector.broadcast %491 : vector<16x1xf32> to vector<16x32xf32>
    %493 = arith.mulf %488, %492 : vector<16x32xf32>
    %494 = arith.truncf %493 : vector<16x32xf32> to vector<16x32xbf16>
    %495 = vector.extract_strided_slice %479 {offsets = [0, 0], sizes = [32, 8], strides = [1, 1]} : vector<32x32xbf16> to vector<32x8xbf16>
    %cst_177 = arith.constant dense<0.000000e+00> : vector<16x8xf32>
    %496 = tpu.matmul %494, %495, %cst_177 {dimension_numbers = #tpu.dot_dimension_numbers<[1], [0], [0], [1], [0, 0, 1, 1], [], []>} : vector<16x32xbf16>, vector<32x8xbf16>, vector<16x8xf32> -> vector<16x8xf32>
    %c3_178 = arith.constant 3 : index
    %c0_179 = arith.constant 0 : index
    %c0_180 = arith.constant 0 : index
    %c0_181 = arith.constant 0 : index
    %497 = vector.load %arg4[%c3_178, %c0_179, %c0_180, %c0_181] : memref<4x4x8x32xf32, #tpu.memory_space<vmem>>, vector<1x1x8x32xf32>
    %498 = vector.shape_cast %497 : vector<1x1x8x32xf32> to vector<8x32xf32>
    %cst_182 = arith.constant dense<0.000000e+00> : vector<16x32xf32>
    %499 = tpu.matmul %496, %498, %cst_182 {dimension_numbers = #tpu.dot_dimension_numbers<[1], [0], [0], [1], [0, 0, 1, 1], [], []>} : vector<16x8xf32>, vector<8x32xf32>, vector<16x32xf32> -> vector<16x32xf32>
    %500 = vector.extract_strided_slice %477 {offsets = [0, 8], sizes = [16, 8], strides = [1, 1]} : vector<16x32xbf16> to vector<16x8xbf16>
    %501 = vector.extract_strided_slice %478 {offsets = [0, 8], sizes = [32, 8], strides = [1, 1]} : vector<32x32xbf16> to vector<32x8xbf16>
    %cst_183 = arith.constant dense<0.000000e+00> : vector<16x32xf32>
    %502 = tpu.matmul %500, %501, %cst_183 {dimension_numbers = #tpu.dot_dimension_numbers<[1], [1], [0], [0], [0, 0, 1, 0], [], []>} : vector<16x8xbf16>, vector<32x8xbf16>, vector<16x32xf32> -> vector<16x32xf32>
    %503 = arith.addf %502, %6 : vector<16x32xf32>
    %cst_184 = arith.constant dense<0xFF800000> : vector<16xf32>
    %504 = vector.multi_reduction <maximumf>, %503, %cst_184 [1] : vector<16x32xf32> to vector<16xf32>
    %505 = vector.shape_cast %504 : vector<16xf32> to vector<16x1xf32>
    %506 = vector.broadcast %505 : vector<16x1xf32> to vector<16x32xf32>
    %507 = arith.subf %503, %506 : vector<16x32xf32>
    %508 = math.exp %507 : vector<16x32xf32>
    %cst_185 = arith.constant dense<0.000000e+00> : vector<16xf32>
    %509 = vector.multi_reduction <add>, %508, %cst_185 [1] : vector<16x32xf32> to vector<16xf32>
    %510 = vector.shape_cast %509 : vector<16xf32> to vector<16x1xf32>
    %511 = tpu.reciprocal %510 {approx = true} : vector<16x1xf32> -> vector<16x1xf32>
    %512 = vector.broadcast %511 : vector<16x1xf32> to vector<16x32xf32>
    %513 = arith.mulf %508, %512 : vector<16x32xf32>
    %514 = arith.truncf %513 : vector<16x32xf32> to vector<16x32xbf16>
    %515 = vector.extract_strided_slice %479 {offsets = [0, 8], sizes = [32, 8], strides = [1, 1]} : vector<32x32xbf16> to vector<32x8xbf16>
    %cst_186 = arith.constant dense<0.000000e+00> : vector<16x8xf32>
    %516 = tpu.matmul %514, %515, %cst_186 {dimension_numbers = #tpu.dot_dimension_numbers<[1], [0], [0], [1], [0, 0, 1, 1], [], []>} : vector<16x32xbf16>, vector<32x8xbf16>, vector<16x8xf32> -> vector<16x8xf32>
    %c3_187 = arith.constant 3 : index
    %c1_188 = arith.constant 1 : index
    %c0_189 = arith.constant 0 : index
    %c0_190 = arith.constant 0 : index
    %517 = vector.load %arg4[%c3_187, %c1_188, %c0_189, %c0_190] : memref<4x4x8x32xf32, #tpu.memory_space<vmem>>, vector<1x1x8x32xf32>
    %518 = vector.shape_cast %517 : vector<1x1x8x32xf32> to vector<8x32xf32>
    %cst_191 = arith.constant dense<0.000000e+00> : vector<16x32xf32>
    %519 = tpu.matmul %516, %518, %cst_191 {dimension_numbers = #tpu.dot_dimension_numbers<[1], [0], [0], [1], [0, 0, 1, 1], [], []>} : vector<16x8xf32>, vector<8x32xf32>, vector<16x32xf32> -> vector<16x32xf32>
    %520 = arith.addf %499, %519 : vector<16x32xf32>
    %521 = vector.extract_strided_slice %477 {offsets = [0, 16], sizes = [16, 8], strides = [1, 1]} : vector<16x32xbf16> to vector<16x8xbf16>
    %522 = vector.extract_strided_slice %478 {offsets = [0, 16], sizes = [32, 8], strides = [1, 1]} : vector<32x32xbf16> to vector<32x8xbf16>
    %cst_192 = arith.constant dense<0.000000e+00> : vector<16x32xf32>
    %523 = tpu.matmul %521, %522, %cst_192 {dimension_numbers = #tpu.dot_dimension_numbers<[1], [1], [0], [0], [0, 0, 1, 0], [], []>} : vector<16x8xbf16>, vector<32x8xbf16>, vector<16x32xf32> -> vector<16x32xf32>
    %524 = arith.addf %523, %6 : vector<16x32xf32>
    %cst_193 = arith.constant dense<0xFF800000> : vector<16xf32>
    %525 = vector.multi_reduction <maximumf>, %524, %cst_193 [1] : vector<16x32xf32> to vector<16xf32>
    %526 = vector.shape_cast %525 : vector<16xf32> to vector<16x1xf32>
    %527 = vector.broadcast %526 : vector<16x1xf32> to vector<16x32xf32>
    %528 = arith.subf %524, %527 : vector<16x32xf32>
    %529 = math.exp %528 : vector<16x32xf32>
    %cst_194 = arith.constant dense<0.000000e+00> : vector<16xf32>
    %530 = vector.multi_reduction <add>, %529, %cst_194 [1] : vector<16x32xf32> to vector<16xf32>
    %531 = vector.shape_cast %530 : vector<16xf32> to vector<16x1xf32>
    %532 = tpu.reciprocal %531 {approx = true} : vector<16x1xf32> -> vector<16x1xf32>
    %533 = vector.broadcast %532 : vector<16x1xf32> to vector<16x32xf32>
    %534 = arith.mulf %529, %533 : vector<16x32xf32>
    %535 = arith.truncf %534 : vector<16x32xf32> to vector<16x32xbf16>
    %536 = vector.extract_strided_slice %479 {offsets = [0, 16], sizes = [32, 8], strides = [1, 1]} : vector<32x32xbf16> to vector<32x8xbf16>
    %cst_195 = arith.constant dense<0.000000e+00> : vector<16x8xf32>
    %537 = tpu.matmul %535, %536, %cst_195 {dimension_numbers = #tpu.dot_dimension_numbers<[1], [0], [0], [1], [0, 0, 1, 1], [], []>} : vector<16x32xbf16>, vector<32x8xbf16>, vector<16x8xf32> -> vector<16x8xf32>
    %c3_196 = arith.constant 3 : index
    %c2_197 = arith.constant 2 : index
    %c0_198 = arith.constant 0 : index
    %c0_199 = arith.constant 0 : index
    %538 = vector.load %arg4[%c3_196, %c2_197, %c0_198, %c0_199] : memref<4x4x8x32xf32, #tpu.memory_space<vmem>>, vector<1x1x8x32xf32>
    %539 = vector.shape_cast %538 : vector<1x1x8x32xf32> to vector<8x32xf32>
    %cst_200 = arith.constant dense<0.000000e+00> : vector<16x32xf32>
    %540 = tpu.matmul %537, %539, %cst_200 {dimension_numbers = #tpu.dot_dimension_numbers<[1], [0], [0], [1], [0, 0, 1, 1], [], []>} : vector<16x8xf32>, vector<8x32xf32>, vector<16x32xf32> -> vector<16x32xf32>
    %541 = arith.addf %520, %540 : vector<16x32xf32>
    %542 = vector.extract_strided_slice %477 {offsets = [0, 24], sizes = [16, 8], strides = [1, 1]} : vector<16x32xbf16> to vector<16x8xbf16>
    %543 = vector.extract_strided_slice %478 {offsets = [0, 24], sizes = [32, 8], strides = [1, 1]} : vector<32x32xbf16> to vector<32x8xbf16>
    %cst_201 = arith.constant dense<0.000000e+00> : vector<16x32xf32>
    %544 = tpu.matmul %542, %543, %cst_201 {dimension_numbers = #tpu.dot_dimension_numbers<[1], [1], [0], [0], [0, 0, 1, 0], [], []>} : vector<16x8xbf16>, vector<32x8xbf16>, vector<16x32xf32> -> vector<16x32xf32>
    %545 = arith.addf %544, %6 : vector<16x32xf32>
    %cst_202 = arith.constant dense<0xFF800000> : vector<16xf32>
    %546 = vector.multi_reduction <maximumf>, %545, %cst_202 [1] : vector<16x32xf32> to vector<16xf32>
    %547 = vector.shape_cast %546 : vector<16xf32> to vector<16x1xf32>
    %548 = vector.broadcast %547 : vector<16x1xf32> to vector<16x32xf32>
    %549 = arith.subf %545, %548 : vector<16x32xf32>
    %550 = math.exp %549 : vector<16x32xf32>
    %cst_203 = arith.constant dense<0.000000e+00> : vector<16xf32>
    %551 = vector.multi_reduction <add>, %550, %cst_203 [1] : vector<16x32xf32> to vector<16xf32>
    %552 = vector.shape_cast %551 : vector<16xf32> to vector<16x1xf32>
    %553 = tpu.reciprocal %552 {approx = true} : vector<16x1xf32> -> vector<16x1xf32>
    %554 = vector.broadcast %553 : vector<16x1xf32> to vector<16x32xf32>
    %555 = arith.mulf %550, %554 : vector<16x32xf32>
    %556 = arith.truncf %555 : vector<16x32xf32> to vector<16x32xbf16>
    %557 = vector.extract_strided_slice %479 {offsets = [0, 24], sizes = [32, 8], strides = [1, 1]} : vector<32x32xbf16> to vector<32x8xbf16>
    %cst_204 = arith.constant dense<0.000000e+00> : vector<16x8xf32>
    %558 = tpu.matmul %556, %557, %cst_204 {dimension_numbers = #tpu.dot_dimension_numbers<[1], [0], [0], [1], [0, 0, 1, 1], [], []>} : vector<16x32xbf16>, vector<32x8xbf16>, vector<16x8xf32> -> vector<16x8xf32>
    %c3_205 = arith.constant 3 : index
    %c3_206 = arith.constant 3 : index
    %c0_207 = arith.constant 0 : index
    %c0_208 = arith.constant 0 : index
    %559 = vector.load %arg4[%c3_205, %c3_206, %c0_207, %c0_208] : memref<4x4x8x32xf32, #tpu.memory_space<vmem>>, vector<1x1x8x32xf32>
    %560 = vector.shape_cast %559 : vector<1x1x8x32xf32> to vector<8x32xf32>
    %cst_209 = arith.constant dense<0.000000e+00> : vector<16x32xf32>
    %561 = tpu.matmul %558, %560, %cst_209 {dimension_numbers = #tpu.dot_dimension_numbers<[1], [0], [0], [1], [0, 0, 1, 1], [], []>} : vector<16x8xf32>, vector<8x32xf32>, vector<16x32xf32> -> vector<16x32xf32>
    %562 = arith.addf %541, %561 : vector<16x32xf32>
    %563 = vector.broadcast %326 : vector<1x32xf32> to vector<16x32xf32>
    %564 = arith.addf %562, %563 : vector<16x32xf32>
    %565 = arith.addf %462, %564 : vector<16x32xf32>
    %cst_210 = arith.constant dense<0.000000e+00> : vector<16xf32>
    %566 = vector.multi_reduction <add>, %565, %cst_210 [1] : vector<16x32xf32> to vector<16xf32>
    %567 = vector.shape_cast %566 : vector<16xf32> to vector<16x1xf32>
    %cst_211 = arith.constant 3.200000e+01 : f32
    %568 = vector.broadcast %cst_211 : f32 to vector<16x1xf32>
    %569 = arith.divf %567, %568 : vector<16x1xf32>
    %570 = arith.mulf %565, %565 : vector<16x32xf32>
    %cst_212 = arith.constant dense<0.000000e+00> : vector<16xf32>
    %571 = vector.multi_reduction <add>, %570, %cst_212 [1] : vector<16x32xf32> to vector<16xf32>
    %572 = vector.shape_cast %571 : vector<16xf32> to vector<16x1xf32>
    %cst_213 = arith.constant 3.200000e+01 : f32
    %573 = vector.broadcast %cst_213 : f32 to vector<16x1xf32>
    %574 = arith.divf %572, %573 : vector<16x1xf32>
    %575 = arith.mulf %569, %569 : vector<16x1xf32>
    %576 = arith.subf %574, %575 : vector<16x1xf32>
    %cst_214 = arith.constant 0.000000e+00 : f32
    %577 = vector.broadcast %cst_214 : f32 to vector<16x1xf32>
    %578 = arith.maximumf %576, %577 : vector<16x1xf32>
    %579 = vector.broadcast %569 : vector<16x1xf32> to vector<16x32xf32>
    %580 = arith.subf %565, %579 : vector<16x32xf32>
    %cst_215 = arith.constant 9.99999974E-6 : f32
    %581 = vector.broadcast %cst_215 : f32 to vector<16x1xf32>
    %582 = arith.addf %578, %581 : vector<16x1xf32>
    %583 = math.rsqrt %582 : vector<16x1xf32>
    %584 = vector.broadcast %583 : vector<16x1xf32> to vector<16x32xf32>
    %585 = arith.mulf %580, %584 : vector<16x32xf32>
    %586 = vector.broadcast %331 : vector<1x32xf32> to vector<16x32xf32>
    %587 = arith.mulf %585, %586 : vector<16x32xf32>
    %588 = vector.broadcast %332 : vector<1x32xf32> to vector<16x32xf32>
    %589 = arith.addf %587, %588 : vector<16x32xf32>
    %590 = arith.truncf %589 : vector<16x32xf32> to vector<16x32xbf16>
    %c1_216 = arith.constant 1 : index
    %c0_217 = arith.constant 0 : index
    %c0_218 = arith.constant 0 : index
    %591 = vector.load %arg5[%c1_216, %c0_217, %c0_218] : memref<2x32x64xbf16, #tpu.memory_space<vmem>>, vector<1x32x64xbf16>
    %592 = vector.shape_cast %591 : vector<1x32x64xbf16> to vector<32x64xbf16>
    %cst_219 = arith.constant dense<0.000000e+00> : vector<16x64xf32>
    %593 = tpu.matmul %590, %592, %cst_219 {dimension_numbers = #tpu.dot_dimension_numbers<[1], [0], [0], [1], [0, 0, 1, 1], [], []>} : vector<16x32xbf16>, vector<32x64xbf16>, vector<16x64xf32> -> vector<16x64xf32>
    %594 = vector.broadcast %327 : vector<1x64xf32> to vector<16x64xf32>
    %595 = arith.addf %593, %594 : vector<16x64xf32>
    %cst_220 = arith.constant 0.000000e+00 : f32
    %596 = vector.broadcast %cst_220 : f32 to vector<16x64xf32>
    %597 = arith.maximumf %595, %596 : vector<16x64xf32>
    %598 = arith.truncf %597 : vector<16x64xf32> to vector<16x64xbf16>
    %c1_221 = arith.constant 1 : index
    %c0_222 = arith.constant 0 : index
    %c0_223 = arith.constant 0 : index
    %599 = vector.load %arg6[%c1_221, %c0_222, %c0_223] : memref<2x64x32xbf16, #tpu.memory_space<vmem>>, vector<1x64x32xbf16>
    %600 = vector.shape_cast %599 : vector<1x64x32xbf16> to vector<64x32xbf16>
    %cst_224 = arith.constant dense<0.000000e+00> : vector<16x32xf32>
    %601 = tpu.matmul %598, %600, %cst_224 {dimension_numbers = #tpu.dot_dimension_numbers<[1], [0], [0], [1], [0, 0, 1, 1], [], []>} : vector<16x64xbf16>, vector<64x32xbf16>, vector<16x32xf32> -> vector<16x32xf32>
    %602 = vector.broadcast %328 : vector<1x32xf32> to vector<16x32xf32>
    %603 = arith.addf %601, %602 : vector<16x32xf32>
    %604 = arith.addf %589, %603 : vector<16x32xf32>
    %cst_225 = arith.constant dense<0.000000e+00> : vector<16xf32>
    %605 = vector.multi_reduction <add>, %604, %cst_225 [1] : vector<16x32xf32> to vector<16xf32>
    %606 = vector.shape_cast %605 : vector<16xf32> to vector<16x1xf32>
    %cst_226 = arith.constant 3.200000e+01 : f32
    %607 = vector.broadcast %cst_226 : f32 to vector<16x1xf32>
    %608 = arith.divf %606, %607 : vector<16x1xf32>
    %609 = arith.mulf %604, %604 : vector<16x32xf32>
    %cst_227 = arith.constant dense<0.000000e+00> : vector<16xf32>
    %610 = vector.multi_reduction <add>, %609, %cst_227 [1] : vector<16x32xf32> to vector<16xf32>
    %611 = vector.shape_cast %610 : vector<16xf32> to vector<16x1xf32>
    %cst_228 = arith.constant 3.200000e+01 : f32
    %612 = vector.broadcast %cst_228 : f32 to vector<16x1xf32>
    %613 = arith.divf %611, %612 : vector<16x1xf32>
    %614 = arith.mulf %608, %608 : vector<16x1xf32>
    %615 = arith.subf %613, %614 : vector<16x1xf32>
    %cst_229 = arith.constant 0.000000e+00 : f32
    %616 = vector.broadcast %cst_229 : f32 to vector<16x1xf32>
    %617 = arith.maximumf %615, %616 : vector<16x1xf32>
    %618 = vector.broadcast %608 : vector<16x1xf32> to vector<16x32xf32>
    %619 = arith.subf %604, %618 : vector<16x32xf32>
    %cst_230 = arith.constant 9.99999974E-6 : f32
    %620 = vector.broadcast %cst_230 : f32 to vector<16x1xf32>
    %621 = arith.addf %617, %620 : vector<16x1xf32>
    %622 = math.rsqrt %621 : vector<16x1xf32>
    %623 = vector.broadcast %622 : vector<16x1xf32> to vector<16x32xf32>
    %624 = arith.mulf %619, %623 : vector<16x32xf32>
    %625 = vector.broadcast %333 : vector<1x32xf32> to vector<16x32xf32>
    %626 = arith.mulf %624, %625 : vector<16x32xf32>
    %627 = vector.broadcast %334 : vector<1x32xf32> to vector<16x32xf32>
    %628 = arith.addf %626, %627 : vector<16x32xf32>
    %c2_231 = arith.constant 2 : index
    %c0_232 = arith.constant 0 : index
    %c0_233 = arith.constant 0 : index
    %629 = vector.load %arg7[%c2_231, %c0_232, %c0_233] : memref<3x12x128xf32, #tpu.memory_space<vmem>>, vector<1x1x32xf32>
    %630 = vector.shape_cast %629 : vector<1x1x32xf32> to vector<1x32xf32>
    %c2_234 = arith.constant 2 : index
    %c1_235 = arith.constant 1 : index
    %c0_236 = arith.constant 0 : index
    %631 = vector.load %arg7[%c2_234, %c1_235, %c0_236] : memref<3x12x128xf32, #tpu.memory_space<vmem>>, vector<1x1x32xf32>
    %632 = vector.shape_cast %631 : vector<1x1x32xf32> to vector<1x32xf32>
    %cst_237 = arith.constant dense<0.000000e+00> : vector<16xf32>
    %633 = vector.multi_reduction <add>, %628, %cst_237 [1] : vector<16x32xf32> to vector<16xf32>
    %634 = vector.shape_cast %633 : vector<16xf32> to vector<16x1xf32>
    %cst_238 = arith.constant 3.200000e+01 : f32
    %635 = vector.broadcast %cst_238 : f32 to vector<16x1xf32>
    %636 = arith.divf %634, %635 : vector<16x1xf32>
    %637 = arith.mulf %628, %628 : vector<16x32xf32>
    %cst_239 = arith.constant dense<0.000000e+00> : vector<16xf32>
    %638 = vector.multi_reduction <add>, %637, %cst_239 [1] : vector<16x32xf32> to vector<16xf32>
    %639 = vector.shape_cast %638 : vector<16xf32> to vector<16x1xf32>
    %cst_240 = arith.constant 3.200000e+01 : f32
    %640 = vector.broadcast %cst_240 : f32 to vector<16x1xf32>
    %641 = arith.divf %639, %640 : vector<16x1xf32>
    %642 = arith.mulf %636, %636 : vector<16x1xf32>
    %643 = arith.subf %641, %642 : vector<16x1xf32>
    %cst_241 = arith.constant 0.000000e+00 : f32
    %644 = vector.broadcast %cst_241 : f32 to vector<16x1xf32>
    %645 = arith.maximumf %643, %644 : vector<16x1xf32>
    %646 = vector.broadcast %636 : vector<16x1xf32> to vector<16x32xf32>
    %647 = arith.subf %628, %646 : vector<16x32xf32>
    %cst_242 = arith.constant 9.99999974E-6 : f32
    %648 = vector.broadcast %cst_242 : f32 to vector<16x1xf32>
    %649 = arith.addf %645, %648 : vector<16x1xf32>
    %650 = math.rsqrt %649 : vector<16x1xf32>
    %651 = vector.broadcast %650 : vector<16x1xf32> to vector<16x32xf32>
    %652 = arith.mulf %647, %651 : vector<16x32xf32>
    %653 = vector.broadcast %630 : vector<1x32xf32> to vector<16x32xf32>
    %654 = arith.mulf %652, %653 : vector<16x32xf32>
    %655 = vector.broadcast %632 : vector<1x32xf32> to vector<16x32xf32>
    %656 = arith.addf %654, %655 : vector<16x32xf32>
    %c0_243 = arith.constant 0 : index
    %c0_244 = arith.constant 0 : index
    %657 = vector.load %arg8[%c0_243, %c0_244] : memref<16x32xf32, #tpu.memory_space<vmem>>, vector<16x32xf32>
    tpu.vector_store %arg8[%c0_243, %c0_244], %656 {strides = array<i32>} : memref<16x32xf32, #tpu.memory_space<vmem>>, vector<16x32xf32>,
    return
  }
}

</mosaic_0001>

<llo_original>
// kernel: tpu_custom_call.1
$region0: #{tpu_custom_call.1}
  #allocation0 [shape = 'u32[]', space=smem, size = 0x4, offset = 0x4, fixed_abs, tag = 'smem constant byte address 0x4 - core index']
  #allocation1 [shape = 'u32[144,128]{1,0:T(1,128)}', space=vmem, size = 0x12000, scoped, tag = 'internal scratch']
  %s0 = inlined_call_operand.vmem [shape: f32[96,32], index: 0, kind: input, shape index: {}]
  %s1 = inlined_call_operand.hbm [shape: f32[16,16], index: 1, kind: input, shape index: {}]
  %s2 = inlined_call_operand.hbm [shape: f32[16,32], index: 2, kind: input, shape index: {}]
  %s3 = inlined_call_operand.vmem [shape: bf16[2,2,32,96], index: 3, kind: input, shape index: {}]
  %s4 = inlined_call_operand.vmem [shape: f32[4,4,8,32], index: 4, kind: input, shape index: {}]
  %s5 = inlined_call_operand.vmem [shape: bf16[2,32,64], index: 5, kind: input, shape index: {}]
  %s6 = inlined_call_operand.vmem [shape: bf16[2,64,32], index: 6, kind: input, shape index: {}]
  %s7 = inlined_call_operand.hbm [shape: f32[3,12,128], index: 7, kind: input, shape index: {}]
  %s8 = inlined_call_operand.hbm [shape: f32[16,32], index: 8, kind: output, shape index: {}]
  %s9 = sld [smem:[#allocation0]]
  $region54: #{tpu_custom_call.1} parent=0
    _
  %s11 = ssub.s32 1, %s9
  %s12 = scalar_select 0, %s11, %s9
  $region1: #{tpu_custom_call.1} parent=0
    #allocation2 [shape = 'u8[8192]{0}', space=vmem, size = 0x2000, scoped, tag = 'input window, operand 1, single buffered']
    #allocation3 [shape = 's32[1]{0}', space=sflag, size = 0x4, scoped, tag = 'scoped memory for tpu_custom_call.1']
    #allocation4 [shape = 's32[1]{0}', space=sflag, size = 0x4, scoped, tag = 'scoped memory for tpu_custom_call.1']
    #allocation5 [shape = 'u8[8192]{0}', space=vmem, size = 0x2000, scoped, tag = 'input window, operand 2, single buffered']
    #allocation6 [shape = 's32[1]{0}', space=sflag, size = 0x4, scoped, tag = 'scoped memory for tpu_custom_call.1']
    #allocation7 [shape = 'u8[24576]{0}', space=vmem, size = 0x6000, scoped, tag = 'input window, operand 7, single buffered']
    #allocation8 [shape = 'u8[8192]{0}', space=vmem, size = 0x2000, scoped, tag = 'output window, operand 0, single buffered']
    %13 = vsyncpa [#allocation3], 0
    %14 = vsyncpa [#allocation6], 0
    %15 = vsyncpa [#allocation4], 0
    // Predicated region
    $region2: #{tpu_custom_call.1} parent=1 // pred_check
      _
    $region3: #{tpu_custom_call.1} parent=1 // pred_check_branch
      %17 = sbr.rel (0) target = $region5
    $region4: #{tpu_custom_call.1} parent=1 // pred_region
      _
    $region5: #{tpu_custom_call.1} parent=1 // pred_fallthru
      _
    // Predicated region
    $region6: #{tpu_custom_call.1} parent=1 // pred_check
      _
    $region7: #{tpu_custom_call.1} parent=1 // pred_check_branch
      %19 = sbr.rel (0) target = $region9
    $region8: #{tpu_custom_call.1} parent=1 // pred_region
      %s21 = ssub.s32 256, 256
      %22 = vsyncadd [#allocation3], %s21
      %s23 = sshll.u32 [#allocation2], 4
      %s24 = int_to_ptr.vmem [resolvable:$true] %s23
      %29 = dma.hbm_to_vmem [thread:$0]  %s1, 256, %s24, [#allocation3], 128, 128, 8
    $region9: #{tpu_custom_call.1} parent=1 // pred_fallthru
      _
    // Predicated region
    $region10: #{tpu_custom_call.1} parent=1 // pred_check
      _
    $region11: #{tpu_custom_call.1} parent=1 // pred_check_branch
      %31 = sbr.rel (0) target = $region13
    $region12: #{tpu_custom_call.1} parent=1 // pred_region
      %s33 = ssub.s32 256, 256
      %34 = vsyncadd [#allocation6], %s33
      %s35 = sshll.u32 [#allocation5], 4
      %s36 = int_to_ptr.vmem [resolvable:$true] %s35
      %41 = dma.hbm_to_vmem [thread:$0]  %s2, 256, %s36, [#allocation6], 128, 128, 8
    $region13: #{tpu_custom_call.1} parent=1 // pred_fallthru
      _
    // Predicated region
    $region14: #{tpu_custom_call.1} parent=1 // pred_check
      _
    $region15: #{tpu_custom_call.1} parent=1 // pred_check_branch
      %43 = sbr.rel (0) target = $region17
    $region16: #{tpu_custom_call.1} parent=1 // pred_region
      _
    $region17: #{tpu_custom_call.1} parent=1 // pred_fallthru
      _
    // Predicated region
    $region18: #{tpu_custom_call.1} parent=1 // pred_check
      _
    $region19: #{tpu_custom_call.1} parent=1 // pred_check_branch
      %45 = sbr.rel (0) target = $region21
    $region20: #{tpu_custom_call.1} parent=1 // pred_region
      _
    $region21: #{tpu_custom_call.1} parent=1 // pred_fallthru
      _
    // Predicated region
    $region22: #{tpu_custom_call.1} parent=1 // pred_check
      _
    $region23: #{tpu_custom_call.1} parent=1 // pred_check_branch
      %47 = sbr.rel (0) target = $region25
    $region24: #{tpu_custom_call.1} parent=1 // pred_region
      _
    $region25: #{tpu_custom_call.1} parent=1 // pred_fallthru
      _
    // Predicated region
    $region26: #{tpu_custom_call.1} parent=1 // pred_check
      _
    $region27: #{tpu_custom_call.1} parent=1 // pred_check_branch
      %49 = sbr.rel (0) target = $region29
    $region28: #{tpu_custom_call.1} parent=1 // pred_region
      _
    $region29: #{tpu_custom_call.1} parent=1 // pred_fallthru
      _
    // Predicated region
    $region30: #{tpu_custom_call.1} parent=1 // pred_check
      _
    $region31: #{tpu_custom_call.1} parent=1 // pred_check_branch
      %51 = sbr.rel (0) target = $region33
    $region32: #{tpu_custom_call.1} parent=1 // pred_region
      %s53 = ssub.s32 768, 768
      %54 = vsyncadd [#allocation6], %s53
      %s55 = sshll.u32 [#allocation7], 4
      %s56 = int_to_ptr.vmem [resolvable:$true] %s55
      %61 = dma.hbm_to_vmem [thread:$0]  %s7, 768, %s56, [#allocation6], 128, 128, 8
    $region33: #{tpu_custom_call.1} parent=1 // pred_fallthru
      _
    // Predicated region
    $region34: #{tpu_custom_call.1} parent=1 // pred_check
      _
    $region35: #{tpu_custom_call.1} parent=1 // pred_check_branch
      %63 = sbr.rel (0) target = $region37
    $region36: #{tpu_custom_call.1} parent=1 // pred_region
      %64 = dma.done [#allocation3], 256
    $region37: #{tpu_custom_call.1} parent=1 // pred_fallthru
      _
    // Predicated region
    $region38: #{tpu_custom_call.1} parent=1 // pred_check
      _
    $region39: #{tpu_custom_call.1} parent=1 // pred_check_branch
      %66 = sbr.rel (0) target = $region41
    $region40: #{tpu_custom_call.1} parent=1 // pred_region
      %67 = dma.done [#allocation6], 256
    $region41: #{tpu_custom_call.1} parent=1 // pred_fallthru
      _
    // Predicated region
    $region42: #{tpu_custom_call.1} parent=1 // pred_check
      _
    $region43: #{tpu_custom_call.1} parent=1 // pred_check_branch
      %69 = sbr.rel (0) target = $region45
    $region44: #{tpu_custom_call.1} parent=1 // pred_region
      %70 = dma.done [#allocation6], 768
    $region45: #{tpu_custom_call.1} parent=1 // pred_fallthru
      _
    %v72 = vld [vmem:[%s0] sm:$0xff]
    %v73 = vld [vmem:[%s0 + $0x8] sm:$0xff]
    %v74 = vld [vmem:[%s0 + $0x10] sm:$0xff]
    %v75 = vld [vmem:[%s0 + $0x18] sm:$0xff]
    %v76 = vld [vmem:[%s0 + $0x20] sm:$0xff]
    %v77 = vld [vmem:[%s0 + $0x28] sm:$0xff]
    %v78 = vld [vmem:[%s0 + $0x30] sm:$0xff]
    %v79 = vld [vmem:[%s0 + $0x38] sm:$0xff]
    %v80 = vld [vmem:[%s0 + $0x40] sm:$0xff]
    %v81 = vld [vmem:[%s0 + $0x48] sm:$0xff]
    %v82 = vld [vmem:[%s0 + $0x50] sm:$0xff]
    %v83 = vld [vmem:[%s0 + $0x58] sm:$0xff]
    %v84 = vld [vmem:[#allocation2] sm:$0xff]
    %v85 = vld [vmem:[#allocation2 + $0x8] sm:$0xff]
    %v86 = vld [vmem:[#allocation5] sm:$0xff]
    %v87 = vld [vmem:[#allocation5 + $0x8] sm:$0xff]
    %v88 = vpack.c.bf16 %v77, %v76
    %v89 = vpack.c.bf16 %v79, %v78
    %v90 = vpack.c.bf16 %v81, %v80
    %v91 = vpack.c.bf16 %v83, %v82
    %v92 = vld [vmem:[#allocation7] sm:$0xff]
    %v93 = vld [vmem:[#allocation7 + $0x8] sm:$0xf]
    %v94 = vadd.f32 %v72, %v74
    %v95 = vadd.f32 %v73, %v75
    %v96 = vpack.c.bf16 %v95, %v94
    %v97 = vpack.c.bf16 %v73, %v72
    %v98 = vld [vmem:[%s3] sm:$0xf]
    %v99 = vld [vmem:[%s3 + $0x4] sm:$0xf]
    %v100 = vld [vmem:[%s3 + $0x8] sm:$0xf]
    %v101 = vld [vmem:[%s3 + $0xc] sm:$0xf]
    %v106 = vunpack.c.l.b16 %v98
    %v107 = vunpack.c.l.b16 %v99
    %v108 = vunpack.c.l.b16 %v100
    %v109 = vunpack.c.l.b16 %v101
    %v110 = vpack.c.b16 %v107, %v106
    %v111 = vpack.c.b16 %v109, %v108
    %vm114 = vcmask 261120
    %v116 = vsel %vm114, %v96, 0
    %118 = vmatprep.subr.bf16.mxu0 0
    %119 = vmatpush1.bf16.msra.mxu0 0
    %120 = vmatprep.subr.bf16.mxu0 0
    %121 = vmatpush1.bf16.msra.mxu0 0
    %122 = vmatprep.subr.bf16.mxu0 0
    %123 = vmatpush1.bf16.msra.mxu0 0
    %124 = vmatprep.subr.bf16.mxu0 0
    %125 = vmatpush1.bf16.msra.mxu0 0
    %126 = vmatprep.subr.bf16.mxu0 0
    %127 = vmatpush1.bf16.msra.mxu0 0
    %128 = vmatprep.subr.bf16.mxu0 0
    %129 = vmatpush1.bf16.msra.mxu0 0
    %130 = vmatprep.subr.bf16.mxu0 0
    %131 = vmatpush1.bf16.msra.mxu0 %v111
    %132 = vmatprep.subr.bf16.mxu0 0
    %133 = vmatpush1.bf16.msra.mxu0 %v110
    %134 = vmatprep.subr.bf16.mxu0 0
    %135 = vmatpush2.bf16.msra.mxu0 0
    %136 = vmatprep.subr.bf16.mxu0 0
    %137 = vmatpush2.bf16.msra.mxu0 0
    %138 = vmatprep.subr.bf16.mxu0 0
    %139 = vmatpush2.bf16.msra.mxu0 0
    %140 = vmatprep.subr.bf16.mxu0 0
    %141 = vmatpush2.bf16.msra.mxu0 0
    %142 = vmatprep.subr.bf16.mxu0 0
    %143 = vmatpush2.bf16.msra.mxu0 0
    %144 = vmatprep.subr.bf16.mxu0 0
    %145 = vmatpush2.bf16.msra.mxu0 0
    %146 = vmatprep.subr.bf16.mxu0 0
    %147 = vmatpush2.bf16.msra.mxu0 0
    %148 = vmatprep.subr.bf16.mxu0 0
    %149 = vmatpush2.bf16.msra.mxu0 0
    %150 = vmatprep.mubr.bf16.mxu0 0
    %151 = vmatmul.mubr.bf16.gmra.mxu0 %v116
    %v152 = vpop.f32.mrf.mxu0
    %v153 = vadd.f32 0.0, %v152
    %v154 = vpop.f32.mrf.mxu0
    %v155 = vpop.f32.mrf.mxu0
    %v156 = vadd.f32 0.0, %v155
    %v157 = vpop.f32.mrf.mxu0
    %158 = vdwg.mxu0
    %v159 = vlaneseq
    %v160 = vshrl.u32 %v159, 7
    %v161 = vsub.s32 0, %v160
    %v162 = vrot.slane %v92, %v161
    %v163 = vadd.f32 %v153, %v162
    %v164 = vadd.f32 %v156, %v162
    %165 = vrot.lane.b32.xlu0 %v110, 64
    %v166 = vpop.permute.xlu0 %165
    %167 = vrot.lane.b32.xlu0 %v111, 64
    %v168 = vpop.permute.xlu0 %167
    %172 = vrot.lane.b32.xlu0 %v162, 64
    %v173 = vpop.permute.xlu0 %172
    %v176 = vsel %vm114, %v97, 0
    %178 = vmatprep.subr.bf16.mxu0 0
    %179 = vmatpush1.bf16.msra.mxu0 0
    %180 = vmatprep.subr.bf16.mxu0 0
    %181 = vmatpush1.bf16.msra.mxu0 0
    %182 = vmatprep.subr.bf16.mxu0 0
    %183 = vmatpush1.bf16.msra.mxu0 0
    %184 = vmatprep.subr.bf16.mxu0 0
    %185 = vmatpush1.bf16.msra.mxu0 0
    %186 = vmatprep.subr.bf16.mxu0 0
    %187 = vmatpush1.bf16.msra.mxu0 0
    %188 = vmatprep.subr.bf16.mxu0 0
    %189 = vmatpush1.bf16.msra.mxu0 0
    %190 = vmatprep.subr.bf16.mxu0 0
    %191 = vmatpush1.bf16.msra.mxu0 %v168
    %192 = vmatprep.subr.bf16.mxu0 0
    %193 = vmatpush1.bf16.msra.mxu0 %v166
    %194 = vmatprep.subr.bf16.mxu0 0
    %195 = vmatpush2.bf16.msra.mxu0 0
    %196 = vmatprep.subr.bf16.mxu0 0
    %197 = vmatpush2.bf16.msra.mxu0 0
    %198 = vmatprep.subr.bf16.mxu0 0
    %199 = vmatpush2.bf16.msra.mxu0 0
    %200 = vmatprep.subr.bf16.mxu0 0
    %201 = vmatpush2.bf16.msra.mxu0 0
    %202 = vmatprep.subr.bf16.mxu0 0
    %203 = vmatpush2.bf16.msra.mxu0 0
    %204 = vmatprep.subr.bf16.mxu0 0
    %205 = vmatpush2.bf16.msra.mxu0 0
    %206 = vmatprep.subr.bf16.mxu0 0
    %207 = vmatpush2.bf16.msra.mxu0 0
    %208 = vmatprep.subr.bf16.mxu0 0
    %209 = vmatpush2.bf16.msra.mxu0 0
    %210 = vmatprep.mubr.bf16.mxu0 0
    %211 = vmatmul.mubr.bf16.gmra.mxu0 %v176
    %v212 = vpop.f32.mrf.mxu0
    %v213 = vadd.f32 %v173, %v212
    %v214 = vpop.f32.mrf.mxu0
    %v215 = vpop.f32.mrf.mxu0
    %v216 = vadd.f32 %v173, %v215
    %v217 = vpop.f32.mrf.mxu0
    %218 = vdwg.mxu0
    %v219 = vpack.c.bf16 %v164, %v163
    %v220 = vpack.c.bf16 %v156, %v153
    %v221 = vpack.c.bf16 %v216, %v213
    %223 = vrot.lane.b32.xlu0 %v220, 96
    %v224 = vpop.permute.xlu0 %223
    %vm225 = vcmask 64512
    %v227 = vsel %vm225, %v219, 0
    %v230 = vsel %vm225, %v224, 0
    %232 = vmatprep.subr.bf16.mxu0 0
    %233 = vmatpush1.bf16.xpose.msra.mxu0 0
    %234 = vmatprep.subr.bf16.mxu0 0
    %235 = vmatpush1.bf16.xpose.msra.mxu0 0
    %236 = vmatprep.subr.bf16.mxu0 0
    %237 = vmatpush1.bf16.xpose.msra.mxu0 0
    %238 = vmatprep.subr.bf16.mxu0 0
    %239 = vmatpush1.bf16.xpose.msra.mxu0 0
    %240 = vmatprep.subr.bf16.mxu0 0
    %241 = vmatpush1.bf16.xpose.msra.mxu0 0
    %242 = vmatprep.subr.bf16.mxu0 0
    %243 = vmatpush1.bf16.xpose.msra.mxu0 0
    %244 = vmatprep.subr.bf16.mxu0 0
    %245 = vmatpush1.bf16.xpose.msra.mxu0 0
    %246 = vmatprep.subr.bf16.mxu0 0
    %247 = vmatpush1.bf16.xpose.msra.mxu0 %v230
    %248 = vmatprep.subr.bf16.mxu0 0
    %249 = vmatpush2.bf16.xpose.msra.mxu0 0
    %250 = vmatprep.subr.bf16.mxu0 0
    %251 = vmatpush2.bf16.xpose.msra.mxu0 0
    %252 = vmatprep.subr.bf16.mxu0 0
    %253 = vmatpush2.bf16.xpose.msra.mxu0 0
    %254 = vmatprep.subr.bf16.mxu0 0
    %255 = vmatpush2.bf16.xpose.msra.mxu0 0
    %256 = vmatprep.subr.bf16.mxu0 0
    %257 = vmatpush2.bf16.xpose.msra.mxu0 0
    %258 = vmatprep.subr.bf16.mxu0 0
    %259 = vmatpush2.bf16.xpose.msra.mxu0 0
    %260 = vmatprep.subr.bf16.mxu0 0
    %261 = vmatpush2.bf16.xpose.msra.mxu0 0
    %262 = vmatprep.subr.bf16.mxu0 0
    %263 = vmatpush2.bf16.xpose.msra.mxu0 0
    %264 = vmatprep.mubr.bf16.mxu0 0
    %265 = vmatmul.mubr.bf16.gmra.mxu0 %v227
    %v266 = vpop.f32.mrf.mxu0
    %v267 = vadd.f32 %v84, %v266
    %v268 = vpop.f32.mrf.mxu0
    %v269 = vpop.f32.mrf.mxu0
    %v270 = vadd.f32 %v85, %v269
    %v271 = vpop.f32.mrf.mxu0
    %272 = vdwg.mxu0
    %vm273 = vcmask 130048
    %v274 = vsel %vm273, %v267, -inf
    %275 = vmax.xlane.f32.xlu0 %v274
    %v276 = vpop.xlane.xlu0 %275
    %v277 = vsel %vm273, %v270, -inf
    %278 = vmax.xlane.f32.xlu0 %v277
    %v279 = vpop.xlane.xlu0 %278
    %v280 = vsub.f32 %v267, %v276
    %v281 = vsub.f32 %v270, %v279
    %v282 = vmul.f32 %v280, 1.442695
    %v283 = vpow.pop %v282
    %v284 = vmul.f32 %v281, 1.442695
    %v285 = vpow.pop %v284
    %v286 = vsel %vm273, %v283, 0.0
    %287 = vadd.xlane.f32.xlu0 %v286
    %v288 = vpop.xlane.xlu0 %287
    %v289 = vsel %vm273, %v285, 0.0
    %290 = vadd.xlane.f32.xlu0 %v289
    %v291 = vpop.xlane.xlu0 %290
    %v292 = vrcp.pop %v288
    %v293 = vrcp.pop %v291
    %v294 = vmul.f32 %v283, %v292
    %v295 = vmul.f32 %v285, %v293
    %v296 = vpack.c.bf16 %v295, %v294
    %v298 = vsel %vm273, %v296, 0
    %300 = vmatprep.subr.bf16.mxu0 0
    %301 = vmatpush1.bf16.msra.mxu0 0
    %302 = vmatprep.subr.bf16.mxu0 0
    %303 = vmatpush1.bf16.msra.mxu0 0
    %304 = vmatprep.subr.bf16.mxu0 0
    %305 = vmatpush1.bf16.msra.mxu0 0
    %306 = vmatprep.subr.bf16.mxu0 0
    %307 = vmatpush1.bf16.msra.mxu0 0
    %308 = vmatprep.subr.bf16.mxu0 0
    %309 = vmatpush1.bf16.msra.mxu0 0
    %310 = vmatprep.subr.bf16.mxu0 0
    %311 = vmatpush1.bf16.msra.mxu0 0
    %312 = vmatprep.subr.bf16.mxu0 0
    %313 = vmatpush1.bf16.msra.mxu0 0
    %314 = vmatprep.subr.bf16.mxu0 0
    %315 = vmatpush1.bf16.msra.mxu0 %v221
    %316 = vmatprep.subr.bf16.mxu0 0
    %317 = vmatpush2.bf16.msra.mxu0 0
    %318 = vmatprep.subr.bf16.mxu0 0
    %319 = vmatpush2.bf16.msra.mxu0 0
    %320 = vmatprep.subr.bf16.mxu0 0
    %321 = vmatpush2.bf16.msra.mxu0 0
    %322 = vmatprep.subr.bf16.mxu0 0
    %323 = vmatpush2.bf16.msra.mxu0 0
    %324 = vmatprep.subr.bf16.mxu0 0
    %325 = vmatpush2.bf16.msra.mxu0 0
    %326 = vmatprep.subr.bf16.mxu0 0
    %327 = vmatpush2.bf16.msra.mxu0 0
    %328 = vmatprep.subr.bf16.mxu0 0
    %329 = vmatpush2.bf16.msra.mxu0 0
    %330 = vmatprep.subr.bf16.mxu0 0
    %331 = vmatpush2.bf16.msra.mxu0 0
    %332 = vmatprep.mubr.bf16.mxu0 0
    %333 = vmatmul.mubr.bf16.gmra.mxu0 %v298
    %v334 = vpop.f32.mrf.mxu0
    %v335 = vadd.f32 0.0, %v334
    %v336 = vpop.f32.mrf.mxu0
    %v337 = vpop.f32.mrf.mxu0
    %v338 = vadd.f32 0.0, %v337
    %v339 = vpop.f32.mrf.mxu0
    %340 = vdwg.mxu0
    %v341 = vld [vmem:[%s4] sm:$0xff]
    %343 = vrot.lane.b32.xlu0 %v219, 120
    %v344 = vpop.permute.xlu0 %343
    %345 = vrot.lane.b32.xlu0 %v220, 88
    %v346 = vpop.permute.xlu0 %345
    %v348 = vsel %vm225, %v344, 0
    %v351 = vsel %vm225, %v346, 0
    %353 = vmatprep.subr.bf16.mxu0 0
    %354 = vmatpush1.bf16.xpose.msra.mxu0 0
    %355 = vmatprep.subr.bf16.mxu0 0
    %356 = vmatpush1.bf16.xpose.msra.mxu0 0
    %357 = vmatprep.subr.bf16.mxu0 0
    %358 = vmatpush1.bf16.xpose.msra.mxu0 0
    %359 = vmatprep.subr.bf16.mxu0 0
    %360 = vmatpush1.bf16.xpose.msra.mxu0 0
    %361 = vmatprep.subr.bf16.mxu0 0
    %362 = vmatpush1.bf16.xpose.msra.mxu0 0
    %363 = vmatprep.subr.bf16.mxu0 0
    %364 = vmatpush1.bf16.xpose.msra.mxu0 0
    %365 = vmatprep.subr.bf16.mxu0 0
    %366 = vmatpush1.bf16.xpose.msra.mxu0 0
    %367 = vmatprep.subr.bf16.mxu0 0
    %368 = vmatpush1.bf16.xpose.msra.mxu0 %v351
    %369 = vmatprep.subr.bf16.mxu0 0
    %370 = vmatpush2.bf16.xpose.msra.mxu0 0
    %371 = vmatprep.subr.bf16.mxu0 0
    %372 = vmatpush2.bf16.xpose.msra.mxu0 0
    %373 = vmatprep.subr.bf16.mxu0 0
    %374 = vmatpush2.bf16.xpose.msra.mxu0 0
    %375 = vmatprep.subr.bf16.mxu0 0
    %376 = vmatpush2.bf16.xpose.msra.mxu0 0
    %377 = vmatprep.subr.bf16.mxu0 0
    %378 = vmatpush2.bf16.xpose.msra.mxu0 0
    %379 = vmatprep.subr.bf16.mxu0 0
    %380 = vmatpush2.bf16.xpose.msra.mxu0 0
    %381 = vmatprep.subr.bf16.mxu0 0
    %382 = vmatpush2.bf16.xpose.msra.mxu0 0
    %383 = vmatprep.subr.bf16.mxu0 0
    %384 = vmatpush2.bf16.xpose.msra.mxu0 0
    %385 = vmatprep.mubr.bf16.mxu0 0
    %386 = vmatmul.mubr.bf16.gmra.mxu0 %v348
    %v387 = vpop.f32.mrf.mxu0
    %v388 = vadd.f32 %v84, %v387
    %v389 = vpop.f32.mrf.mxu0
    %v390 = vpop.f32.mrf.mxu0
    %v391 = vadd.f32 %v85, %v390
    %v392 = vpop.f32.mrf.mxu0
    %393 = vdwg.mxu0
    %v394 = vsel %vm273, %v388, -inf
    %395 = vmax.xlane.f32.xlu0 %v394
    %v396 = vpop.xlane.xlu0 %395
    %v397 = vsel %vm273, %v391, -inf
    %398 = vmax.xlane.f32.xlu0 %v397
    %v399 = vpop.xlane.xlu0 %398
    %v400 = vsub.f32 %v388, %v396
    %v401 = vsub.f32 %v391, %v399
    %v402 = vmul.f32 %v400, 1.442695
    %v403 = vpow.pop %v402
    %v404 = vmul.f32 %v401, 1.442695
    %v405 = vpow.pop %v404
    %v406 = vsel %vm273, %v403, 0.0
    %407 = vadd.xlane.f32.xlu0 %v406
    %v408 = vpop.xlane.xlu0 %407
    %v409 = vsel %vm273, %v405, 0.0
    %410 = vadd.xlane.f32.xlu0 %v409
    %v411 = vpop.xlane.xlu0 %410
    %v412 = vrcp.pop %v408
    %v413 = vrcp.pop %v411
    %v414 = vmul.f32 %v403, %v412
    %v415 = vmul.f32 %v405, %v413
    %v416 = vpack.c.bf16 %v415, %v414
    %418 = vrot.lane.b32.xlu0 %v221, 120
    %v419 = vpop.permute.xlu0 %418
    %v422 = vsel %vm273, %v416, 0
    %424 = vmatprep.subr.bf16.mxu0 0
    %425 = vmatpush1.bf16.msra.mxu0 0
    %426 = vmatprep.subr.bf16.mxu0 0
    %427 = vmatpush1.bf16.msra.mxu0 0
    %428 = vmatprep.subr.bf16.mxu0 0
    %429 = vmatpush1.bf16.msra.mxu0 0
    %430 = vmatprep.subr.bf16.mxu0 0
    %431 = vmatpush1.bf16.msra.mxu0 0
    %432 = vmatprep.subr.bf16.mxu0 0
    %433 = vmatpush1.bf16.msra.mxu0 0
    %434 = vmatprep.subr.bf16.mxu0 0
    %435 = vmatpush1.bf16.msra.mxu0 0
    %436 = vmatprep.subr.bf16.mxu0 0
    %437 = vmatpush1.bf16.msra.mxu0 0
    %438 = vmatprep.subr.bf16.mxu0 0
    %439 = vmatpush1.bf16.msra.mxu0 %v419
    %440 = vmatprep.subr.bf16.mxu0 0
    %441 = vmatpush2.bf16.msra.mxu0 0
    %442 = vmatprep.subr.bf16.mxu0 0
    %443 = vmatpush2.bf16.msra.mxu0 0
    %444 = vmatprep.subr.bf16.mxu0 0
    %445 = vmatpush2.bf16.msra.mxu0 0
    %446 = vmatprep.subr.bf16.mxu0 0
    %447 = vmatpush2.bf16.msra.mxu0 0
    %448 = vmatprep.subr.bf16.mxu0 0
    %449 = vmatpush2.bf16.msra.mxu0 0
    %450 = vmatprep.subr.bf16.mxu0 0
    %451 = vmatpush2.bf16.msra.mxu0 0
    %452 = vmatprep.subr.bf16.mxu0 0
    %453 = vmatpush2.bf16.msra.mxu0 0
    %454 = vmatprep.subr.bf16.mxu0 0
    %455 = vmatpush2.bf16.msra.mxu0 0
    %456 = vmatprep.mubr.bf16.mxu0 0
    %457 = vmatmul.mubr.bf16.gmra.mxu0 %v422
    %v458 = vpop.f32.mrf.mxu0
    %v459 = vadd.f32 0.0, %v458
    %v460 = vpop.f32.mrf.mxu0
    %v461 = vpop.f32.mrf.mxu0
    %v462 = vadd.f32 0.0, %v461
    %v463 = vpop.f32.mrf.mxu0
    %464 = vdwg.mxu0
    %s465 = scalar_lea.vmem %s4, 8
    %v466 = vld [vmem:[%s465] sm:$0xff]
    %v468 = vsel %vm225, %v459, 0
    %v471 = vsel %vm225, %v462, 0
    %473 = vmatprep.subr.mxu0 0.0
    %474 = vmatpush1.msra.mxu0 0.0
    %475 = vmatprep.subr.mxu0 0.0
    %476 = vmatpush1.msra.mxu0 0.0
    %477 = vmatprep.subr.mxu0 0.0
    %478 = vmatpush1.msra.mxu0 0.0
    %479 = vmatprep.subr.mxu0 0.0
    %480 = vmatpush1.msra.mxu0 0.0
    %481 = vmatprep.subr.mxu0 0.0
    %482 = vmatpush1.msra.mxu0 0.0
    %483 = vmatprep.subr.mxu0 0.0
    %484 = vmatpush1.msra.mxu0 0.0
    %485 = vmatprep.subr.mxu0 0.0
    %486 = vmatpush1.msra.mxu0 0.0
    %487 = vmatprep.subr.mxu0 0.0
    %488 = vmatpush1.msra.mxu0 0.0
    %489 = vmatprep.subr.mxu0 0.0
    %490 = vmatpush1.msra.mxu0 0.0
    %491 = vmatprep.subr.mxu0 0.0
    %492 = vmatpush1.msra.mxu0 0.0
    %493 = vmatprep.subr.mxu0 0.0
    %494 = vmatpush1.msra.mxu0 0.0
    %495 = vmatprep.subr.mxu0 0.0
    %496 = vmatpush1.msra.mxu0 0.0
    %497 = vmatprep.subr.mxu0 0.0
    %498 = vmatpush1.msra.mxu0 0.0
    %499 = vmatprep.subr.mxu0 0.0
    %500 = vmatpush1.msra.mxu0 0.0
    %501 = vmatprep.subr.mxu0 0.0
    %502 = vmatpush1.msra.mxu0 0.0
    %503 = vmatprep.subr.mxu0 0.0
    %504 = vmatpush1.msra.mxu0 %v466
    %505 = vmatprep.subr.mxu0 0.0
    %506 = vmatpush2.msra.mxu0 0.0
    %507 = vmatprep.subr.mxu0 0.0
    %508 = vmatpush2.msra.mxu0 0.0
    %509 = vmatprep.subr.mxu0 0.0
    %510 = vmatpush2.msra.mxu0 0.0
    %511 = vmatprep.subr.mxu0 0.0
    %512 = vmatpush2.msra.mxu0 0.0
    %513 = vmatprep.subr.mxu0 0.0
    %514 = vmatpush2.msra.mxu0 0.0
    %515 = vmatprep.subr.mxu0 0.0
    %516 = vmatpush2.msra.mxu0 0.0
    %517 = vmatprep.subr.mxu0 0.0
    %518 = vmatpush2.msra.mxu0 0.0
    %519 = vmatprep.subr.mxu0 0.0
    %520 = vmatpush2.msra.mxu0 0.0
    %521 = vmatprep.subr.mxu0 0.0
    %522 = vmatpush2.msra.mxu0 0.0
    %523 = vmatprep.subr.mxu0 0.0
    %524 = vmatpush2.msra.mxu0 0.0
    %525 = vmatprep.subr.mxu0 0.0
    %526 = vmatpush2.msra.mxu0 0.0
    %527 = vmatprep.subr.mxu0 0.0
    %528 = vmatpush2.msra.mxu0 0.0
    %529 = vmatprep.subr.mxu0 0.0
    %530 = vmatpush2.msra.mxu0 0.0
    %531 = vmatprep.subr.mxu0 0.0
    %532 = vmatpush2.msra.mxu0 0.0
    %533 = vmatprep.subr.mxu0 0.0
    %534 = vmatpush2.msra.mxu0 0.0
    %535 = vmatprep.subr.mxu0 0.0
    %536 = vmatpush2.msra.mxu0 0.0
    %537 = vmatprep.mubr.f32.mxu0 0.0
    %538 = vmatmul.mubr.f32.gmra.mxu0 %v468
    %v539 = vpop.f32.mrf.mxu0
    %v540 = vadd.f32 0.0, %v539
    %v541 = vpop.f32.mrf.mxu0
    %542 = vmatprep.mubr.f32.mxu0 0.0
    %543 = vmatmul.mubr.f32.gmra.mxu0 %v471
    %v544 = vpop.f32.mrf.mxu0
    %v545 = vadd.f32 0.0, %v544
    %v546 = vpop.f32.mrf.mxu0
    %547 = vdwg.mxu0
    %v549 = vsel %vm225, %v335, 0
    %v552 = vsel %vm225, %v338, 0
    %554 = vmatprep.subr.mxu0 0.0
    %555 = vmatpush1.msra.mxu0 0.0
    %556 = vmatprep.subr.mxu0 0.0
    %557 = vmatpush1.msra.mxu0 0.0
    %558 = vmatprep.subr.mxu0 0.0
    %559 = vmatpush1.msra.mxu0 0.0
    %560 = vmatprep.subr.mxu0 0.0
    %561 = vmatpush1.msra.mxu0 0.0
    %562 = vmatprep.subr.mxu0 0.0
    %563 = vmatpush1.msra.mxu0 0.0
    %564 = vmatprep.subr.mxu0 0.0
    %565 = vmatpush1.msra.mxu0 0.0
    %566 = vmatprep.subr.mxu0 0.0
    %567 = vmatpush1.msra.mxu0 0.0
    %568 = vmatprep.subr.mxu0 0.0
    %569 = vmatpush1.msra.mxu0 0.0
    %570 = vmatprep.subr.mxu0 0.0
    %571 = vmatpush1.msra.mxu0 0.0
    %572 = vmatprep.subr.mxu0 0.0
    %573 = vmatpush1.msra.mxu0 0.0
    %574 = vmatprep.subr.mxu0 0.0
    %575 = vmatpush1.msra.mxu0 0.0
    %576 = vmatprep.subr.mxu0 0.0
    %577 = vmatpush1.msra.mxu0 0.0
    %578 = vmatprep.subr.mxu0 0.0
    %579 = vmatpush1.msra.mxu0 0.0
    %580 = vmatprep.subr.mxu0 0.0
    %581 = vmatpush1.msra.mxu0 0.0
    %582 = vmatprep.subr.mxu0 0.0
    %583 = vmatpush1.msra.mxu0 0.0
    %584 = vmatprep.subr.mxu0 0.0
    %585 = vmatpush1.msra.mxu0 %v341
    %586 = vmatprep.subr.mxu0 0.0
    %587 = vmatpush2.msra.mxu0 0.0
    %588 = vmatprep.subr.mxu0 0.0
    %589 = vmatpush2.msra.mxu0 0.0
    %590 = vmatprep.subr.mxu0 0.0
    %591 = vmatpush2.msra.mxu0 0.0
    %592 = vmatprep.subr.mxu0 0.0
    %593 = vmatpush2.msra.mxu0 0.0
    %594 = vmatprep.subr.mxu0 0.0
    %595 = vmatpush2.msra.mxu0 0.0
    %596 = vmatprep.subr.mxu0 0.0
    %597 = vmatpush2.msra.mxu0 0.0
    %598 = vmatprep.subr.mxu0 0.0
    %599 = vmatpush2.msra.mxu0 0.0
    %600 = vmatprep.subr.mxu0 0.0
    %601 = vmatpush2.msra.mxu0 0.0
    %602 = vmatprep.subr.mxu0 0.0
    %603 = vmatpush2.msra.mxu0 0.0
    %604 = vmatprep.subr.mxu0 0.0
    %605 = vmatpush2.msra.mxu0 0.0
    %606 = vmatprep.subr.mxu0 0.0
    %607 = vmatpush2.msra.mxu0 0.0
    %608 = vmatprep.subr.mxu0 0.0
    %609 = vmatpush2.msra.mxu0 0.0
    %610 = vmatprep.subr.mxu0 0.0
    %611 = vmatpush2.msra.mxu0 0.0
    %612 = vmatprep.subr.mxu0 0.0
    %613 = vmatpush2.msra.mxu0 0.0
    %614 = vmatprep.subr.mxu0 0.0
    %615 = vmatpush2.msra.mxu0 0.0
    %616 = vmatprep.subr.mxu0 0.0
    %617 = vmatpush2.msra.mxu0 0.0
    %618 = vmatprep.mubr.f32.mxu0 0.0
    %619 = vmatmul.mubr.f32.gmra.mxu0 %v549
    %v620 = vpop.f32.mrf.mxu0
    %v621 = vadd.f32 %v540, %v620
    %v622 = vpop.f32.mrf.mxu0
    %623 = vmatprep.mubr.f32.mxu0 0.0
    %624 = vmatmul.mubr.f32.gmra.mxu0 %v552
    %v625 = vpop.f32.mrf.mxu0
    %v626 = vadd.f32 %v545, %v625
    %v627 = vpop.f32.mrf.mxu0
    %628 = vdwg.mxu0
    %629 = vrot.lane.b32.xlu0 %v219, 112
    %v630 = vpop.permute.xlu0 %629
    %631 = vrot.lane.b32.xlu0 %v220, 80
    %v632 = vpop.permute.xlu0 %631
    %v634 = vsel %vm225, %v630, 0
    %v637 = vsel %vm225, %v632, 0
    %639 = vmatprep.subr.bf16.mxu0 0
    %640 = vmatpush1.bf16.xpose.msra.mxu0 0
    %641 = vmatprep.subr.bf16.mxu0 0
    %642 = vmatpush1.bf16.xpose.msra.mxu0 0
    %643 = vmatprep.subr.bf16.mxu0 0
    %644 = vmatpush1.bf16.xpose.msra.mxu0 0
    %645 = vmatprep.subr.bf16.mxu0 0
    %646 = vmatpush1.bf16.xpose.msra.mxu0 0
    %647 = vmatprep.subr.bf16.mxu0 0
    %648 = vmatpush1.bf16.xpose.msra.mxu0 0
    %649 = vmatprep.subr.bf16.mxu0 0
    %650 = vmatpush1.bf16.xpose.msra.mxu0 0
    %651 = vmatprep.subr.bf16.mxu0 0
    %652 = vmatpush1.bf16.xpose.msra.mxu0 0
    %653 = vmatprep.subr.bf16.mxu0 0
    %654 = vmatpush1.bf16.xpose.msra.mxu0 %v637
    %655 = vmatprep.subr.bf16.mxu0 0
    %656 = vmatpush2.bf16.xpose.msra.mxu0 0
    %657 = vmatprep.subr.bf16.mxu0 0
    %658 = vmatpush2.bf16.xpose.msra.mxu0 0
    %659 = vmatprep.subr.bf16.mxu0 0
    %660 = vmatpush2.bf16.xpose.msra.mxu0 0
    %661 = vmatprep.subr.bf16.mxu0 0
    %662 = vmatpush2.bf16.xpose.msra.mxu0 0
    %663 = vmatprep.subr.bf16.mxu0 0
    %664 = vmatpush2.bf16.xpose.msra.mxu0 0
    %665 = vmatprep.subr.bf16.mxu0 0
    %666 = vmatpush2.bf16.xpose.msra.mxu0 0
    %667 = vmatprep.subr.bf16.mxu0 0
    %668 = vmatpush2.bf16.xpose.msra.mxu0 0
    %669 = vmatprep.subr.bf16.mxu0 0
    %670 = vmatpush2.bf16.xpose.msra.mxu0 0
    %671 = vmatprep.mubr.bf16.mxu0 0
    %672 = vmatmul.mubr.bf16.gmra.mxu0 %v634
    %v673 = vpop.f32.mrf.mxu0
    %v674 = vadd.f32 %v84, %v673
    %v675 = vpop.f32.mrf.mxu0
    %v676 = vpop.f32.mrf.mxu0
    %v677 = vadd.f32 %v85, %v676
    %v678 = vpop.f32.mrf.mxu0
    %679 = vdwg.mxu0
    %v680 = vsel %vm273, %v674, -inf
    %681 = vmax.xlane.f32.xlu0 %v680
    %v682 = vpop.xlane.xlu0 %681
    %v683 = vsel %vm273, %v677, -inf
    %684 = vmax.xlane.f32.xlu0 %v683
    %v685 = vpop.xlane.xlu0 %684
    %v686 = vsub.f32 %v674, %v682
    %v687 = vsub.f32 %v677, %v685
    %v688 = vmul.f32 %v686, 1.442695
    %v689 = vpow.pop %v688
    %v690 = vmul.f32 %v687, 1.442695
    %v691 = vpow.pop %v690
    %v692 = vsel %vm273, %v689, 0.0
    %693 = vadd.xlane.f32.xlu0 %v692
    %v694 = vpop.xlane.xlu0 %693
    %v695 = vsel %vm273, %v691, 0.0
    %696 = vadd.xlane.f32.xlu0 %v695
    %v697 = vpop.xlane.xlu0 %696
    %v698 = vrcp.pop %v694
    %v699 = vrcp.pop %v697
    %v700 = vmul.f32 %v689, %v698
    %v701 = vmul.f32 %v691, %v699
    %v702 = vpack.c.bf16 %v701, %v700
    %703 = vrot.lane.b32.xlu0 %v221, 112
    %v704 = vpop.permute.xlu0 %703
    %v707 = vsel %vm273, %v702, 0
    %709 = vmatprep.subr.bf16.mxu0 0
    %710 = vmatpush1.bf16.msra.mxu0 0
    %711 = vmatprep.subr.bf16.mxu0 0
    %712 = vmatpush1.bf16.msra.mxu0 0
    %713 = vmatprep.subr.bf16.mxu0 0
    %714 = vmatpush1.bf16.msra.mxu0 0
    %715 = vmatprep.subr.bf16.mxu0 0
    %716 = vmatpush1.bf16.msra.mxu0 0
    %717 = vmatprep.subr.bf16.mxu0 0
    %718 = vmatpush1.bf16.msra.mxu0 0
    %719 = vmatprep.subr.bf16.mxu0 0
    %720 = vmatpush1.bf16.msra.mxu0 0
    %721 = vmatprep.subr.bf16.mxu0 0
    %722 = vmatpush1.bf16.msra.mxu0 0
    %723 = vmatprep.subr.bf16.mxu0 0
    %724 = vmatpush1.bf16.msra.mxu0 %v704
    %725 = vmatprep.subr.bf16.mxu0 0
    %726 = vmatpush2.bf16.msra.mxu0 0
    %727 = vmatprep.subr.bf16.mxu0 0
    %728 = vmatpush2.bf16.msra.mxu0 0
    %729 = vmatprep.subr.bf16.mxu0 0
    %730 = vmatpush2.bf16.msra.mxu0 0
    %731 = vmatprep.subr.bf16.mxu0 0
    %732 = vmatpush2.bf16.msra.mxu0 0
    %733 = vmatprep.subr.bf16.mxu0 0
    %734 = vmatpush2.bf16.msra.mxu0 0
    %735 = vmatprep.subr.bf16.mxu0 0
    %736 = vmatpush2.bf16.msra.mxu0 0
    %737 = vmatprep.subr.bf16.mxu0 0
    %738 = vmatpush2.bf16.msra.mxu0 0
    %739 = vmatprep.subr.bf16.mxu0 0
    %740 = vmatpush2.bf16.msra.mxu0 0
    %741 = vmatprep.mubr.bf16.mxu0 0
    %742 = vmatmul.mubr.bf16.gmra.mxu0 %v707
    %v743 = vpop.f32.mrf.mxu0
    %v744 = vadd.f32 0.0, %v743
    %v745 = vpop.f32.mrf.mxu0
    %v746 = vpop.f32.mrf.mxu0
    %v747 = vadd.f32 0.0, %v746
    %v748 = vpop.f32.mrf.mxu0
    %749 = vdwg.mxu0
    %s750 = scalar_lea.vmem %s4, 16
    %v751 = vld [vmem:[%s750] sm:$0xff]
    %v753 = vsel %vm225, %v744, 0
    %v756 = vsel %vm225, %v747, 0
    %758 = vmatprep.subr.mxu0 0.0
    %759 = vmatpush1.msra.mxu0 0.0
    %760 = vmatprep.subr.mxu0 0.0
    %761 = vmatpush1.msra.mxu0 0.0
    %762 = vmatprep.subr.mxu0 0.0
    %763 = vmatpush1.msra.mxu0 0.0
    %764 = vmatprep.subr.mxu0 0.0
    %765 = vmatpush1.msra.mxu0 0.0
    %766 = vmatprep.subr.mxu0 0.0
    %767 = vmatpush1.msra.mxu0 0.0
    %768 = vmatprep.subr.mxu0 0.0
    %769 = vmatpush1.msra.mxu0 0.0
    %770 = vmatprep.subr.mxu0 0.0
    %771 = vmatpush1.msra.mxu0 0.0
    %772 = vmatprep.subr.mxu0 0.0
    %773 = vmatpush1.msra.mxu0 0.0
    %774 = vmatprep.subr.mxu0 0.0
    %775 = vmatpush1.msra.mxu0 0.0
    %776 = vmatprep.subr.mxu0 0.0
    %777 = vmatpush1.msra.mxu0 0.0
    %778 = vmatprep.subr.mxu0 0.0
    %779 = vmatpush1.msra.mxu0 0.0
    %780 = vmatprep.subr.mxu0 0.0
    %781 = vmatpush1.msra.mxu0 0.0
    %782 = vmatprep.subr.mxu0 0.0
    %783 = vmatpush1.msra.mxu0 0.0
    %784 = vmatprep.subr.mxu0 0.0
    %785 = vmatpush1.msra.mxu0 0.0
    %786 = vmatprep.subr.mxu0 0.0
    %787 = vmatpush1.msra.mxu0 0.0
    %788 = vmatprep.subr.mxu0 0.0
    %789 = vmatpush1.msra.mxu0 %v751
    %790 = vmatprep.subr.mxu0 0.0
    %791 = vmatpush2.msra.mxu0 0.0
    %792 = vmatprep.subr.mxu0 0.0
    %793 = vmatpush2.msra.mxu0 0.0
    %794 = vmatprep.subr.mxu0 0.0
    %795 = vmatpush2.msra.mxu0 0.0
    %796 = vmatprep.subr.mxu0 0.0
    %797 = vmatpush2.msra.mxu0 0.0
    %798 = vmatprep.subr.mxu0 0.0
    %799 = vmatpush2.msra.mxu0 0.0
    %800 = vmatprep.subr.mxu0 0.0
    %801 = vmatpush2.msra.mxu0 0.0
    %802 = vmatprep.subr.mxu0 0.0
    %803 = vmatpush2.msra.mxu0 0.0
    %804 = vmatprep.subr.mxu0 0.0
    %805 = vmatpush2.msra.mxu0 0.0
    %806 = vmatprep.subr.mxu0 0.0
    %807 = vmatpush2.msra.mxu0 0.0
    %808 = vmatprep.subr.mxu0 0.0
    %809 = vmatpush2.msra.mxu0 0.0
    %810 = vmatprep.subr.mxu0 0.0
    %811 = vmatpush2.msra.mxu0 0.0
    %812 = vmatprep.subr.mxu0 0.0
    %813 = vmatpush2.msra.mxu0 0.0
    %814 = vmatprep.subr.mxu0 0.0
    %815 = vmatpush2.msra.mxu0 0.0
    %816 = vmatprep.subr.mxu0 0.0
    %817 = vmatpush2.msra.mxu0 0.0
    %818 = vmatprep.subr.mxu0 0.0
    %819 = vmatpush2.msra.mxu0 0.0
    %820 = vmatprep.subr.mxu0 0.0
    %821 = vmatpush2.msra.mxu0 0.0
    %822 = vmatprep.mubr.f32.mxu0 0.0
    %823 = vmatmul.mubr.f32.gmra.mxu0 %v753
    %v824 = vpop.f32.mrf.mxu0
    %v825 = vadd.f32 0.0, %v824
    %v826 = vpop.f32.mrf.mxu0
    %827 = vmatprep.mubr.f32.mxu0 0.0
    %828 = vmatmul.mubr.f32.gmra.mxu0 %v756
    %v829 = vpop.f32.mrf.mxu0
    %v830 = vadd.f32 0.0, %v829
    %v831 = vpop.f32.mrf.mxu0
    %832 = vdwg.mxu0
    %v833 = vadd.f32 %v621, %v825
    %v834 = vadd.f32 %v626, %v830
    %835 = vrot.lane.b32.xlu0 %v219, 104
    %v836 = vpop.permute.xlu0 %835
    %837 = vrot.lane.b32.xlu0 %v220, 72
    %v838 = vpop.permute.xlu0 %837
    %v840 = vsel %vm225, %v836, 0
    %v843 = vsel %vm225, %v838, 0
    %845 = vmatprep.subr.bf16.mxu0 0
    %846 = vmatpush1.bf16.xpose.msra.mxu0 0
    %847 = vmatprep.subr.bf16.mxu0 0
    %848 = vmatpush1.bf16.xpose.msra.mxu0 0
    %849 = vmatprep.subr.bf16.mxu0 0
    %850 = vmatpush1.bf16.xpose.msra.mxu0 0
    %851 = vmatprep.subr.bf16.mxu0 0
    %852 = vmatpush1.bf16.xpose.msra.mxu0 0
    %853 = vmatprep.subr.bf16.mxu0 0
    %854 = vmatpush1.bf16.xpose.msra.mxu0 0
    %855 = vmatprep.subr.bf16.mxu0 0
    %856 = vmatpush1.bf16.xpose.msra.mxu0 0
    %857 = vmatprep.subr.bf16.mxu0 0
    %858 = vmatpush1.bf16.xpose.msra.mxu0 0
    %859 = vmatprep.subr.bf16.mxu0 0
    %860 = vmatpush1.bf16.xpose.msra.mxu0 %v843
    %861 = vmatprep.subr.bf16.mxu0 0
    %862 = vmatpush2.bf16.xpose.msra.mxu0 0
    %863 = vmatprep.subr.bf16.mxu0 0
    %864 = vmatpush2.bf16.xpose.msra.mxu0 0
    %865 = vmatprep.subr.bf16.mxu0 0
    %866 = vmatpush2.bf16.xpose.msra.mxu0 0
    %867 = vmatprep.subr.bf16.mxu0 0
    %868 = vmatpush2.bf16.xpose.msra.mxu0 0
    %869 = vmatprep.subr.bf16.mxu0 0
    %870 = vmatpush2.bf16.xpose.msra.mxu0 0
    %871 = vmatprep.subr.bf16.mxu0 0
    %872 = vmatpush2.bf16.xpose.msra.mxu0 0
    %873 = vmatprep.subr.bf16.mxu0 0
    %874 = vmatpush2.bf16.xpose.msra.mxu0 0
    %875 = vmatprep.subr.bf16.mxu0 0
    %876 = vmatpush2.bf16.xpose.msra.mxu0 0
    %877 = vmatprep.mubr.bf16.mxu0 0
    %878 = vmatmul.mubr.bf16.gmra.mxu0 %v840
    %v879 = vpop.f32.mrf.mxu0
    %v880 = vadd.f32 %v84, %v879
    %v881 = vpop.f32.mrf.mxu0
    %v882 = vpop.f32.mrf.mxu0
    %v883 = vadd.f32 %v85, %v882
    %v884 = vpop.f32.mrf.mxu0
    %885 = vdwg.mxu0
    %v886 = vsel %vm273, %v880, -inf
    %887 = vmax.xlane.f32.xlu0 %v886
    %v888 = vpop.xlane.xlu0 %887
    %v889 = vsel %vm273, %v883, -inf
    %890 = vmax.xlane.f32.xlu0 %v889
    %v891 = vpop.xlane.xlu0 %890
    %v892 = vsub.f32 %v880, %v888
    %v893 = vsub.f32 %v883, %v891
    %v894 = vmul.f32 %v892, 1.442695
    %v895 = vpow.pop %v894
    %v896 = vmul.f32 %v893, 1.442695
    %v897 = vpow.pop %v896
    %v898 = vsel %vm273, %v895, 0.0
    %899 = vadd.xlane.f32.xlu0 %v898
    %v900 = vpop.xlane.xlu0 %899
    %v901 = vsel %vm273, %v897, 0.0
    %902 = vadd.xlane.f32.xlu0 %v901
    %v903 = vpop.xlane.xlu0 %902
    %v904 = vrcp.pop %v900
    %v905 = vrcp.pop %v903
    %v906 = vmul.f32 %v895, %v904
    %v907 = vmul.f32 %v897, %v905
    %v908 = vpack.c.bf16 %v907, %v906
    %909 = vrot.lane.b32.xlu0 %v221, 104
    %v910 = vpop.permute.xlu0 %909
    %v913 = vsel %vm273, %v908, 0
    %915 = vmatprep.subr.bf16.mxu0 0
    %916 = vmatpush1.bf16.msra.mxu0 0
    %917 = vmatprep.subr.bf16.mxu0 0
    %918 = vmatpush1.bf16.msra.mxu0 0
    %919 = vmatprep.subr.bf16.mxu0 0
    %920 = vmatpush1.bf16.msra.mxu0 0
    %921 = vmatprep.subr.bf16.mxu0 0
    %922 = vmatpush1.bf16.msra.mxu0 0
    %923 = vmatprep.subr.bf16.mxu0 0
    %924 = vmatpush1.bf16.msra.mxu0 0
    %925 = vmatprep.subr.bf16.mxu0 0
    %926 = vmatpush1.bf16.msra.mxu0 0
    %927 = vmatprep.subr.bf16.mxu0 0
    %928 = vmatpush1.bf16.msra.mxu0 0
    %929 = vmatprep.subr.bf16.mxu0 0
    %930 = vmatpush1.bf16.msra.mxu0 %v910
    %931 = vmatprep.subr.bf16.mxu0 0
    %932 = vmatpush2.bf16.msra.mxu0 0
    %933 = vmatprep.subr.bf16.mxu0 0
    %934 = vmatpush2.bf16.msra.mxu0 0
    %935 = vmatprep.subr.bf16.mxu0 0
    %936 = vmatpush2.bf16.msra.mxu0 0
    %937 = vmatprep.subr.bf16.mxu0 0
    %938 = vmatpush2.bf16.msra.mxu0 0
    %939 = vmatprep.subr.bf16.mxu0 0
    %940 = vmatpush2.bf16.msra.mxu0 0
    %941 = vmatprep.subr.bf16.mxu0 0
    %942 = vmatpush2.bf16.msra.mxu0 0
    %943 = vmatprep.subr.bf16.mxu0 0
    %944 = vmatpush2.bf16.msra.mxu0 0
    %945 = vmatprep.subr.bf16.mxu0 0
    %946 = vmatpush2.bf16.msra.mxu0 0
    %947 = vmatprep.mubr.bf16.mxu0 0
    %948 = vmatmul.mubr.bf16.gmra.mxu0 %v913
    %v949 = vpop.f32.mrf.mxu0
    %v950 = vadd.f32 0.0, %v949
    %v951 = vpop.f32.mrf.mxu0
    %v952 = vpop.f32.mrf.mxu0
    %v953 = vadd.f32 0.0, %v952
    %v954 = vpop.f32.mrf.mxu0
    %955 = vdwg.mxu0
    %s956 = scalar_lea.vmem %s4, 24
    %v957 = vld [vmem:[%s956] sm:$0xff]
    %v959 = vsel %vm225, %v950, 0
    %v962 = vsel %vm225, %v953, 0
    %964 = vmatprep.subr.mxu0 0.0
    %965 = vmatpush1.msra.mxu0 0.0
    %966 = vmatprep.subr.mxu0 0.0
    %967 = vmatpush1.msra.mxu0 0.0
    %968 = vmatprep.subr.mxu0 0.0
    %969 = vmatpush1.msra.mxu0 0.0
    %970 = vmatprep.subr.mxu0 0.0
    %971 = vmatpush1.msra.mxu0 0.0
    %972 = vmatprep.subr.mxu0 0.0
    %973 = vmatpush1.msra.mxu0 0.0
    %974 = vmatprep.subr.mxu0 0.0
    %975 = vmatpush1.msra.mxu0 0.0
    %976 = vmatprep.subr.mxu0 0.0
    %977 = vmatpush1.msra.mxu0 0.0
    %978 = vmatprep.subr.mxu0 0.0
    %979 = vmatpush1.msra.mxu0 0.0
    %980 = vmatprep.subr.mxu0 0.0
    %981 = vmatpush1.msra.mxu0 0.0
    %982 = vmatprep.subr.mxu0 0.0
    %983 = vmatpush1.msra.mxu0 0.0
    %984 = vmatprep.subr.mxu0 0.0
    %985 = vmatpush1.msra.mxu0 0.0
    %986 = vmatprep.subr.mxu0 0.0
    %987 = vmatpush1.msra.mxu0 0.0
    %988 = vmatprep.subr.mxu0 0.0
    %989 = vmatpush1.msra.mxu0 0.0
    %990 = vmatprep.subr.mxu0 0.0
    %991 = vmatpush1.msra.mxu0 0.0
    %992 = vmatprep.subr.mxu0 0.0
    %993 = vmatpush1.msra.mxu0 0.0
    %994 = vmatprep.subr.mxu0 0.0
    %995 = vmatpush1.msra.mxu0 %v957
    %996 = vmatprep.subr.mxu0 0.0
    %997 = vmatpush2.msra.mxu0 0.0
    %998 = vmatprep.subr.mxu0 0.0
    %999 = vmatpush2.msra.mxu0 0.0
    %1000 = vmatprep.subr.mxu0 0.0
    %1001 = vmatpush2.msra.mxu0 0.0
    %1002 = vmatprep.subr.mxu0 0.0
    %1003 = vmatpush2.msra.mxu0 0.0
    %1004 = vmatprep.subr.mxu0 0.0
    %1005 = vmatpush2.msra.mxu0 0.0
    %1006 = vmatprep.subr.mxu0 0.0
    %1007 = vmatpush2.msra.mxu0 0.0
    %1008 = vmatprep.subr.mxu0 0.0
    %1009 = vmatpush2.msra.mxu0 0.0
    %1010 = vmatprep.subr.mxu0 0.0
    %1011 = vmatpush2.msra.mxu0 0.0
    %1012 = vmatprep.subr.mxu0 0.0
    %1013 = vmatpush2.msra.mxu0 0.0
    %1014 = vmatprep.subr.mxu0 0.0
    %1015 = vmatpush2.msra.mxu0 0.0
    %1016 = vmatprep.subr.mxu0 0.0
    %1017 = vmatpush2.msra.mxu0 0.0
    %1018 = vmatprep.subr.mxu0 0.0
    %1019 = vmatpush2.msra.mxu0 0.0
    %1020 = vmatprep.subr.mxu0 0.0
    %1021 = vmatpush2.msra.mxu0 0.0
    %1022 = vmatprep.subr.mxu0 0.0
    %1023 = vmatpush2.msra.mxu0 0.0
    %1024 = vmatprep.subr.mxu0 0.0
    %1025 = vmatpush2.msra.mxu0 0.0
    %1026 = vmatprep.subr.mxu0 0.0
    %1027 = vmatpush2.msra.mxu0 0.0
    %1028 = vmatprep.mubr.f32.mxu0 0.0
    %1029 = vmatmul.mubr.f32.gmra.mxu0 %v959
    %v1030 = vpop.f32.mrf.mxu0
    %v1031 = vadd.f32 0.0, %v1030
    %v1032 = vpop.f32.mrf.mxu0
    %1033 = vmatprep.mubr.f32.mxu0 0.0
    %1034 = vmatmul.mubr.f32.gmra.mxu0 %v962
    %v1035 = vpop.f32.mrf.mxu0
    %v1036 = vadd.f32 0.0, %v1035
    %v1037 = vpop.f32.mrf.mxu0
    %1038 = vdwg.mxu0
    %v1039 = vadd.f32 %v833, %v1031
    %v1040 = vadd.f32 %v834, %v1036
    %v1041 = vlaneseq
    %v1042 = vshrl.u32 %v1041, 7
    %v1043 = vsub.s32 2, %v1042
    %v1044 = vrot.slane %v92, %v1043
    %v1045 = vadd.f32 %v1039, %v1044
    %v1046 = vadd.f32 %v1040, %v1044
    %v1047 = vadd.f32 %v72, %v1045
    %v1048 = vadd.f32 %v73, %v1046
    %v1049 = vsel %vm114, %v1047, 0.0
    %1050 = vadd.xlane.f32.xlu0 %v1049
    %v1051 = vpop.xlane.xlu0 %1050
    %v1052 = vsel %vm114, %v1048, 0.0
    %1053 = vadd.xlane.f32.xlu0 %v1052
    %v1054 = vpop.xlane.xlu0 %1053
    %v1055 = vrcp.pop 32.0
    %v1056 = vmul.f32 %v1051, %v1055
    %v1057 = vmul.f32 %v1054, %v1055
    %v1058 = vmul.f32 %v1047, %v1047
    %v1059 = vmul.f32 %v1048, %v1048
    %v1060 = vsel %vm114, %v1058, 0.0
    %1061 = vadd.xlane.f32.xlu0 %v1060
    %v1062 = vpop.xlane.xlu0 %1061
    %v1063 = vsel %vm114, %v1059, 0.0
    %1064 = vadd.xlane.f32.xlu0 %v1063
    %v1065 = vpop.xlane.xlu0 %1064
    %v1066 = vmul.f32 %v1062, %v1055
    %v1067 = vmul.f32 %v1065, %v1055
    %v1068 = vmul.f32 %v1056, %v1056
    %v1069 = vmul.f32 %v1057, %v1057
    %v1070 = vsub.f32 %v1066, %v1068
    %v1071 = vsub.f32 %v1067, %v1069
    %v1072 = vmax.f32 %v1070, 0.0
    %v1073 = vmax.f32 %v1071, 0.0
    %v1074 = vsub.f32 %v1047, %v1056
    %v1075 = vsub.f32 %v1048, %v1057
    %v1076 = vadd.f32 %v1072, 1e-05
    %v1077 = vadd.f32 %v1073, 1e-05
    %v1078 = vrsqrt.pop %v1076
    %v1079 = vrsqrt.pop %v1077
    %v1080 = vmul.f32 %v1074, %v1078
    %v1081 = vmul.f32 %v1075, %v1079
    %v1082 = vlaneseq
    %v1083 = vshrl.u32 %v1082, 7
    %v1084 = vsub.s32 6, %v1083
    %v1085 = vrot.slane %v92, %v1084
    %v1086 = vmul.f32 %v1080, %v1085
    %v1087 = vmul.f32 %v1081, %v1085
    %v1088 = vlaneseq
    %v1089 = vshrl.u32 %v1088, 7
    %v1090 = vsub.s32 7, %v1089
    %v1091 = vrot.slane %v92, %v1090
    %v1092 = vadd.f32 %v1086, %v1091
    %v1093 = vadd.f32 %v1087, %v1091
    %v1094 = vadd.f32 %v1092, %v74
    %v1095 = vadd.f32 %v1093, %v75
    %v1096 = vpack.c.bf16 %v1095, %v1094
    %s1097 = scalar_lea.vmem %s3, 16
    %v1098 = vld [vmem:[%s1097] sm:$0xf]
    %v1099 = vld [vmem:[%s1097 + $0x4] sm:$0xf]
    %v1100 = vld [vmem:[%s1097 + $0x8] sm:$0xf]
    %v1101 = vld [vmem:[%s1097 + $0xc] sm:$0xf]
    %v1102 = vlaneseq
    %v1103 = vshrl.u32 %v1102, 7
    %v1104 = vsub.s32 1, %v1103
    %v1105 = vrot.slane %v92, %v1104
    %v1110 = vunpack.c.l.b16 %v1098
    %v1111 = vunpack.c.l.b16 %v1099
    %v1112 = vunpack.c.l.b16 %v1100
    %v1113 = vunpack.c.l.b16 %v1101
    %v1114 = vpack.c.b16 %v1111, %v1110
    %v1115 = vpack.c.b16 %v1113, %v1112
    %v1119 = vsel %vm114, %v1096, 0
    %1121 = vmatprep.subr.bf16.mxu0 0
    %1122 = vmatpush1.bf16.msra.mxu0 0
    %1123 = vmatprep.subr.bf16.mxu0 0
    %1124 = vmatpush1.bf16.msra.mxu0 0
    %1125 = vmatprep.subr.bf16.mxu0 0
    %1126 = vmatpush1.bf16.msra.mxu0 0
    %1127 = vmatprep.subr.bf16.mxu0 0
    %1128 = vmatpush1.bf16.msra.mxu0 0
    %1129 = vmatprep.subr.bf16.mxu0 0
    %1130 = vmatpush1.bf16.msra.mxu0 0
    %1131 = vmatprep.subr.bf16.mxu0 0
    %1132 = vmatpush1.bf16.msra.mxu0 0
    %1133 = vmatprep.subr.bf16.mxu0 0
    %1134 = vmatpush1.bf16.msra.mxu0 %v1115
    %1135 = vmatprep.subr.bf16.mxu0 0
    %1136 = vmatpush1.bf16.msra.mxu0 %v1114
    %1137 = vmatprep.subr.bf16.mxu0 0
    %1138 = vmatpush2.bf16.msra.mxu0 0
    %1139 = vmatprep.subr.bf16.mxu0 0
    %1140 = vmatpush2.bf16.msra.mxu0 0
    %1141 = vmatprep.subr.bf16.mxu0 0
    %1142 = vmatpush2.bf16.msra.mxu0 0
    %1143 = vmatprep.subr.bf16.mxu0 0
    %1144 = vmatpush2.bf16.msra.mxu0 0
    %1145 = vmatprep.subr.bf16.mxu0 0
    %1146 = vmatpush2.bf16.msra.mxu0 0
    %1147 = vmatprep.subr.bf16.mxu0 0
    %1148 = vmatpush2.bf16.msra.mxu0 0
    %1149 = vmatprep.subr.bf16.mxu0 0
    %1150 = vmatpush2.bf16.msra.mxu0 0
    %1151 = vmatprep.subr.bf16.mxu0 0
    %1152 = vmatpush2.bf16.msra.mxu0 0
    %1153 = vmatprep.mubr.bf16.mxu0 0
    %1154 = vmatmul.mubr.bf16.gmra.mxu0 %v1119
    %v1155 = vpop.f32.mrf.mxu0
    %v1156 = vadd.f32 %v1105, %v1155
    %v1157 = vpop.f32.mrf.mxu0
    %v1158 = vpop.f32.mrf.mxu0
    %v1159 = vadd.f32 %v1105, %v1158
    %v1160 = vpop.f32.mrf.mxu0
    %1161 = vdwg.mxu0
    %1162 = vrot.lane.b32.xlu0 %v1114, 96
    %v1163 = vpop.permute.xlu0 %1162
    %1164 = vrot.lane.b32.xlu0 %v1115, 96
    %v1165 = vpop.permute.xlu0 %1164
    %v1169 = vsel %vm114, %v90, 0
    %v1172 = vsel %vm114, %v91, 0
    %1174 = vmatprep.subr.bf16.mxu0 0
    %1175 = vmatpush1.bf16.msra.mxu0 0
    %1176 = vmatprep.subr.bf16.mxu0 0
    %1177 = vmatpush1.bf16.msra.mxu0 0
    %1178 = vmatprep.subr.bf16.mxu0 0
    %1179 = vmatpush1.bf16.msra.mxu0 0
    %1180 = vmatprep.subr.bf16.mxu0 0
    %1181 = vmatpush1.bf16.msra.mxu0 0
    %1182 = vmatprep.subr.bf16.mxu0 0
    %1183 = vmatpush1.bf16.msra.mxu0 0
    %1184 = vmatprep.subr.bf16.mxu0 0
    %1185 = vmatpush1.bf16.msra.mxu0 0
    %1186 = vmatprep.subr.bf16.mxu0 0
    %1187 = vmatpush1.bf16.msra.mxu0 %v1165
    %1188 = vmatprep.subr.bf16.mxu0 0
    %1189 = vmatpush1.bf16.msra.mxu0 %v1163
    %1190 = vmatprep.subr.bf16.mxu0 0
    %1191 = vmatpush2.bf16.msra.mxu0 0
    %1192 = vmatprep.subr.bf16.mxu0 0
    %1193 = vmatpush2.bf16.msra.mxu0 0
    %1194 = vmatprep.subr.bf16.mxu0 0
    %1195 = vmatpush2.bf16.msra.mxu0 0
    %1196 = vmatprep.subr.bf16.mxu0 0
    %1197 = vmatpush2.bf16.msra.mxu0 0
    %1198 = vmatprep.subr.bf16.mxu0 0
    %1199 = vmatpush2.bf16.msra.mxu0 0
    %1200 = vmatprep.subr.bf16.mxu0 0
    %1201 = vmatpush2.bf16.msra.mxu0 0
    %1202 = vmatprep.subr.bf16.mxu0 0
    %1203 = vmatpush2.bf16.msra.mxu0 0
    %1204 = vmatprep.subr.bf16.mxu0 0
    %1205 = vmatpush2.bf16.msra.mxu0 0
    %1206 = vmatprep.mubr.bf16.mxu0 0
    %1207 = vmatmul.mubr.bf16.gmra.mxu0 %v1169
    %v1208 = vpop.f32.mrf.mxu0
    %v1209 = vadd.f32 0.0, %v1208
    %v1210 = vpop.f32.mrf.mxu0
    %v1211 = vpop.f32.mrf.mxu0
    %v1212 = vadd.f32 0.0, %v1211
    %v1213 = vpop.f32.mrf.mxu0
    %1214 = vmatprep.mubr.bf16.mxu0 0
    %1215 = vmatmul.mubr.bf16.gmra.mxu0 %v1172
    %v1216 = vpop.f32.mrf.mxu0
    %v1217 = vadd.f32 0.0, %v1216
    %v1218 = vpop.f32.mrf.mxu0
    %v1219 = vpop.f32.mrf.mxu0
    %v1220 = vadd.f32 0.0, %v1219
    %v1221 = vpop.f32.mrf.mxu0
    %1222 = vdwg.mxu0
    %1223 = vrot.lane.b32.xlu0 %v1114, 64
    %v1224 = vpop.permute.xlu0 %1223
    %1225 = vrot.lane.b32.xlu0 %v1115, 64
    %v1226 = vpop.permute.xlu0 %1225
    %1230 = vrot.lane.b32.xlu0 %v1105, 64
    %v1231 = vpop.permute.xlu0 %1230
    %v1234 = vsel %vm114, %v88, 0
    %v1237 = vsel %vm114, %v89, 0
    %1239 = vmatprep.subr.bf16.mxu0 0
    %1240 = vmatpush1.bf16.msra.mxu0 0
    %1241 = vmatprep.subr.bf16.mxu0 0
    %1242 = vmatpush1.bf16.msra.mxu0 0
    %1243 = vmatprep.subr.bf16.mxu0 0
    %1244 = vmatpush1.bf16.msra.mxu0 0
    %1245 = vmatprep.subr.bf16.mxu0 0
    %1246 = vmatpush1.bf16.msra.mxu0 0
    %1247 = vmatprep.subr.bf16.mxu0 0
    %1248 = vmatpush1.bf16.msra.mxu0 0
    %1249 = vmatprep.subr.bf16.mxu0 0
    %1250 = vmatpush1.bf16.msra.mxu0 0
    %1251 = vmatprep.subr.bf16.mxu0 0
    %1252 = vmatpush1.bf16.msra.mxu0 %v1226
    %1253 = vmatprep.subr.bf16.mxu0 0
    %1254 = vmatpush1.bf16.msra.mxu0 %v1224
    %1255 = vmatprep.subr.bf16.mxu0 0
    %1256 = vmatpush2.bf16.msra.mxu0 0
    %1257 = vmatprep.subr.bf16.mxu0 0
    %1258 = vmatpush2.bf16.msra.mxu0 0
    %1259 = vmatprep.subr.bf16.mxu0 0
    %1260 = vmatpush2.bf16.msra.mxu0 0
    %1261 = vmatprep.subr.bf16.mxu0 0
    %1262 = vmatpush2.bf16.msra.mxu0 0
    %1263 = vmatprep.subr.bf16.mxu0 0
    %1264 = vmatpush2.bf16.msra.mxu0 0
    %1265 = vmatprep.subr.bf16.mxu0 0
    %1266 = vmatpush2.bf16.msra.mxu0 0
    %1267 = vmatprep.subr.bf16.mxu0 0
    %1268 = vmatpush2.bf16.msra.mxu0 0
    %1269 = vmatprep.subr.bf16.mxu0 0
    %1270 = vmatpush2.bf16.msra.mxu0 0
    %1271 = vmatprep.mubr.bf16.mxu0 0
    %1272 = vmatmul.mubr.bf16.gmra.mxu0 %v1234
    %v1273 = vpop.f32.mrf.mxu0
    %v1274 = vadd.f32 %v1231, %v1273
    %v1275 = vpop.f32.mrf.mxu0
    %v1276 = vpop.f32.mrf.mxu0
    %v1277 = vadd.f32 %v1231, %v1276
    %v1278 = vpop.f32.mrf.mxu0
    %1279 = vmatprep.mubr.bf16.mxu0 0
    %1280 = vmatmul.mubr.bf16.gmra.mxu0 %v1237
    %v1281 = vpop.f32.mrf.mxu0
    %v1282 = vadd.f32 %v1231, %v1281
    %v1283 = vpop.f32.mrf.mxu0
    %v1284 = vpop.f32.mrf.mxu0
    %v1285 = vadd.f32 %v1231, %v1284
    %v1286 = vpop.f32.mrf.mxu0
    %1287 = vdwg.mxu0
    %v1288 = vpack.c.bf16 %v1159, %v1156
    %v1289 = vpack.c.bf16 %v1212, %v1209
    %v1290 = vpack.c.bf16 %v1220, %v1217
    %v1291 = vpack.c.bf16 %v1277, %v1274
    %v1292 = vpack.c.bf16 %v1285, %v1282
    %v1294 = vsel %vm225, %v1288, 0
    %v1297 = vsel %vm225, %v1289, 0
    %v1300 = vsel %vm225, %v1290, 0
    %1302 = vmatprep.subr.bf16.mxu0 0
    %1303 = vmatpush1.bf16.xpose.msra.mxu0 0
    %1304 = vmatprep.subr.bf16.mxu0 0
    %1305 = vmatpush1.bf16.xpose.msra.mxu0 0
    %1306 = vmatprep.subr.bf16.mxu0 0
    %1307 = vmatpush1.bf16.xpose.msra.mxu0 0
    %1308 = vmatprep.subr.bf16.mxu0 0
    %1309 = vmatpush1.bf16.xpose.msra.mxu0 0
    %1310 = vmatprep.subr.bf16.mxu0 0
    %1311 = vmatpush1.bf16.xpose.msra.mxu0 0
    %1312 = vmatprep.subr.bf16.mxu0 0
    %1313 = vmatpush1.bf16.xpose.msra.mxu0 0
    %1314 = vmatprep.subr.bf16.mxu0 0
    %1315 = vmatpush1.bf16.xpose.msra.mxu0 %v1300
    %1316 = vmatprep.subr.bf16.mxu0 0
    %1317 = vmatpush1.bf16.xpose.msra.mxu0 %v1297
    %1318 = vmatprep.subr.bf16.mxu0 0
    %1319 = vmatpush2.bf16.xpose.msra.mxu0 0
    %1320 = vmatprep.subr.bf16.mxu0 0
    %1321 = vmatpush2.bf16.xpose.msra.mxu0 0
    %1322 = vmatprep.subr.bf16.mxu0 0
    %1323 = vmatpush2.bf16.xpose.msra.mxu0 0
    %1324 = vmatprep.subr.bf16.mxu0 0
    %1325 = vmatpush2.bf16.xpose.msra.mxu0 0
    %1326 = vmatprep.subr.bf16.mxu0 0
    %1327 = vmatpush2.bf16.xpose.msra.mxu0 0
    %1328 = vmatprep.subr.bf16.mxu0 0
    %1329 = vmatpush2.bf16.xpose.msra.mxu0 0
    %1330 = vmatprep.subr.bf16.mxu0 0
    %1331 = vmatpush2.bf16.xpose.msra.mxu0 0
    %1332 = vmatprep.subr.bf16.mxu0 0
    %1333 = vmatpush2.bf16.xpose.msra.mxu0 0
    %1334 = vmatprep.mubr.bf16.mxu0 0
    %1335 = vmatmul.mubr.bf16.gmra.mxu0 %v1294
    %v1336 = vpop.f32.mrf.mxu0
    %v1337 = vadd.f32 %v86, %v1336
    %v1338 = vpop.f32.mrf.mxu0
    %v1339 = vpop.f32.mrf.mxu0
    %v1340 = vadd.f32 %v87, %v1339
    %v1341 = vpop.f32.mrf.mxu0
    %1342 = vdwg.mxu0
    %v1343 = vsel %vm114, %v1337, -inf
    %1344 = vmax.xlane.f32.xlu0 %v1343
    %v1345 = vpop.xlane.xlu0 %1344
    %v1346 = vsel %vm114, %v1340, -inf
    %1347 = vmax.xlane.f32.xlu0 %v1346
    %v1348 = vpop.xlane.xlu0 %1347
    %v1349 = vsub.f32 %v1337, %v1345
    %v1350 = vsub.f32 %v1340, %v1348
    %v1351 = vmul.f32 %v1349, 1.442695
    %v1352 = vpow.pop %v1351
    %v1353 = vmul.f32 %v1350, 1.442695
    %v1354 = vpow.pop %v1353
    %v1355 = vsel %vm114, %v1352, 0.0
    %1356 = vadd.xlane.f32.xlu0 %v1355
    %v1357 = vpop.xlane.xlu0 %1356
    %v1358 = vsel %vm114, %v1354, 0.0
    %1359 = vadd.xlane.f32.xlu0 %v1358
    %v1360 = vpop.xlane.xlu0 %1359
    %v1361 = vrcp.pop %v1357
    %v1362 = vrcp.pop %v1360
    %v1363 = vmul.f32 %v1352, %v1361
    %v1364 = vmul.f32 %v1354, %v1362
    %v1365 = vpack.c.bf16 %v1364, %v1363
    %v1367 = vsel %vm114, %v1365, 0
    %1369 = vmatprep.subr.bf16.mxu0 0
    %1370 = vmatpush1.bf16.msra.mxu0 0
    %1371 = vmatprep.subr.bf16.mxu0 0
    %1372 = vmatpush1.bf16.msra.mxu0 0
    %1373 = vmatprep.subr.bf16.mxu0 0
    %1374 = vmatpush1.bf16.msra.mxu0 0
    %1375 = vmatprep.subr.bf16.mxu0 0
    %1376 = vmatpush1.bf16.msra.mxu0 0
    %1377 = vmatprep.subr.bf16.mxu0 0
    %1378 = vmatpush1.bf16.msra.mxu0 0
    %1379 = vmatprep.subr.bf16.mxu0 0
    %1380 = vmatpush1.bf16.msra.mxu0 0
    %1381 = vmatprep.subr.bf16.mxu0 0
    %1382 = vmatpush1.bf16.msra.mxu0 %v1292
    %1383 = vmatprep.subr.bf16.mxu0 0
    %1384 = vmatpush1.bf16.msra.mxu0 %v1291
    %1385 = vmatprep.subr.bf16.mxu0 0
    %1386 = vmatpush2.bf16.msra.mxu0 0
    %1387 = vmatprep.subr.bf16.mxu0 0
    %1388 = vmatpush2.bf16.msra.mxu0 0
    %1389 = vmatprep.subr.bf16.mxu0 0
    %1390 = vmatpush2.bf16.msra.mxu0 0
    %1391 = vmatprep.subr.bf16.mxu0 0
    %1392 = vmatpush2.bf16.msra.mxu0 0
    %1393 = vmatprep.subr.bf16.mxu0 0
    %1394 = vmatpush2.bf16.msra.mxu0 0
    %1395 = vmatprep.subr.bf16.mxu0 0
    %1396 = vmatpush2.bf16.msra.mxu0 0
    %1397 = vmatprep.subr.bf16.mxu0 0
    %1398 = vmatpush2.bf16.msra.mxu0 0
    %1399 = vmatprep.subr.bf16.mxu0 0
    %1400 = vmatpush2.bf16.msra.mxu0 0
    %1401 = vmatprep.mubr.bf16.mxu0 0
    %1402 = vmatmul.mubr.bf16.gmra.mxu0 %v1367
    %v1403 = vpop.f32.mrf.mxu0
    %v1404 = vadd.f32 0.0, %v1403
    %v1405 = vpop.f32.mrf.mxu0
    %v1406 = vpop.f32.mrf.mxu0
    %v1407 = vadd.f32 0.0, %v1406
    %v1408 = vpop.f32.mrf.mxu0
    %1409 = vdwg.mxu0
    %s1410 = scalar_lea.vmem %s4, 32
    %v1411 = vld [vmem:[%s1410] sm:$0xff]
    %1413 = vrot.lane.b32.xlu0 %v1288, 120
    %v1414 = vpop.permute.xlu0 %1413
    %1417 = vrot.lane.b32.xlu0 %v1289, 120
    %v1418 = vpop.permute.xlu0 %1417
    %1419 = vrot.lane.b32.xlu0 %v1290, 120
    %v1420 = vpop.permute.xlu0 %1419
    %v1422 = vsel %vm225, %v1414, 0
    %v1425 = vsel %vm225, %v1418, 0
    %v1428 = vsel %vm225, %v1420, 0
    %1430 = vmatprep.subr.bf16.mxu0 0
    %1431 = vmatpush1.bf16.xpose.msra.mxu0 0
    %1432 = vmatprep.subr.bf16.mxu0 0
    %1433 = vmatpush1.bf16.xpose.msra.mxu0 0
    %1434 = vmatprep.subr.bf16.mxu0 0
    %1435 = vmatpush1.bf16.xpose.msra.mxu0 0
    %1436 = vmatprep.subr.bf16.mxu0 0
    %1437 = vmatpush1.bf16.xpose.msra.mxu0 0
    %1438 = vmatprep.subr.bf16.mxu0 0
    %1439 = vmatpush1.bf16.xpose.msra.mxu0 0
    %1440 = vmatprep.subr.bf16.mxu0 0
    %1441 = vmatpush1.bf16.xpose.msra.mxu0 0
    %1442 = vmatprep.subr.bf16.mxu0 0
    %1443 = vmatpush1.bf16.xpose.msra.mxu0 %v1428
    %1444 = vmatprep.subr.bf16.mxu0 0
    %1445 = vmatpush1.bf16.xpose.msra.mxu0 %v1425
    %1446 = vmatprep.subr.bf16.mxu0 0
    %1447 = vmatpush2.bf16.xpose.msra.mxu0 0
    %1448 = vmatprep.subr.bf16.mxu0 0
    %1449 = vmatpush2.bf16.xpose.msra.mxu0 0
    %1450 = vmatprep.subr.bf16.mxu0 0
    %1451 = vmatpush2.bf16.xpose.msra.mxu0 0
    %1452 = vmatprep.subr.bf16.mxu0 0
    %1453 = vmatpush2.bf16.xpose.msra.mxu0 0
    %1454 = vmatprep.subr.bf16.mxu0 0
    %1455 = vmatpush2.bf16.xpose.msra.mxu0 0
    %1456 = vmatprep.subr.bf16.mxu0 0
    %1457 = vmatpush2.bf16.xpose.msra.mxu0 0
    %1458 = vmatprep.subr.bf16.mxu0 0
    %1459 = vmatpush2.bf16.xpose.msra.mxu0 0
    %1460 = vmatprep.subr.bf16.mxu0 0
    %1461 = vmatpush2.bf16.xpose.msra.mxu0 0
    %1462 = vmatprep.mubr.bf16.mxu0 0
    %1463 = vmatmul.mubr.bf16.gmra.mxu0 %v1422
    %v1464 = vpop.f32.mrf.mxu0
    %v1465 = vadd.f32 %v86, %v1464
    %v1466 = vpop.f32.mrf.mxu0
    %v1467 = vpop.f32.mrf.mxu0
    %v1468 = vadd.f32 %v87, %v1467
    %v1469 = vpop.f32.mrf.mxu0
    %1470 = vdwg.mxu0
    %v1471 = vsel %vm114, %v1465, -inf
    %1472 = vmax.xlane.f32.xlu0 %v1471
    %v1473 = vpop.xlane.xlu0 %1472
    %v1474 = vsel %vm114, %v1468, -inf
    %1475 = vmax.xlane.f32.xlu0 %v1474
    %v1476 = vpop.xlane.xlu0 %1475
    %v1477 = vsub.f32 %v1465, %v1473
    %v1478 = vsub.f32 %v1468, %v1476
    %v1479 = vmul.f32 %v1477, 1.442695
    %v1480 = vpow.pop %v1479
    %v1481 = vmul.f32 %v1478, 1.442695
    %v1482 = vpow.pop %v1481
    %v1483 = vsel %vm114, %v1480, 0.0
    %1484 = vadd.xlane.f32.xlu0 %v1483
    %v1485 = vpop.xlane.xlu0 %1484
    %v1486 = vsel %vm114, %v1482, 0.0
    %1487 = vadd.xlane.f32.xlu0 %v1486
    %v1488 = vpop.xlane.xlu0 %1487
    %v1489 = vrcp.pop %v1485
    %v1490 = vrcp.pop %v1488
    %v1491 = vmul.f32 %v1480, %v1489
    %v1492 = vmul.f32 %v1482, %v1490
    %v1493 = vpack.c.bf16 %v1492, %v1491
    %1496 = vrot.lane.b32.xlu0 %v1291, 120
    %v1497 = vpop.permute.xlu0 %1496
    %1498 = vrot.lane.b32.xlu0 %v1292, 120
    %v1499 = vpop.permute.xlu0 %1498
    %v1503 = vsel %vm114, %v1493, 0
    %1505 = vmatprep.subr.bf16.mxu0 0
    %1506 = vmatpush1.bf16.msra.mxu0 0
    %1507 = vmatprep.subr.bf16.mxu0 0
    %1508 = vmatpush1.bf16.msra.mxu0 0
    %1509 = vmatprep.subr.bf16.mxu0 0
    %1510 = vmatpush1.bf16.msra.mxu0 0
    %1511 = vmatprep.subr.bf16.mxu0 0
    %1512 = vmatpush1.bf16.msra.mxu0 0
    %1513 = vmatprep.subr.bf16.mxu0 0
    %1514 = vmatpush1.bf16.msra.mxu0 0
    %1515 = vmatprep.subr.bf16.mxu0 0
    %1516 = vmatpush1.bf16.msra.mxu0 0
    %1517 = vmatprep.subr.bf16.mxu0 0
    %1518 = vmatpush1.bf16.msra.mxu0 %v1499
    %1519 = vmatprep.subr.bf16.mxu0 0
    %1520 = vmatpush1.bf16.msra.mxu0 %v1497
    %1521 = vmatprep.subr.bf16.mxu0 0
    %1522 = vmatpush2.bf16.msra.mxu0 0
    %1523 = vmatprep.subr.bf16.mxu0 0
    %1524 = vmatpush2.bf16.msra.mxu0 0
    %1525 = vmatprep.subr.bf16.mxu0 0
    %1526 = vmatpush2.bf16.msra.mxu0 0
    %1527 = vmatprep.subr.bf16.mxu0 0
    %1528 = vmatpush2.bf16.msra.mxu0 0
    %1529 = vmatprep.subr.bf16.mxu0 0
    %1530 = vmatpush2.bf16.msra.mxu0 0
    %1531 = vmatprep.subr.bf16.mxu0 0
    %1532 = vmatpush2.bf16.msra.mxu0 0
    %1533 = vmatprep.subr.bf16.mxu0 0
    %1534 = vmatpush2.bf16.msra.mxu0 0
    %1535 = vmatprep.subr.bf16.mxu0 0
    %1536 = vmatpush2.bf16.msra.mxu0 0
    %1537 = vmatprep.mubr.bf16.mxu0 0
    %1538 = vmatmul.mubr.bf16.gmra.mxu0 %v1503
    %v1539 = vpop.f32.mrf.mxu0
    %v1540 = vadd.f32 0.0, %v1539
    %v1541 = vpop.f32.mrf.mxu0
    %v1542 = vpop.f32.mrf.mxu0
    %v1543 = vadd.f32 0.0, %v1542
    %v1544 = vpop.f32.mrf.mxu0
    %1545 = vdwg.mxu0
    %s1546 = scalar_lea.vmem %s4, 40
    %v1547 = vld [vmem:[%s1546] sm:$0xff]
    %v1549 = vsel %vm225, %v1540, 0
    %v1552 = vsel %vm225, %v1543, 0
    %1554 = vmatprep.subr.mxu0 0.0
    %1555 = vmatpush1.msra.mxu0 0.0
    %1556 = vmatprep.subr.mxu0 0.0
    %1557 = vmatpush1.msra.mxu0 0.0
    %1558 = vmatprep.subr.mxu0 0.0
    %1559 = vmatpush1.msra.mxu0 0.0
    %1560 = vmatprep.subr.mxu0 0.0
    %1561 = vmatpush1.msra.mxu0 0.0
    %1562 = vmatprep.subr.mxu0 0.0
    %1563 = vmatpush1.msra.mxu0 0.0
    %1564 = vmatprep.subr.mxu0 0.0
    %1565 = vmatpush1.msra.mxu0 0.0
    %1566 = vmatprep.subr.mxu0 0.0
    %1567 = vmatpush1.msra.mxu0 0.0
    %1568 = vmatprep.subr.mxu0 0.0
    %1569 = vmatpush1.msra.mxu0 0.0
    %1570 = vmatprep.subr.mxu0 0.0
    %1571 = vmatpush1.msra.mxu0 0.0
    %1572 = vmatprep.subr.mxu0 0.0
    %1573 = vmatpush1.msra.mxu0 0.0
    %1574 = vmatprep.subr.mxu0 0.0
    %1575 = vmatpush1.msra.mxu0 0.0
    %1576 = vmatprep.subr.mxu0 0.0
    %1577 = vmatpush1.msra.mxu0 0.0
    %1578 = vmatprep.subr.mxu0 0.0
    %1579 = vmatpush1.msra.mxu0 0.0
    %1580 = vmatprep.subr.mxu0 0.0
    %1581 = vmatpush1.msra.mxu0 0.0
    %1582 = vmatprep.subr.mxu0 0.0
    %1583 = vmatpush1.msra.mxu0 0.0
    %1584 = vmatprep.subr.mxu0 0.0
    %1585 = vmatpush1.msra.mxu0 %v1547
    %1586 = vmatprep.subr.mxu0 0.0
    %1587 = vmatpush2.msra.mxu0 0.0
    %1588 = vmatprep.subr.mxu0 0.0
    %1589 = vmatpush2.msra.mxu0 0.0
    %1590 = vmatprep.subr.mxu0 0.0
    %1591 = vmatpush2.msra.mxu0 0.0
    %1592 = vmatprep.subr.mxu0 0.0
    %1593 = vmatpush2.msra.mxu0 0.0
    %1594 = vmatprep.subr.mxu0 0.0
    %1595 = vmatpush2.msra.mxu0 0.0
    %1596 = vmatprep.subr.mxu0 0.0
    %1597 = vmatpush2.msra.mxu0 0.0
    %1598 = vmatprep.subr.mxu0 0.0
    %1599 = vmatpush2.msra.mxu0 0.0
    %1600 = vmatprep.subr.mxu0 0.0
    %1601 = vmatpush2.msra.mxu0 0.0
    %1602 = vmatprep.subr.mxu0 0.0
    %1603 = vmatpush2.msra.mxu0 0.0
    %1604 = vmatprep.subr.mxu0 0.0
    %1605 = vmatpush2.msra.mxu0 0.0
    %1606 = vmatprep.subr.mxu0 0.0
    %1607 = vmatpush2.msra.mxu0 0.0
    %1608 = vmatprep.subr.mxu0 0.0
    %1609 = vmatpush2.msra.mxu0 0.0
    %1610 = vmatprep.subr.mxu0 0.0
    %1611 = vmatpush2.msra.mxu0 0.0
    %1612 = vmatprep.subr.mxu0 0.0
    %1613 = vmatpush2.msra.mxu0 0.0
    %1614 = vmatprep.subr.mxu0 0.0
    %1615 = vmatpush2.msra.mxu0 0.0
    %1616 = vmatprep.subr.mxu0 0.0
    %1617 = vmatpush2.msra.mxu0 0.0
    %1618 = vmatprep.mubr.f32.mxu0 0.0
    %1619 = vmatmul.mubr.f32.gmra.mxu0 %v1549
    %v1620 = vpop.f32.mrf.mxu0
    %v1621 = vadd.f32 0.0, %v1620
    %v1622 = vpop.f32.mrf.mxu0
    %1623 = vmatprep.mubr.f32.mxu0 0.0
    %1624 = vmatmul.mubr.f32.gmra.mxu0 %v1552
    %v1625 = vpop.f32.mrf.mxu0
    %v1626 = vadd.f32 0.0, %v1625
    %v1627 = vpop.f32.mrf.mxu0
    %1628 = vdwg.mxu0
    %v1630 = vsel %vm225, %v1404, 0
    %v1633 = vsel %vm225, %v1407, 0
    %1635 = vmatprep.subr.mxu0 0.0
    %1636 = vmatpush1.msra.mxu0 0.0
    %1637 = vmatprep.subr.mxu0 0.0
    %1638 = vmatpush1.msra.mxu0 0.0
    %1639 = vmatprep.subr.mxu0 0.0
    %1640 = vmatpush1.msra.mxu0 0.0
    %1641 = vmatprep.subr.mxu0 0.0
    %1642 = vmatpush1.msra.mxu0 0.0
    %1643 = vmatprep.subr.mxu0 0.0
    %1644 = vmatpush1.msra.mxu0 0.0
    %1645 = vmatprep.subr.mxu0 0.0
    %1646 = vmatpush1.msra.mxu0 0.0
    %1647 = vmatprep.subr.mxu0 0.0
    %1648 = vmatpush1.msra.mxu0 0.0
    %1649 = vmatprep.subr.mxu0 0.0
    %1650 = vmatpush1.msra.mxu0 0.0
    %1651 = vmatprep.subr.mxu0 0.0
    %1652 = vmatpush1.msra.mxu0 0.0
    %1653 = vmatprep.subr.mxu0 0.0
    %1654 = vmatpush1.msra.mxu0 0.0
    %1655 = vmatprep.subr.mxu0 0.0
    %1656 = vmatpush1.msra.mxu0 0.0
    %1657 = vmatprep.subr.mxu0 0.0
    %1658 = vmatpush1.msra.mxu0 0.0
    %1659 = vmatprep.subr.mxu0 0.0
    %1660 = vmatpush1.msra.mxu0 0.0
    %1661 = vmatprep.subr.mxu0 0.0
    %1662 = vmatpush1.msra.mxu0 0.0
    %1663 = vmatprep.subr.mxu0 0.0
    %1664 = vmatpush1.msra.mxu0 0.0
    %1665 = vmatprep.subr.mxu0 0.0
    %1666 = vmatpush1.msra.mxu0 %v1411
    %1667 = vmatprep.subr.mxu0 0.0
    %1668 = vmatpush2.msra.mxu0 0.0
    %1669 = vmatprep.subr.mxu0 0.0
    %1670 = vmatpush2.msra.mxu0 0.0
    %1671 = vmatprep.subr.mxu0 0.0
    %1672 = vmatpush2.msra.mxu0 0.0
    %1673 = vmatprep.subr.mxu0 0.0
    %1674 = vmatpush2.msra.mxu0 0.0
    %1675 = vmatprep.subr.mxu0 0.0
    %1676 = vmatpush2.msra.mxu0 0.0
    %1677 = vmatprep.subr.mxu0 0.0
    %1678 = vmatpush2.msra.mxu0 0.0
    %1679 = vmatprep.subr.mxu0 0.0
    %1680 = vmatpush2.msra.mxu0 0.0
    %1681 = vmatprep.subr.mxu0 0.0
    %1682 = vmatpush2.msra.mxu0 0.0
    %1683 = vmatprep.subr.mxu0 0.0
    %1684 = vmatpush2.msra.mxu0 0.0
    %1685 = vmatprep.subr.mxu0 0.0
    %1686 = vmatpush2.msra.mxu0 0.0
    %1687 = vmatprep.subr.mxu0 0.0
    %1688 = vmatpush2.msra.mxu0 0.0
    %1689 = vmatprep.subr.mxu0 0.0
    %1690 = vmatpush2.msra.mxu0 0.0
    %1691 = vmatprep.subr.mxu0 0.0
    %1692 = vmatpush2.msra.mxu0 0.0
    %1693 = vmatprep.subr.mxu0 0.0
    %1694 = vmatpush2.msra.mxu0 0.0
    %1695 = vmatprep.subr.mxu0 0.0
    %1696 = vmatpush2.msra.mxu0 0.0
    %1697 = vmatprep.subr.mxu0 0.0
    %1698 = vmatpush2.msra.mxu0 0.0
    %1699 = vmatprep.mubr.f32.mxu0 0.0
    %1700 = vmatmul.mubr.f32.gmra.mxu0 %v1630
    %v1701 = vpop.f32.mrf.mxu0
    %v1702 = vadd.f32 %v1621, %v1701
    %v1703 = vpop.f32.mrf.mxu0
    %1704 = vmatprep.mubr.f32.mxu0 0.0
    %1705 = vmatmul.mubr.f32.gmra.mxu0 %v1633
    %v1706 = vpop.f32.mrf.mxu0
    %v1707 = vadd.f32 %v1626, %v1706
    %v1708 = vpop.f32.mrf.mxu0
    %1709 = vdwg.mxu0
    %1710 = vrot.lane.b32.xlu0 %v1288, 112
    %v1711 = vpop.permute.xlu0 %1710
    %1712 = vrot.lane.b32.xlu0 %v1289, 112
    %v1713 = vpop.permute.xlu0 %1712
    %1714 = vrot.lane.b32.xlu0 %v1290, 112
    %v1715 = vpop.permute.xlu0 %1714
    %v1717 = vsel %vm225, %v1711, 0
    %v1720 = vsel %vm225, %v1713, 0
    %v1723 = vsel %vm225, %v1715, 0
    %1725 = vmatprep.subr.bf16.mxu0 0
    %1726 = vmatpush1.bf16.xpose.msra.mxu0 0
    %1727 = vmatprep.subr.bf16.mxu0 0
    %1728 = vmatpush1.bf16.xpose.msra.mxu0 0
    %1729 = vmatprep.subr.bf16.mxu0 0
    %1730 = vmatpush1.bf16.xpose.msra.mxu0 0
    %1731 = vmatprep.subr.bf16.mxu0 0
    %1732 = vmatpush1.bf16.xpose.msra.mxu0 0
    %1733 = vmatprep.subr.bf16.mxu0 0
    %1734 = vmatpush1.bf16.xpose.msra.mxu0 0
    %1735 = vmatprep.subr.bf16.mxu0 0
    %1736 = vmatpush1.bf16.xpose.msra.mxu0 0
    %1737 = vmatprep.subr.bf16.mxu0 0
    %1738 = vmatpush1.bf16.xpose.msra.mxu0 %v1723
    %1739 = vmatprep.subr.bf16.mxu0 0
    %1740 = vmatpush1.bf16.xpose.msra.mxu0 %v1720
    %1741 = vmatprep.subr.bf16.mxu0 0
    %1742 = vmatpush2.bf16.xpose.msra.mxu0 0
    %1743 = vmatprep.subr.bf16.mxu0 0
    %1744 = vmatpush2.bf16.xpose.msra.mxu0 0
    %1745 = vmatprep.subr.bf16.mxu0 0
    %1746 = vmatpush2.bf16.xpose.msra.mxu0 0
    %1747 = vmatprep.subr.bf16.mxu0 0
    %1748 = vmatpush2.bf16.xpose.msra.mxu0 0
    %1749 = vmatprep.subr.bf16.mxu0 0
    %1750 = vmatpush2.bf16.xpose.msra.mxu0 0
    %1751 = vmatprep.subr.bf16.mxu0 0
    %1752 = vmatpush2.bf16.xpose.msra.mxu0 0
    %1753 = vmatprep.subr.bf16.mxu0 0
    %1754 = vmatpush2.bf16.xpose.msra.mxu0 0
    %1755 = vmatprep.subr.bf16.mxu0 0
    %1756 = vmatpush2.bf16.xpose.msra.mxu0 0
    %1757 = vmatprep.mubr.bf16.mxu0 0
    %1758 = vmatmul.mubr.bf16.gmra.mxu0 %v1717
    %v1759 = vpop.f32.mrf.mxu0
    %v1760 = vadd.f32 %v86, %v1759
    %v1761 = vpop.f32.mrf.mxu0
    %v1762 = vpop.f32.mrf.mxu0
    %v1763 = vadd.f32 %v87, %v1762
    %v1764 = vpop.f32.mrf.mxu0
    %1765 = vdwg.mxu0
    %v1766 = vsel %vm114, %v1760, -inf
    %1767 = vmax.xlane.f32.xlu0 %v1766
    %v1768 = vpop.xlane.xlu0 %1767
    %v1769 = vsel %vm114, %v1763, -inf
    %1770 = vmax.xlane.f32.xlu0 %v1769
    %v1771 = vpop.xlane.xlu0 %1770
    %v1772 = vsub.f32 %v1760, %v1768
    %v1773 = vsub.f32 %v1763, %v1771
    %v1774 = vmul.f32 %v1772, 1.442695
    %v1775 = vpow.pop %v1774
    %v1776 = vmul.f32 %v1773, 1.442695
    %v1777 = vpow.pop %v1776
    %v1778 = vsel %vm114, %v1775, 0.0
    %1779 = vadd.xlane.f32.xlu0 %v1778
    %v1780 = vpop.xlane.xlu0 %1779
    %v1781 = vsel %vm114, %v1777, 0.0
    %1782 = vadd.xlane.f32.xlu0 %v1781
    %v1783 = vpop.xlane.xlu0 %1782
    %v1784 = vrcp.pop %v1780
    %v1785 = vrcp.pop %v1783
    %v1786 = vmul.f32 %v1775, %v1784
    %v1787 = vmul.f32 %v1777, %v1785
    %v1788 = vpack.c.bf16 %v1787, %v1786
    %1789 = vrot.lane.b32.xlu0 %v1291, 112
    %v1790 = vpop.permute.xlu0 %1789
    %1791 = vrot.lane.b32.xlu0 %v1292, 112
    %v1792 = vpop.permute.xlu0 %1791
    %v1796 = vsel %vm114, %v1788, 0
    %1798 = vmatprep.subr.bf16.mxu0 0
    %1799 = vmatpush1.bf16.msra.mxu0 0
    %1800 = vmatprep.subr.bf16.mxu0 0
    %1801 = vmatpush1.bf16.msra.mxu0 0
    %1802 = vmatprep.subr.bf16.mxu0 0
    %1803 = vmatpush1.bf16.msra.mxu0 0
    %1804 = vmatprep.subr.bf16.mxu0 0
    %1805 = vmatpush1.bf16.msra.mxu0 0
    %1806 = vmatprep.subr.bf16.mxu0 0
    %1807 = vmatpush1.bf16.msra.mxu0 0
    %1808 = vmatprep.subr.bf16.mxu0 0
    %1809 = vmatpush1.bf16.msra.mxu0 0
    %1810 = vmatprep.subr.bf16.mxu0 0
    %1811 = vmatpush1.bf16.msra.mxu0 %v1792
    %1812 = vmatprep.subr.bf16.mxu0 0
    %1813 = vmatpush1.bf16.msra.mxu0 %v1790
    %1814 = vmatprep.subr.bf16.mxu0 0
    %1815 = vmatpush2.bf16.msra.mxu0 0
    %1816 = vmatprep.subr.bf16.mxu0 0
    %1817 = vmatpush2.bf16.msra.mxu0 0
    %1818 = vmatprep.subr.bf16.mxu0 0
    %1819 = vmatpush2.bf16.msra.mxu0 0
    %1820 = vmatprep.subr.bf16.mxu0 0
    %1821 = vmatpush2.bf16.msra.mxu0 0
    %1822 = vmatprep.subr.bf16.mxu0 0
    %1823 = vmatpush2.bf16.msra.mxu0 0
    %1824 = vmatprep.subr.bf16.mxu0 0
    %1825 = vmatpush2.bf16.msra.mxu0 0
    %1826 = vmatprep.subr.bf16.mxu0 0
    %1827 = vmatpush2.bf16.msra.mxu0 0
    %1828 = vmatprep.subr.bf16.mxu0 0
    %1829 = vmatpush2.bf16.msra.mxu0 0
    %1830 = vmatprep.mubr.bf16.mxu0 0
    %1831 = vmatmul.mubr.bf16.gmra.mxu0 %v1796
    %v1832 = vpop.f32.mrf.mxu0
    %v1833 = vadd.f32 0.0, %v1832
    %v1834 = vpop.f32.mrf.mxu0
    %v1835 = vpop.f32.mrf.mxu0
    %v1836 = vadd.f32 0.0, %v1835
    %v1837 = vpop.f32.mrf.mxu0
    %1838 = vdwg.mxu0
    %s1839 = scalar_lea.vmem %s4, 48
    %v1840 = vld [vmem:[%s1839] sm:$0xff]
    %v1842 = vsel %vm225, %v1833, 0
    %v1845 = vsel %vm225, %v1836, 0
    %1847 = vmatprep.subr.mxu0 0.0
    %1848 = vmatpush1.msra.mxu0 0.0
    %1849 = vmatprep.subr.mxu0 0.0
    %1850 = vmatpush1.msra.mxu0 0.0
    %1851 = vmatprep.subr.mxu0 0.0
    %1852 = vmatpush1.msra.mxu0 0.0
    %1853 = vmatprep.subr.mxu0 0.0
    %1854 = vmatpush1.msra.mxu0 0.0
    %1855 = vmatprep.subr.mxu0 0.0
    %1856 = vmatpush1.msra.mxu0 0.0
    %1857 = vmatprep.subr.mxu0 0.0
    %1858 = vmatpush1.msra.mxu0 0.0
    %1859 = vmatprep.subr.mxu0 0.0
    %1860 = vmatpush1.msra.mxu0 0.0
    %1861 = vmatprep.subr.mxu0 0.0
    %1862 = vmatpush1.msra.mxu0 0.0
    %1863 = vmatprep.subr.mxu0 0.0
    %1864 = vmatpush1.msra.mxu0 0.0
    %1865 = vmatprep.subr.mxu0 0.0
    %1866 = vmatpush1.msra.mxu0 0.0
    %1867 = vmatprep.subr.mxu0 0.0
    %1868 = vmatpush1.msra.mxu0 0.0
    %1869 = vmatprep.subr.mxu0 0.0
    %1870 = vmatpush1.msra.mxu0 0.0
    %1871 = vmatprep.subr.mxu0 0.0
    %1872 = vmatpush1.msra.mxu0 0.0
    %1873 = vmatprep.subr.mxu0 0.0
    %1874 = vmatpush1.msra.mxu0 0.0
    %1875 = vmatprep.subr.mxu0 0.0
    %1876 = vmatpush1.msra.mxu0 0.0
    %1877 = vmatprep.subr.mxu0 0.0
    %1878 = vmatpush1.msra.mxu0 %v1840
    %1879 = vmatprep.subr.mxu0 0.0
    %1880 = vmatpush2.msra.mxu0 0.0
    %1881 = vmatprep.subr.mxu0 0.0
    %1882 = vmatpush2.msra.mxu0 0.0
    %1883 = vmatprep.subr.mxu0 0.0
    %1884 = vmatpush2.msra.mxu0 0.0
    %1885 = vmatprep.subr.mxu0 0.0
    %1886 = vmatpush2.msra.mxu0 0.0
    %1887 = vmatprep.subr.mxu0 0.0
    %1888 = vmatpush2.msra.mxu0 0.0
    %1889 = vmatprep.subr.mxu0 0.0
    %1890 = vmatpush2.msra.mxu0 0.0
    %1891 = vmatprep.subr.mxu0 0.0
    %1892 = vmatpush2.msra.mxu0 0.0
    %1893 = vmatprep.subr.mxu0 0.0
    %1894 = vmatpush2.msra.mxu0 0.0
    %1895 = vmatprep.subr.mxu0 0.0
    %1896 = vmatpush2.msra.mxu0 0.0
    %1897 = vmatprep.subr.mxu0 0.0
    %1898 = vmatpush2.msra.mxu0 0.0
    %1899 = vmatprep.subr.mxu0 0.0
    %1900 = vmatpush2.msra.mxu0 0.0
    %1901 = vmatprep.subr.mxu0 0.0
    %1902 = vmatpush2.msra.mxu0 0.0
    %1903 = vmatprep.subr.mxu0 0.0
    %1904 = vmatpush2.msra.mxu0 0.0
    %1905 = vmatprep.subr.mxu0 0.0
    %1906 = vmatpush2.msra.mxu0 0.0
    %1907 = vmatprep.subr.mxu0 0.0
    %1908 = vmatpush2.msra.mxu0 0.0
    %1909 = vmatprep.subr.mxu0 0.0
    %1910 = vmatpush2.msra.mxu0 0.0
    %1911 = vmatprep.mubr.f32.mxu0 0.0
    %1912 = vmatmul.mubr.f32.gmra.mxu0 %v1842
    %v1913 = vpop.f32.mrf.mxu0
    %v1914 = vadd.f32 0.0, %v1913
    %v1915 = vpop.f32.mrf.mxu0
    %1916 = vmatprep.mubr.f32.mxu0 0.0
    %1917 = vmatmul.mubr.f32.gmra.mxu0 %v1845
    %v1918 = vpop.f32.mrf.mxu0
    %v1919 = vadd.f32 0.0, %v1918
    %v1920 = vpop.f32.mrf.mxu0
    %1921 = vdwg.mxu0
    %v1922 = vadd.f32 %v1702, %v1914
    %v1923 = vadd.f32 %v1707, %v1919
    %1924 = vrot.lane.b32.xlu0 %v1288, 104
    %v1925 = vpop.permute.xlu0 %1924
    %1926 = vrot.lane.b32.xlu0 %v1289, 104
    %v1927 = vpop.permute.xlu0 %1926
    %1928 = vrot.lane.b32.xlu0 %v1290, 104
    %v1929 = vpop.permute.xlu0 %1928
    %v1931 = vsel %vm225, %v1925, 0
    %v1934 = vsel %vm225, %v1927, 0
    %v1937 = vsel %vm225, %v1929, 0
    %1939 = vmatprep.subr.bf16.mxu0 0
    %1940 = vmatpush1.bf16.xpose.msra.mxu0 0
    %1941 = vmatprep.subr.bf16.mxu0 0
    %1942 = vmatpush1.bf16.xpose.msra.mxu0 0
    %1943 = vmatprep.subr.bf16.mxu0 0
    %1944 = vmatpush1.bf16.xpose.msra.mxu0 0
    %1945 = vmatprep.subr.bf16.mxu0 0
    %1946 = vmatpush1.bf16.xpose.msra.mxu0 0
    %1947 = vmatprep.subr.bf16.mxu0 0
    %1948 = vmatpush1.bf16.xpose.msra.mxu0 0
    %1949 = vmatprep.subr.bf16.mxu0 0
    %1950 = vmatpush1.bf16.xpose.msra.mxu0 0
    %1951 = vmatprep.subr.bf16.mxu0 0
    %1952 = vmatpush1.bf16.xpose.msra.mxu0 %v1937
    %1953 = vmatprep.subr.bf16.mxu0 0
    %1954 = vmatpush1.bf16.xpose.msra.mxu0 %v1934
    %1955 = vmatprep.subr.bf16.mxu0 0
    %1956 = vmatpush2.bf16.xpose.msra.mxu0 0
    %1957 = vmatprep.subr.bf16.mxu0 0
    %1958 = vmatpush2.bf16.xpose.msra.mxu0 0
    %1959 = vmatprep.subr.bf16.mxu0 0
    %1960 = vmatpush2.bf16.xpose.msra.mxu0 0
    %1961 = vmatprep.subr.bf16.mxu0 0
    %1962 = vmatpush2.bf16.xpose.msra.mxu0 0
    %1963 = vmatprep.subr.bf16.mxu0 0
    %1964 = vmatpush2.bf16.xpose.msra.mxu0 0
    %1965 = vmatprep.subr.bf16.mxu0 0
    %1966 = vmatpush2.bf16.xpose.msra.mxu0 0
    %1967 = vmatprep.subr.bf16.mxu0 0
    %1968 = vmatpush2.bf16.xpose.msra.mxu0 0
    %1969 = vmatprep.subr.bf16.mxu0 0
    %1970 = vmatpush2.bf16.xpose.msra.mxu0 0
    %1971 = vmatprep.mubr.bf16.mxu0 0
    %1972 = vmatmul.mubr.bf16.gmra.mxu0 %v1931
    %v1973 = vpop.f32.mrf.mxu0
    %v1974 = vadd.f32 %v86, %v1973
    %v1975 = vpop.f32.mrf.mxu0
    %v1976 = vpop.f32.mrf.mxu0
    %v1977 = vadd.f32 %v87, %v1976
    %v1978 = vpop.f32.mrf.mxu0
    %1979 = vdwg.mxu0
    %v1980 = vsel %vm114, %v1974, -inf
    %1981 = vmax.xlane.f32.xlu0 %v1980
    %v1982 = vpop.xlane.xlu0 %1981
    %v1983 = vsel %vm114, %v1977, -inf
    %1984 = vmax.xlane.f32.xlu0 %v1983
    %v1985 = vpop.xlane.xlu0 %1984
    %v1986 = vsub.f32 %v1974, %v1982
    %v1987 = vsub.f32 %v1977, %v1985
    %v1988 = vmul.f32 %v1986, 1.442695
    %v1989 = vpow.pop %v1988
    %v1990 = vmul.f32 %v1987, 1.442695
    %v1991 = vpow.pop %v1990
    %v1992 = vsel %vm114, %v1989, 0.0
    %1993 = vadd.xlane.f32.xlu0 %v1992
    %v1994 = vpop.xlane.xlu0 %1993
    %v1995 = vsel %vm114, %v1991, 0.0
    %1996 = vadd.xlane.f32.xlu0 %v1995
    %v1997 = vpop.xlane.xlu0 %1996
    %v1998 = vrcp.pop %v1994
    %v1999 = vrcp.pop %v1997
    %v2000 = vmul.f32 %v1989, %v1998
    %v2001 = vmul.f32 %v1991, %v1999
    %v2002 = vpack.c.bf16 %v2001, %v2000
    %2003 = vrot.lane.b32.xlu0 %v1291, 104
    %v2004 = vpop.permute.xlu0 %2003
    %2005 = vrot.lane.b32.xlu0 %v1292, 104
    %v2006 = vpop.permute.xlu0 %2005
    %v2010 = vsel %vm114, %v2002, 0
    %2012 = vmatprep.subr.bf16.mxu0 0
    %2013 = vmatpush1.bf16.msra.mxu0 0
    %2014 = vmatprep.subr.bf16.mxu0 0
    %2015 = vmatpush1.bf16.msra.mxu0 0
    %2016 = vmatprep.subr.bf16.mxu0 0
    %2017 = vmatpush1.bf16.msra.mxu0 0
    %2018 = vmatprep.subr.bf16.mxu0 0
    %2019 = vmatpush1.bf16.msra.mxu0 0
    %2020 = vmatprep.subr.bf16.mxu0 0
    %2021 = vmatpush1.bf16.msra.mxu0 0
    %2022 = vmatprep.subr.bf16.mxu0 0
    %2023 = vmatpush1.bf16.msra.mxu0 0
    %2024 = vmatprep.subr.bf16.mxu0 0
    %2025 = vmatpush1.bf16.msra.mxu0 %v2006
    %2026 = vmatprep.subr.bf16.mxu0 0
    %2027 = vmatpush1.bf16.msra.mxu0 %v2004
    %2028 = vmatprep.subr.bf16.mxu0 0
    %2029 = vmatpush2.bf16.msra.mxu0 0
    %2030 = vmatprep.subr.bf16.mxu0 0
    %2031 = vmatpush2.bf16.msra.mxu0 0
    %2032 = vmatprep.subr.bf16.mxu0 0
    %2033 = vmatpush2.bf16.msra.mxu0 0
    %2034 = vmatprep.subr.bf16.mxu0 0
    %2035 = vmatpush2.bf16.msra.mxu0 0
    %2036 = vmatprep.subr.bf16.mxu0 0
    %2037 = vmatpush2.bf16.msra.mxu0 0
    %2038 = vmatprep.subr.bf16.mxu0 0
    %2039 = vmatpush2.bf16.msra.mxu0 0
    %2040 = vmatprep.subr.bf16.mxu0 0
    %2041 = vmatpush2.bf16.msra.mxu0 0
    %2042 = vmatprep.subr.bf16.mxu0 0
    %2043 = vmatpush2.bf16.msra.mxu0 0
    %2044 = vmatprep.mubr.bf16.mxu0 0
    %2045 = vmatmul.mubr.bf16.gmra.mxu0 %v2010
    %v2046 = vpop.f32.mrf.mxu0
    %v2047 = vadd.f32 0.0, %v2046
    %v2048 = vpop.f32.mrf.mxu0
    %v2049 = vpop.f32.mrf.mxu0
    %v2050 = vadd.f32 0.0, %v2049
    %v2051 = vpop.f32.mrf.mxu0
    %2052 = vdwg.mxu0
    %s2053 = scalar_lea.vmem %s4, 56
    %v2054 = vld [vmem:[%s2053] sm:$0xff]
    %v2056 = vsel %vm225, %v2047, 0
    %v2059 = vsel %vm225, %v2050, 0
    %2061 = vmatprep.subr.mxu0 0.0
    %2062 = vmatpush1.msra.mxu0 0.0
    %2063 = vmatprep.subr.mxu0 0.0
    %2064 = vmatpush1.msra.mxu0 0.0
    %2065 = vmatprep.subr.mxu0 0.0
    %2066 = vmatpush1.msra.mxu0 0.0
    %2067 = vmatprep.subr.mxu0 0.0
    %2068 = vmatpush1.msra.mxu0 0.0
    %2069 = vmatprep.subr.mxu0 0.0
    %2070 = vmatpush1.msra.mxu0 0.0
    %2071 = vmatprep.subr.mxu0 0.0
    %2072 = vmatpush1.msra.mxu0 0.0
    %2073 = vmatprep.subr.mxu0 0.0
    %2074 = vmatpush1.msra.mxu0 0.0
    %2075 = vmatprep.subr.mxu0 0.0
    %2076 = vmatpush1.msra.mxu0 0.0
    %2077 = vmatprep.subr.mxu0 0.0
    %2078 = vmatpush1.msra.mxu0 0.0
    %2079 = vmatprep.subr.mxu0 0.0
    %2080 = vmatpush1.msra.mxu0 0.0
    %2081 = vmatprep.subr.mxu0 0.0
    %2082 = vmatpush1.msra.mxu0 0.0
    %2083 = vmatprep.subr.mxu0 0.0
    %2084 = vmatpush1.msra.mxu0 0.0
    %2085 = vmatprep.subr.mxu0 0.0
    %2086 = vmatpush1.msra.mxu0 0.0
    %2087 = vmatprep.subr.mxu0 0.0
    %2088 = vmatpush1.msra.mxu0 0.0
    %2089 = vmatprep.subr.mxu0 0.0
    %2090 = vmatpush1.msra.mxu0 0.0
    %2091 = vmatprep.subr.mxu0 0.0
    %2092 = vmatpush1.msra.mxu0 %v2054
    %2093 = vmatprep.subr.mxu0 0.0
    %2094 = vmatpush2.msra.mxu0 0.0
    %2095 = vmatprep.subr.mxu0 0.0
    %2096 = vmatpush2.msra.mxu0 0.0
    %2097 = vmatprep.subr.mxu0 0.0
    %2098 = vmatpush2.msra.mxu0 0.0
    %2099 = vmatprep.subr.mxu0 0.0
    %2100 = vmatpush2.msra.mxu0 0.0
    %2101 = vmatprep.subr.mxu0 0.0
    %2102 = vmatpush2.msra.mxu0 0.0
    %2103 = vmatprep.subr.mxu0 0.0
    %2104 = vmatpush2.msra.mxu0 0.0
    %2105 = vmatprep.subr.mxu0 0.0
    %2106 = vmatpush2.msra.mxu0 0.0
    %2107 = vmatprep.subr.mxu0 0.0
    %2108 = vmatpush2.msra.mxu0 0.0
    %2109 = vmatprep.subr.mxu0 0.0
    %2110 = vmatpush2.msra.mxu0 0.0
    %2111 = vmatprep.subr.mxu0 0.0
    %2112 = vmatpush2.msra.mxu0 0.0
    %2113 = vmatprep.subr.mxu0 0.0
    %2114 = vmatpush2.msra.mxu0 0.0
    %2115 = vmatprep.subr.mxu0 0.0
    %2116 = vmatpush2.msra.mxu0 0.0
    %2117 = vmatprep.subr.mxu0 0.0
    %2118 = vmatpush2.msra.mxu0 0.0
    %2119 = vmatprep.subr.mxu0 0.0
    %2120 = vmatpush2.msra.mxu0 0.0
    %2121 = vmatprep.subr.mxu0 0.0
    %2122 = vmatpush2.msra.mxu0 0.0
    %2123 = vmatprep.subr.mxu0 0.0
    %2124 = vmatpush2.msra.mxu0 0.0
    %2125 = vmatprep.mubr.f32.mxu0 0.0
    %2126 = vmatmul.mubr.f32.gmra.mxu0 %v2056
    %v2127 = vpop.f32.mrf.mxu0
    %v2128 = vadd.f32 0.0, %v2127
    %v2129 = vpop.f32.mrf.mxu0
    %2130 = vmatprep.mubr.f32.mxu0 0.0
    %2131 = vmatmul.mubr.f32.gmra.mxu0 %v2059
    %v2132 = vpop.f32.mrf.mxu0
    %v2133 = vadd.f32 0.0, %v2132
    %v2134 = vpop.f32.mrf.mxu0
    %2135 = vdwg.mxu0
    %v2136 = vadd.f32 %v1922, %v2128
    %v2137 = vadd.f32 %v1923, %v2133
    %v2138 = vlaneseq
    %v2139 = vshrl.u32 %v2138, 7
    %v2140 = vsub.s32 3, %v2139
    %v2141 = vrot.slane %v92, %v2140
    %v2142 = vadd.f32 %v2136, %v2141
    %v2143 = vadd.f32 %v2137, %v2141
    %v2144 = vadd.f32 %v1092, %v2142
    %v2145 = vadd.f32 %v1093, %v2143
    %v2146 = vsel %vm114, %v2144, 0.0
    %2147 = vadd.xlane.f32.xlu0 %v2146
    %v2148 = vpop.xlane.xlu0 %2147
    %v2149 = vsel %vm114, %v2145, 0.0
    %2150 = vadd.xlane.f32.xlu0 %v2149
    %v2151 = vpop.xlane.xlu0 %2150
    %v2152 = vmul.f32 %v2148, %v1055
    %v2153 = vmul.f32 %v2151, %v1055
    %v2154 = vmul.f32 %v2144, %v2144
    %v2155 = vmul.f32 %v2145, %v2145
    %v2156 = vsel %vm114, %v2154, 0.0
    %2157 = vadd.xlane.f32.xlu0 %v2156
    %v2158 = vpop.xlane.xlu0 %2157
    %v2159 = vsel %vm114, %v2155, 0.0
    %2160 = vadd.xlane.f32.xlu0 %v2159
    %v2161 = vpop.xlane.xlu0 %2160
    %v2162 = vmul.f32 %v2158, %v1055
    %v2163 = vmul.f32 %v2161, %v1055
    %v2164 = vmul.f32 %v2152, %v2152
    %v2165 = vmul.f32 %v2153, %v2153
    %v2166 = vsub.f32 %v2162, %v2164
    %v2167 = vsub.f32 %v2163, %v2165
    %v2168 = vmax.f32 %v2166, 0.0
    %v2169 = vmax.f32 %v2167, 0.0
    %v2170 = vsub.f32 %v2144, %v2152
    %v2171 = vsub.f32 %v2145, %v2153
    %v2172 = vadd.f32 %v2168, 1e-05
    %v2173 = vadd.f32 %v2169, 1e-05
    %v2174 = vrsqrt.pop %v2172
    %v2175 = vrsqrt.pop %v2173
    %v2176 = vmul.f32 %v2170, %v2174
    %v2177 = vmul.f32 %v2171, %v2175
    %v2178 = vlaneseq
    %v2179 = vshrl.u32 %v2178, 7
    %v2180 = vsub.s32 0, %v2179
    %v2181 = vrot.slane %v93, %v2180
    %v2182 = vmul.f32 %v2176, %v2181
    %v2183 = vmul.f32 %v2177, %v2181
    %v2184 = vlaneseq
    %v2185 = vshrl.u32 %v2184, 7
    %v2186 = vsub.s32 1, %v2185
    %v2187 = vrot.slane %v93, %v2186
    %v2188 = vadd.f32 %v2182, %v2187
    %v2189 = vadd.f32 %v2183, %v2187
    %v2190 = vpack.c.bf16 %v2189, %v2188
    %v2191 = vld [vmem:[%s5] sm:$0xf]
    %v2192 = vld [vmem:[%s5 + $0x4] sm:$0xf]
    %v2193 = vld [vmem:[%s5 + $0x8] sm:$0xf]
    %v2194 = vld [vmem:[%s5 + $0xc] sm:$0xf]
    %v2195 = vlaneseq
    %v2196 = vshrl.u32 %v2195, 7
    %v2197 = vsub.s32 4, %v2196
    %v2198 = vrot.slane %v92, %v2197
    %v2203 = vunpack.c.l.b16 %v2191
    %v2204 = vunpack.c.l.b16 %v2192
    %v2205 = vunpack.c.l.b16 %v2193
    %v2206 = vunpack.c.l.b16 %v2194
    %v2207 = vpack.c.b16 %v2204, %v2203
    %v2208 = vpack.c.b16 %v2206, %v2205
    %v2212 = vsel %vm114, %v2190, 0
    %2214 = vmatprep.subr.bf16.mxu0 0
    %2215 = vmatpush1.bf16.msra.mxu0 0
    %2216 = vmatprep.subr.bf16.mxu0 0
    %2217 = vmatpush1.bf16.msra.mxu0 0
    %2218 = vmatprep.subr.bf16.mxu0 0
    %2219 = vmatpush1.bf16.msra.mxu0 0
    %2220 = vmatprep.subr.bf16.mxu0 0
    %2221 = vmatpush1.bf16.msra.mxu0 0
    %2222 = vmatprep.subr.bf16.mxu0 0
    %2223 = vmatpush1.bf16.msra.mxu0 0
    %2224 = vmatprep.subr.bf16.mxu0 0
    %2225 = vmatpush1.bf16.msra.mxu0 0
    %2226 = vmatprep.subr.bf16.mxu0 0
    %2227 = vmatpush1.bf16.msra.mxu0 %v2208
    %2228 = vmatprep.subr.bf16.mxu0 0
    %2229 = vmatpush1.bf16.msra.mxu0 %v2207
    %2230 = vmatprep.subr.bf16.mxu0 0
    %2231 = vmatpush2.bf16.msra.mxu0 0
    %2232 = vmatprep.subr.bf16.mxu0 0
    %2233 = vmatpush2.bf16.msra.mxu0 0
    %2234 = vmatprep.subr.bf16.mxu0 0
    %2235 = vmatpush2.bf16.msra.mxu0 0
    %2236 = vmatprep.subr.bf16.mxu0 0
    %2237 = vmatpush2.bf16.msra.mxu0 0
    %2238 = vmatprep.subr.bf16.mxu0 0
    %2239 = vmatpush2.bf16.msra.mxu0 0
    %2240 = vmatprep.subr.bf16.mxu0 0
    %2241 = vmatpush2.bf16.msra.mxu0 0
    %2242 = vmatprep.subr.bf16.mxu0 0
    %2243 = vmatpush2.bf16.msra.mxu0 0
    %2244 = vmatprep.subr.bf16.mxu0 0
    %2245 = vmatpush2.bf16.msra.mxu0 0
    %2246 = vmatprep.mubr.bf16.mxu0 0
    %2247 = vmatmul.mubr.bf16.gmra.mxu0 %v2212
    %v2248 = vpop.f32.mrf.mxu0
    %v2249 = vadd.f32 %v2198, %v2248
    %v2250 = vpop.f32.mrf.mxu0
    %v2251 = vpop.f32.mrf.mxu0
    %v2252 = vadd.f32 %v2198, %v2251
    %v2253 = vpop.f32.mrf.mxu0
    %2254 = vdwg.mxu0
    %v2255 = vmax.f32 %v2249, 0.0
    %v2256 = vmax.f32 %v2252, 0.0
    %v2257 = vpack.c.bf16 %v2256, %v2255
    %v2258 = vld [vmem:[%s6] sm:$0xf]
    %v2259 = vld [vmem:[%s6 + $0x4] sm:$0xf]
    %v2260 = vld [vmem:[%s6 + $0x8] sm:$0xf]
    %v2261 = vld [vmem:[%s6 + $0xc] sm:$0xf]
    %v2262 = vld [vmem:[%s6 + $0x10] sm:$0xf]
    %v2263 = vld [vmem:[%s6 + $0x14] sm:$0xf]
    %v2264 = vld [vmem:[%s6 + $0x18] sm:$0xf]
    %v2265 = vld [vmem:[%s6 + $0x1c] sm:$0xf]
    %v2266 = vlaneseq
    %v2267 = vshrl.u32 %v2266, 7
    %v2268 = vsub.s32 5, %v2267
    %v2269 = vrot.slane %v92, %v2268
    %v2278 = vunpack.c.l.b16 %v2258
    %v2279 = vunpack.c.l.b16 %v2259
    %v2280 = vunpack.c.l.b16 %v2260
    %v2281 = vunpack.c.l.b16 %v2261
    %v2282 = vunpack.c.l.b16 %v2262
    %v2283 = vunpack.c.l.b16 %v2263
    %v2284 = vunpack.c.l.b16 %v2264
    %v2285 = vunpack.c.l.b16 %v2265
    %v2286 = vpack.c.b16 %v2279, %v2278
    %v2287 = vpack.c.b16 %v2281, %v2280
    %v2288 = vpack.c.b16 %v2283, %v2282
    %v2289 = vpack.c.b16 %v2285, %v2284
    %vm2294 = vcmask 523264
    %v2296 = vsel %vm2294, %v2257, 0
    %2298 = vmatprep.subr.bf16.mxu0 0
    %2299 = vmatpush1.bf16.msra.mxu0 0
    %2300 = vmatprep.subr.bf16.mxu0 0
    %2301 = vmatpush1.bf16.msra.mxu0 0
    %2302 = vmatprep.subr.bf16.mxu0 0
    %2303 = vmatpush1.bf16.msra.mxu0 0
    %2304 = vmatprep.subr.bf16.mxu0 0
    %2305 = vmatpush1.bf16.msra.mxu0 0
    %2306 = vmatprep.subr.bf16.mxu0 0
    %2307 = vmatpush1.bf16.msra.mxu0 %v2289
    %2308 = vmatprep.subr.bf16.mxu0 0
    %2309 = vmatpush1.bf16.msra.mxu0 %v2288
    %2310 = vmatprep.subr.bf16.mxu0 0
    %2311 = vmatpush1.bf16.msra.mxu0 %v2287
    %2312 = vmatprep.subr.bf16.mxu0 0
    %2313 = vmatpush1.bf16.msra.mxu0 %v2286
    %2314 = vmatprep.subr.bf16.mxu0 0
    %2315 = vmatpush2.bf16.msra.mxu0 0
    %2316 = vmatprep.subr.bf16.mxu0 0
    %2317 = vmatpush2.bf16.msra.mxu0 0
    %2318 = vmatprep.subr.bf16.mxu0 0
    %2319 = vmatpush2.bf16.msra.mxu0 0
    %2320 = vmatprep.subr.bf16.mxu0 0
    %2321 = vmatpush2.bf16.msra.mxu0 0
    %2322 = vmatprep.subr.bf16.mxu0 0
    %2323 = vmatpush2.bf16.msra.mxu0 0
    %2324 = vmatprep.subr.bf16.mxu0 0
    %2325 = vmatpush2.bf16.msra.mxu0 0
    %2326 = vmatprep.subr.bf16.mxu0 0
    %2327 = vmatpush2.bf16.msra.mxu0 0
    %2328 = vmatprep.subr.bf16.mxu0 0
    %2329 = vmatpush2.bf16.msra.mxu0 0
    %2330 = vmatprep.mubr.bf16.mxu0 0
    %2331 = vmatmul.mubr.bf16.gmra.mxu0 %v2296
    %v2332 = vpop.f32.mrf.mxu0
    %v2333 = vadd.f32 %v2269, %v2332
    %v2334 = vpop.f32.mrf.mxu0
    %v2335 = vpop.f32.mrf.mxu0
    %v2336 = vadd.f32 %v2269, %v2335
    %v2337 = vpop.f32.mrf.mxu0
    %2338 = vdwg.mxu0
    %v2339 = vadd.f32 %v2188, %v2333
    %v2340 = vadd.f32 %v2189, %v2336
    %v2341 = vsel %vm114, %v2339, 0.0
    %2342 = vadd.xlane.f32.xlu0 %v2341
    %v2343 = vpop.xlane.xlu0 %2342
    %v2344 = vsel %vm114, %v2340, 0.0
    %2345 = vadd.xlane.f32.xlu0 %v2344
    %v2346 = vpop.xlane.xlu0 %2345
    %v2347 = vmul.f32 %v2343, %v1055
    %v2348 = vmul.f32 %v2346, %v1055
    %v2349 = vmul.f32 %v2339, %v2339
    %v2350 = vmul.f32 %v2340, %v2340
    %v2351 = vsel %vm114, %v2349, 0.0
    %2352 = vadd.xlane.f32.xlu0 %v2351
    %v2353 = vpop.xlane.xlu0 %2352
    %v2354 = vsel %vm114, %v2350, 0.0
    %2355 = vadd.xlane.f32.xlu0 %v2354
    %v2356 = vpop.xlane.xlu0 %2355
    %v2357 = vmul.f32 %v2353, %v1055
    %v2358 = vmul.f32 %v2356, %v1055
    %v2359 = vmul.f32 %v2347, %v2347
    %v2360 = vmul.f32 %v2348, %v2348
    %v2361 = vsub.f32 %v2357, %v2359
    %v2362 = vsub.f32 %v2358, %v2360
    %v2363 = vmax.f32 %v2361, 0.0
    %v2364 = vmax.f32 %v2362, 0.0
    %v2365 = vsub.f32 %v2339, %v2347
    %v2366 = vsub.f32 %v2340, %v2348
    %v2367 = vadd.f32 %v2363, 1e-05
    %v2368 = vadd.f32 %v2364, 1e-05
    %v2369 = vrsqrt.pop %v2367
    %v2370 = vrsqrt.pop %v2368
    %v2371 = vmul.f32 %v2365, %v2369
    %v2372 = vmul.f32 %v2366, %v2370
    %v2373 = vlaneseq
    %v2374 = vshrl.u32 %v2373, 7
    %v2375 = vsub.s32 2, %v2374
    %v2376 = vrot.slane %v93, %v2375
    %v2377 = vmul.f32 %v2371, %v2376
    %v2378 = vmul.f32 %v2372, %v2376
    %v2379 = vlaneseq
    %v2380 = vshrl.u32 %v2379, 7
    %v2381 = vsub.s32 3, %v2380
    %v2382 = vrot.slane %v93, %v2381
    %v2383 = vadd.f32 %v2377, %v2382
    %v2384 = vadd.f32 %v2378, %v2382
    %s2385 = scalar_lea.vmem [#allocation7], 16
    %v2386 = vld [vmem:[%s2385] sm:$0xff]
    %v2387 = vld [vmem:[%s2385 + $0x8] sm:$0xf]
    %v2388 = vadd.f32 %v2383, %v74
    %v2389 = vadd.f32 %v2384, %v75
    %v2390 = vpack.c.bf16 %v2389, %v2388
    %v2391 = vpack.c.bf16 %v2384, %v2383
    %s2392 = scalar_lea.vmem %s3, 32
    %v2393 = vld [vmem:[%s2392] sm:$0xf]
    %v2394 = vld [vmem:[%s2392 + $0x4] sm:$0xf]
    %v2395 = vld [vmem:[%s2392 + $0x8] sm:$0xf]
    %v2396 = vld [vmem:[%s2392 + $0xc] sm:$0xf]
    %v2401 = vunpack.c.l.b16 %v2393
    %v2402 = vunpack.c.l.b16 %v2394
    %v2403 = vunpack.c.l.b16 %v2395
    %v2404 = vunpack.c.l.b16 %v2396
    %v2405 = vpack.c.b16 %v2402, %v2401
    %v2406 = vpack.c.b16 %v2404, %v2403
    %v2410 = vsel %vm114, %v2390, 0
    %2412 = vmatprep.subr.bf16.mxu0 0
    %2413 = vmatpush1.bf16.msra.mxu0 0
    %2414 = vmatprep.subr.bf16.mxu0 0
    %2415 = vmatpush1.bf16.msra.mxu0 0
    %2416 = vmatprep.subr.bf16.mxu0 0
    %2417 = vmatpush1.bf16.msra.mxu0 0
    %2418 = vmatprep.subr.bf16.mxu0 0
    %2419 = vmatpush1.bf16.msra.mxu0 0
    %2420 = vmatprep.subr.bf16.mxu0 0
    %2421 = vmatpush1.bf16.msra.mxu0 0
    %2422 = vmatprep.subr.bf16.mxu0 0
    %2423 = vmatpush1.bf16.msra.mxu0 0
    %2424 = vmatprep.subr.bf16.mxu0 0
    %2425 = vmatpush1.bf16.msra.mxu0 %v2406
    %2426 = vmatprep.subr.bf16.mxu0 0
    %2427 = vmatpush1.bf16.msra.mxu0 %v2405
    %2428 = vmatprep.subr.bf16.mxu0 0
    %2429 = vmatpush2.bf16.msra.mxu0 0
    %2430 = vmatprep.subr.bf16.mxu0 0
    %2431 = vmatpush2.bf16.msra.mxu0 0
    %2432 = vmatprep.subr.bf16.mxu0 0
    %2433 = vmatpush2.bf16.msra.mxu0 0
    %2434 = vmatprep.subr.bf16.mxu0 0
    %2435 = vmatpush2.bf16.msra.mxu0 0
    %2436 = vmatprep.subr.bf16.mxu0 0
    %2437 = vmatpush2.bf16.msra.mxu0 0
    %2438 = vmatprep.subr.bf16.mxu0 0
    %2439 = vmatpush2.bf16.msra.mxu0 0
    %2440 = vmatprep.subr.bf16.mxu0 0
    %2441 = vmatpush2.bf16.msra.mxu0 0
    %2442 = vmatprep.subr.bf16.mxu0 0
    %2443 = vmatpush2.bf16.msra.mxu0 0
    %2444 = vmatprep.mubr.bf16.mxu0 0
    %2445 = vmatmul.mubr.bf16.gmra.mxu0 %v2410
    %v2446 = vpop.f32.mrf.mxu0
    %v2447 = vadd.f32 0.0, %v2446
    %v2448 = vpop.f32.mrf.mxu0
    %v2449 = vpop.f32.mrf.mxu0
    %v2450 = vadd.f32 0.0, %v2449
    %v2451 = vpop.f32.mrf.mxu0
    %2452 = vdwg.mxu0
    %v2453 = vlaneseq
    %v2454 = vshrl.u32 %v2453, 7
    %v2455 = vsub.s32 0, %v2454
    %v2456 = vrot.slane %v2386, %v2455
    %v2457 = vadd.f32 %v2447, %v2456
    %v2458 = vadd.f32 %v2450, %v2456
    %2459 = vrot.lane.b32.xlu0 %v2405, 64
    %v2460 = vpop.permute.xlu0 %2459
    %2461 = vrot.lane.b32.xlu0 %v2406, 64
    %v2462 = vpop.permute.xlu0 %2461
    %2466 = vrot.lane.b32.xlu0 %v2456, 64
    %v2467 = vpop.permute.xlu0 %2466
    %v2470 = vsel %vm114, %v2391, 0
    %2472 = vmatprep.subr.bf16.mxu0 0
    %2473 = vmatpush1.bf16.msra.mxu0 0
    %2474 = vmatprep.subr.bf16.mxu0 0
    %2475 = vmatpush1.bf16.msra.mxu0 0
    %2476 = vmatprep.subr.bf16.mxu0 0
    %2477 = vmatpush1.bf16.msra.mxu0 0
    %2478 = vmatprep.subr.bf16.mxu0 0
    %2479 = vmatpush1.bf16.msra.mxu0 0
    %2480 = vmatprep.subr.bf16.mxu0 0
    %2481 = vmatpush1.bf16.msra.mxu0 0
    %2482 = vmatprep.subr.bf16.mxu0 0
    %2483 = vmatpush1.bf16.msra.mxu0 0
    %2484 = vmatprep.subr.bf16.mxu0 0
    %2485 = vmatpush1.bf16.msra.mxu0 %v2462
    %2486 = vmatprep.subr.bf16.mxu0 0
    %2487 = vmatpush1.bf16.msra.mxu0 %v2460
    %2488 = vmatprep.subr.bf16.mxu0 0
    %2489 = vmatpush2.bf16.msra.mxu0 0
    %2490 = vmatprep.subr.bf16.mxu0 0
    %2491 = vmatpush2.bf16.msra.mxu0 0
    %2492 = vmatprep.subr.bf16.mxu0 0
    %2493 = vmatpush2.bf16.msra.mxu0 0
    %2494 = vmatprep.subr.bf16.mxu0 0
    %2495 = vmatpush2.bf16.msra.mxu0 0
    %2496 = vmatprep.subr.bf16.mxu0 0
    %2497 = vmatpush2.bf16.msra.mxu0 0
    %2498 = vmatprep.subr.bf16.mxu0 0
    %2499 = vmatpush2.bf16.msra.mxu0 0
    %2500 = vmatprep.subr.bf16.mxu0 0
    %2501 = vmatpush2.bf16.msra.mxu0 0
    %2502 = vmatprep.subr.bf16.mxu0 0
    %2503 = vmatpush2.bf16.msra.mxu0 0
    %2504 = vmatprep.mubr.bf16.mxu0 0
    %2505 = vmatmul.mubr.bf16.gmra.mxu0 %v2470
    %v2506 = vpop.f32.mrf.mxu0
    %v2507 = vadd.f32 %v2467, %v2506
    %v2508 = vpop.f32.mrf.mxu0
    %v2509 = vpop.f32.mrf.mxu0
    %v2510 = vadd.f32 %v2467, %v2509
    %v2511 = vpop.f32.mrf.mxu0
    %2512 = vdwg.mxu0
    %v2513 = vpack.c.bf16 %v2458, %v2457
    %v2514 = vpack.c.bf16 %v2450, %v2447
    %v2515 = vpack.c.bf16 %v2510, %v2507
    %2517 = vrot.lane.b32.xlu0 %v2514, 96
    %v2518 = vpop.permute.xlu0 %2517
    %v2520 = vsel %vm225, %v2513, 0
    %v2523 = vsel %vm225, %v2518, 0
    %2525 = vmatprep.subr.bf16.mxu0 0
    %2526 = vmatpush1.bf16.xpose.msra.mxu0 0
    %2527 = vmatprep.subr.bf16.mxu0 0
    %2528 = vmatpush1.bf16.xpose.msra.mxu0 0
    %2529 = vmatprep.subr.bf16.mxu0 0
    %2530 = vmatpush1.bf16.xpose.msra.mxu0 0
    %2531 = vmatprep.subr.bf16.mxu0 0
    %2532 = vmatpush1.bf16.xpose.msra.mxu0 0
    %2533 = vmatprep.subr.bf16.mxu0 0
    %2534 = vmatpush1.bf16.xpose.msra.mxu0 0
    %2535 = vmatprep.subr.bf16.mxu0 0
    %2536 = vmatpush1.bf16.xpose.msra.mxu0 0
    %2537 = vmatprep.subr.bf16.mxu0 0
    %2538 = vmatpush1.bf16.xpose.msra.mxu0 0
    %2539 = vmatprep.subr.bf16.mxu0 0
    %2540 = vmatpush1.bf16.xpose.msra.mxu0 %v2523
    %2541 = vmatprep.subr.bf16.mxu0 0
    %2542 = vmatpush2.bf16.xpose.msra.mxu0 0
    %2543 = vmatprep.subr.bf16.mxu0 0
    %2544 = vmatpush2.bf16.xpose.msra.mxu0 0
    %2545 = vmatprep.subr.bf16.mxu0 0
    %2546 = vmatpush2.bf16.xpose.msra.mxu0 0
    %2547 = vmatprep.subr.bf16.mxu0 0
    %2548 = vmatpush2.bf16.xpose.msra.mxu0 0
    %2549 = vmatprep.subr.bf16.mxu0 0
    %2550 = vmatpush2.bf16.xpose.msra.mxu0 0
    %2551 = vmatprep.subr.bf16.mxu0 0
    %2552 = vmatpush2.bf16.xpose.msra.mxu0 0
    %2553 = vmatprep.subr.bf16.mxu0 0
    %2554 = vmatpush2.bf16.xpose.msra.mxu0 0
    %2555 = vmatprep.subr.bf16.mxu0 0
    %2556 = vmatpush2.bf16.xpose.msra.mxu0 0
    %2557 = vmatprep.mubr.bf16.mxu0 0
    %2558 = vmatmul.mubr.bf16.gmra.mxu0 %v2520
    %v2559 = vpop.f32.mrf.mxu0
    %v2560 = vadd.f32 %v84, %v2559
    %v2561 = vpop.f32.mrf.mxu0
    %v2562 = vpop.f32.mrf.mxu0
    %v2563 = vadd.f32 %v85, %v2562
    %v2564 = vpop.f32.mrf.mxu0
    %2565 = vdwg.mxu0
    %v2566 = vsel %vm273, %v2560, -inf
    %2567 = vmax.xlane.f32.xlu0 %v2566
    %v2568 = vpop.xlane.xlu0 %2567
    %v2569 = vsel %vm273, %v2563, -inf
    %2570 = vmax.xlane.f32.xlu0 %v2569
    %v2571 = vpop.xlane.xlu0 %2570
    %v2572 = vsub.f32 %v2560, %v2568
    %v2573 = vsub.f32 %v2563, %v2571
    %v2574 = vmul.f32 %v2572, 1.442695
    %v2575 = vpow.pop %v2574
    %v2576 = vmul.f32 %v2573, 1.442695
    %v2577 = vpow.pop %v2576
    %v2578 = vsel %vm273, %v2575, 0.0
    %2579 = vadd.xlane.f32.xlu0 %v2578
    %v2580 = vpop.xlane.xlu0 %2579
    %v2581 = vsel %vm273, %v2577, 0.0
    %2582 = vadd.xlane.f32.xlu0 %v2581
    %v2583 = vpop.xlane.xlu0 %2582
    %v2584 = vrcp.pop %v2580
    %v2585 = vrcp.pop %v2583
    %v2586 = vmul.f32 %v2575, %v2584
    %v2587 = vmul.f32 %v2577, %v2585
    %v2588 = vpack.c.bf16 %v2587, %v2586
    %v2590 = vsel %vm273, %v2588, 0
    %2592 = vmatprep.subr.bf16.mxu0 0
    %2593 = vmatpush1.bf16.msra.mxu0 0
    %2594 = vmatprep.subr.bf16.mxu0 0
    %2595 = vmatpush1.bf16.msra.mxu0 0
    %2596 = vmatprep.subr.bf16.mxu0 0
    %2597 = vmatpush1.bf16.msra.mxu0 0
    %2598 = vmatprep.subr.bf16.mxu0 0
    %2599 = vmatpush1.bf16.msra.mxu0 0
    %2600 = vmatprep.subr.bf16.mxu0 0
    %2601 = vmatpush1.bf16.msra.mxu0 0
    %2602 = vmatprep.subr.bf16.mxu0 0
    %2603 = vmatpush1.bf16.msra.mxu0 0
    %2604 = vmatprep.subr.bf16.mxu0 0
    %2605 = vmatpush1.bf16.msra.mxu0 0
    %2606 = vmatprep.subr.bf16.mxu0 0
    %2607 = vmatpush1.bf16.msra.mxu0 %v2515
    %2608 = vmatprep.subr.bf16.mxu0 0
    %2609 = vmatpush2.bf16.msra.mxu0 0
    %2610 = vmatprep.subr.bf16.mxu0 0
    %2611 = vmatpush2.bf16.msra.mxu0 0
    %2612 = vmatprep.subr.bf16.mxu0 0
    %2613 = vmatpush2.bf16.msra.mxu0 0
    %2614 = vmatprep.subr.bf16.mxu0 0
    %2615 = vmatpush2.bf16.msra.mxu0 0
    %2616 = vmatprep.subr.bf16.mxu0 0
    %2617 = vmatpush2.bf16.msra.mxu0 0
    %2618 = vmatprep.subr.bf16.mxu0 0
    %2619 = vmatpush2.bf16.msra.mxu0 0
    %2620 = vmatprep.subr.bf16.mxu0 0
    %2621 = vmatpush2.bf16.msra.mxu0 0
    %2622 = vmatprep.subr.bf16.mxu0 0
    %2623 = vmatpush2.bf16.msra.mxu0 0
    %2624 = vmatprep.mubr.bf16.mxu0 0
    %2625 = vmatmul.mubr.bf16.gmra.mxu0 %v2590
    %v2626 = vpop.f32.mrf.mxu0
    %v2627 = vadd.f32 0.0, %v2626
    %v2628 = vpop.f32.mrf.mxu0
    %v2629 = vpop.f32.mrf.mxu0
    %v2630 = vadd.f32 0.0, %v2629
    %v2631 = vpop.f32.mrf.mxu0
    %2632 = vdwg.mxu0
    %s2633 = scalar_lea.vmem %s4, 64
    %v2634 = vld [vmem:[%s2633] sm:$0xff]
    %2636 = vrot.lane.b32.xlu0 %v2513, 120
    %v2637 = vpop.permute.xlu0 %2636
    %2638 = vrot.lane.b32.xlu0 %v2514, 88
    %v2639 = vpop.permute.xlu0 %2638
    %v2641 = vsel %vm225, %v2637, 0
    %v2644 = vsel %vm225, %v2639, 0
    %2646 = vmatprep.subr.bf16.mxu0 0
    %2647 = vmatpush1.bf16.xpose.msra.mxu0 0
    %2648 = vmatprep.subr.bf16.mxu0 0
    %2649 = vmatpush1.bf16.xpose.msra.mxu0 0
    %2650 = vmatprep.subr.bf16.mxu0 0
    %2651 = vmatpush1.bf16.xpose.msra.mxu0 0
    %2652 = vmatprep.subr.bf16.mxu0 0
    %2653 = vmatpush1.bf16.xpose.msra.mxu0 0
    %2654 = vmatprep.subr.bf16.mxu0 0
    %2655 = vmatpush1.bf16.xpose.msra.mxu0 0
    %2656 = vmatprep.subr.bf16.mxu0 0
    %2657 = vmatpush1.bf16.xpose.msra.mxu0 0
    %2658 = vmatprep.subr.bf16.mxu0 0
    %2659 = vmatpush1.bf16.xpose.msra.mxu0 0
    %2660 = vmatprep.subr.bf16.mxu0 0
    %2661 = vmatpush1.bf16.xpose.msra.mxu0 %v2644
    %2662 = vmatprep.subr.bf16.mxu0 0
    %2663 = vmatpush2.bf16.xpose.msra.mxu0 0
    %2664 = vmatprep.subr.bf16.mxu0 0
    %2665 = vmatpush2.bf16.xpose.msra.mxu0 0
    %2666 = vmatprep.subr.bf16.mxu0 0
    %2667 = vmatpush2.bf16.xpose.msra.mxu0 0
    %2668 = vmatprep.subr.bf16.mxu0 0
    %2669 = vmatpush2.bf16.xpose.msra.mxu0 0
    %2670 = vmatprep.subr.bf16.mxu0 0
    %2671 = vmatpush2.bf16.xpose.msra.mxu0 0
    %2672 = vmatprep.subr.bf16.mxu0 0
    %2673 = vmatpush2.bf16.xpose.msra.mxu0 0
    %2674 = vmatprep.subr.bf16.mxu0 0
    %2675 = vmatpush2.bf16.xpose.msra.mxu0 0
    %2676 = vmatprep.subr.bf16.mxu0 0
    %2677 = vmatpush2.bf16.xpose.msra.mxu0 0
    %2678 = vmatprep.mubr.bf16.mxu0 0
    %2679 = vmatmul.mubr.bf16.gmra.mxu0 %v2641
    %v2680 = vpop.f32.mrf.mxu0
    %v2681 = vadd.f32 %v84, %v2680
    %v2682 = vpop.f32.mrf.mxu0
    %v2683 = vpop.f32.mrf.mxu0
    %v2684 = vadd.f32 %v85, %v2683
    %v2685 = vpop.f32.mrf.mxu0
    %2686 = vdwg.mxu0
    %v2687 = vsel %vm273, %v2681, -inf
    %2688 = vmax.xlane.f32.xlu0 %v2687
    %v2689 = vpop.xlane.xlu0 %2688
    %v2690 = vsel %vm273, %v2684, -inf
    %2691 = vmax.xlane.f32.xlu0 %v2690
    %v2692 = vpop.xlane.xlu0 %2691
    %v2693 = vsub.f32 %v2681, %v2689
    %v2694 = vsub.f32 %v2684, %v2692
    %v2695 = vmul.f32 %v2693, 1.442695
    %v2696 = vpow.pop %v2695
    %v2697 = vmul.f32 %v2694, 1.442695
    %v2698 = vpow.pop %v2697
    %v2699 = vsel %vm273, %v2696, 0.0
    %2700 = vadd.xlane.f32.xlu0 %v2699
    %v2701 = vpop.xlane.xlu0 %2700
    %v2702 = vsel %vm273, %v2698, 0.0
    %2703 = vadd.xlane.f32.xlu0 %v2702
    %v2704 = vpop.xlane.xlu0 %2703
    %v2705 = vrcp.pop %v2701
    %v2706 = vrcp.pop %v2704
    %v2707 = vmul.f32 %v2696, %v2705
    %v2708 = vmul.f32 %v2698, %v2706
    %v2709 = vpack.c.bf16 %v2708, %v2707
    %2711 = vrot.lane.b32.xlu0 %v2515, 120
    %v2712 = vpop.permute.xlu0 %2711
    %v2715 = vsel %vm273, %v2709, 0
    %2717 = vmatprep.subr.bf16.mxu0 0
    %2718 = vmatpush1.bf16.msra.mxu0 0
    %2719 = vmatprep.subr.bf16.mxu0 0
    %2720 = vmatpush1.bf16.msra.mxu0 0
    %2721 = vmatprep.subr.bf16.mxu0 0
    %2722 = vmatpush1.bf16.msra.mxu0 0
    %2723 = vmatprep.subr.bf16.mxu0 0
    %2724 = vmatpush1.bf16.msra.mxu0 0
    %2725 = vmatprep.subr.bf16.mxu0 0
    %2726 = vmatpush1.bf16.msra.mxu0 0
    %2727 = vmatprep.subr.bf16.mxu0 0
    %2728 = vmatpush1.bf16.msra.mxu0 0
    %2729 = vmatprep.subr.bf16.mxu0 0
    %2730 = vmatpush1.bf16.msra.mxu0 0
    %2731 = vmatprep.subr.bf16.mxu0 0
    %2732 = vmatpush1.bf16.msra.mxu0 %v2712
    %2733 = vmatprep.subr.bf16.mxu0 0
    %2734 = vmatpush2.bf16.msra.mxu0 0
    %2735 = vmatprep.subr.bf16.mxu0 0
    %2736 = vmatpush2.bf16.msra.mxu0 0
    %2737 = vmatprep.subr.bf16.mxu0 0
    %2738 = vmatpush2.bf16.msra.mxu0 0
    %2739 = vmatprep.subr.bf16.mxu0 0
    %2740 = vmatpush2.bf16.msra.mxu0 0
    %2741 = vmatprep.subr.bf16.mxu0 0
    %2742 = vmatpush2.bf16.msra.mxu0 0
    %2743 = vmatprep.subr.bf16.mxu0 0
    %2744 = vmatpush2.bf16.msra.mxu0 0
    %2745 = vmatprep.subr.bf16.mxu0 0
    %2746 = vmatpush2.bf16.msra.mxu0 0
    %2747 = vmatprep.subr.bf16.mxu0 0
    %2748 = vmatpush2.bf16.msra.mxu0 0
    %2749 = vmatprep.mubr.bf16.mxu0 0
    %2750 = vmatmul.mubr.bf16.gmra.mxu0 %v2715
    %v2751 = vpop.f32.mrf.mxu0
    %v2752 = vadd.f32 0.0, %v2751
    %v2753 = vpop.f32.mrf.mxu0
    %v2754 = vpop.f32.mrf.mxu0
    %v2755 = vadd.f32 0.0, %v2754
    %v2756 = vpop.f32.mrf.mxu0
    %2757 = vdwg.mxu0
    %s2758 = scalar_lea.vmem %s4, 72
    %v2759 = vld [vmem:[%s2758] sm:$0xff]
    %v2761 = vsel %vm225, %v2752, 0
    %v2764 = vsel %vm225, %v2755, 0
    %2766 = vmatprep.subr.mxu0 0.0
    %2767 = vmatpush1.msra.mxu0 0.0
    %2768 = vmatprep.subr.mxu0 0.0
    %2769 = vmatpush1.msra.mxu0 0.0
    %2770 = vmatprep.subr.mxu0 0.0
    %2771 = vmatpush1.msra.mxu0 0.0
    %2772 = vmatprep.subr.mxu0 0.0
    %2773 = vmatpush1.msra.mxu0 0.0
    %2774 = vmatprep.subr.mxu0 0.0
    %2775 = vmatpush1.msra.mxu0 0.0
    %2776 = vmatprep.subr.mxu0 0.0
    %2777 = vmatpush1.msra.mxu0 0.0
    %2778 = vmatprep.subr.mxu0 0.0
    %2779 = vmatpush1.msra.mxu0 0.0
    %2780 = vmatprep.subr.mxu0 0.0
    %2781 = vmatpush1.msra.mxu0 0.0
    %2782 = vmatprep.subr.mxu0 0.0
    %2783 = vmatpush1.msra.mxu0 0.0
    %2784 = vmatprep.subr.mxu0 0.0
    %2785 = vmatpush1.msra.mxu0 0.0
    %2786 = vmatprep.subr.mxu0 0.0
    %2787 = vmatpush1.msra.mxu0 0.0
    %2788 = vmatprep.subr.mxu0 0.0
    %2789 = vmatpush1.msra.mxu0 0.0
    %2790 = vmatprep.subr.mxu0 0.0
    %2791 = vmatpush1.msra.mxu0 0.0
    %2792 = vmatprep.subr.mxu0 0.0
    %2793 = vmatpush1.msra.mxu0 0.0
    %2794 = vmatprep.subr.mxu0 0.0
    %2795 = vmatpush1.msra.mxu0 0.0
    %2796 = vmatprep.subr.mxu0 0.0
    %2797 = vmatpush1.msra.mxu0 %v2759
    %2798 = vmatprep.subr.mxu0 0.0
    %2799 = vmatpush2.msra.mxu0 0.0
    %2800 = vmatprep.subr.mxu0 0.0
    %2801 = vmatpush2.msra.mxu0 0.0
    %2802 = vmatprep.subr.mxu0 0.0
    %2803 = vmatpush2.msra.mxu0 0.0
    %2804 = vmatprep.subr.mxu0 0.0
    %2805 = vmatpush2.msra.mxu0 0.0
    %2806 = vmatprep.subr.mxu0 0.0
    %2807 = vmatpush2.msra.mxu0 0.0
    %2808 = vmatprep.subr.mxu0 0.0
    %2809 = vmatpush2.msra.mxu0 0.0
    %2810 = vmatprep.subr.mxu0 0.0
    %2811 = vmatpush2.msra.mxu0 0.0
    %2812 = vmatprep.subr.mxu0 0.0
    %2813 = vmatpush2.msra.mxu0 0.0
    %2814 = vmatprep.subr.mxu0 0.0
    %2815 = vmatpush2.msra.mxu0 0.0
    %2816 = vmatprep.subr.mxu0 0.0
    %2817 = vmatpush2.msra.mxu0 0.0
    %2818 = vmatprep.subr.mxu0 0.0
    %2819 = vmatpush2.msra.mxu0 0.0
    %2820 = vmatprep.subr.mxu0 0.0
    %2821 = vmatpush2.msra.mxu0 0.0
    %2822 = vmatprep.subr.mxu0 0.0
    %2823 = vmatpush2.msra.mxu0 0.0
    %2824 = vmatprep.subr.mxu0 0.0
    %2825 = vmatpush2.msra.mxu0 0.0
    %2826 = vmatprep.subr.mxu0 0.0
    %2827 = vmatpush2.msra.mxu0 0.0
    %2828 = vmatprep.subr.mxu0 0.0
    %2829 = vmatpush2.msra.mxu0 0.0
    %2830 = vmatprep.mubr.f32.mxu0 0.0
    %2831 = vmatmul.mubr.f32.gmra.mxu0 %v2761
    %v2832 = vpop.f32.mrf.mxu0
    %v2833 = vadd.f32 0.0, %v2832
    %v2834 = vpop.f32.mrf.mxu0
    %2835 = vmatprep.mubr.f32.mxu0 0.0
    %2836 = vmatmul.mubr.f32.gmra.mxu0 %v2764
    %v2837 = vpop.f32.mrf.mxu0
    %v2838 = vadd.f32 0.0, %v2837
    %v2839 = vpop.f32.mrf.mxu0
    %2840 = vdwg.mxu0
    %v2842 = vsel %vm225, %v2627, 0
    %v2845 = vsel %vm225, %v2630, 0
    %2847 = vmatprep.subr.mxu0 0.0
    %2848 = vmatpush1.msra.mxu0 0.0
    %2849 = vmatprep.subr.mxu0 0.0
    %2850 = vmatpush1.msra.mxu0 0.0
    %2851 = vmatprep.subr.mxu0 0.0
    %2852 = vmatpush1.msra.mxu0 0.0
    %2853 = vmatprep.subr.mxu0 0.0
    %2854 = vmatpush1.msra.mxu0 0.0
    %2855 = vmatprep.subr.mxu0 0.0
    %2856 = vmatpush1.msra.mxu0 0.0
    %2857 = vmatprep.subr.mxu0 0.0
    %2858 = vmatpush1.msra.mxu0 0.0
    %2859 = vmatprep.subr.mxu0 0.0
    %2860 = vmatpush1.msra.mxu0 0.0
    %2861 = vmatprep.subr.mxu0 0.0
    %2862 = vmatpush1.msra.mxu0 0.0
    %2863 = vmatprep.subr.mxu0 0.0
    %2864 = vmatpush1.msra.mxu0 0.0
    %2865 = vmatprep.subr.mxu0 0.0
    %2866 = vmatpush1.msra.mxu0 0.0
    %2867 = vmatprep.subr.mxu0 0.0
    %2868 = vmatpush1.msra.mxu0 0.0
    %2869 = vmatprep.subr.mxu0 0.0
    %2870 = vmatpush1.msra.mxu0 0.0
    %2871 = vmatprep.subr.mxu0 0.0
    %2872 = vmatpush1.msra.mxu0 0.0
    %2873 = vmatprep.subr.mxu0 0.0
    %2874 = vmatpush1.msra.mxu0 0.0
    %2875 = vmatprep.subr.mxu0 0.0
    %2876 = vmatpush1.msra.mxu0 0.0
    %2877 = vmatprep.subr.mxu0 0.0
    %2878 = vmatpush1.msra.mxu0 %v2634
    %2879 = vmatprep.subr.mxu0 0.0
    %2880 = vmatpush2.msra.mxu0 0.0
    %2881 = vmatprep.subr.mxu0 0.0
    %2882 = vmatpush2.msra.mxu0 0.0
    %2883 = vmatprep.subr.mxu0 0.0
    %2884 = vmatpush2.msra.mxu0 0.0
    %2885 = vmatprep.subr.mxu0 0.0
    %2886 = vmatpush2.msra.mxu0 0.0
    %2887 = vmatprep.subr.mxu0 0.0
    %2888 = vmatpush2.msra.mxu0 0.0
    %2889 = vmatprep.subr.mxu0 0.0
    %2890 = vmatpush2.msra.mxu0 0.0
    %2891 = vmatprep.subr.mxu0 0.0
    %2892 = vmatpush2.msra.mxu0 0.0
    %2893 = vmatprep.subr.mxu0 0.0
    %2894 = vmatpush2.msra.mxu0 0.0
    %2895 = vmatprep.subr.mxu0 0.0
    %2896 = vmatpush2.msra.mxu0 0.0
    %2897 = vmatprep.subr.mxu0 0.0
    %2898 = vmatpush2.msra.mxu0 0.0
    %2899 = vmatprep.subr.mxu0 0.0
    %2900 = vmatpush2.msra.mxu0 0.0
    %2901 = vmatprep.subr.mxu0 0.0
    %2902 = vmatpush2.msra.mxu0 0.0
    %2903 = vmatprep.subr.mxu0 0.0
    %2904 = vmatpush2.msra.mxu0 0.0
    %2905 = vmatprep.subr.mxu0 0.0
    %2906 = vmatpush2.msra.mxu0 0.0
    %2907 = vmatprep.subr.mxu0 0.0
    %2908 = vmatpush2.msra.mxu0 0.0
    %2909 = vmatprep.subr.mxu0 0.0
    %2910 = vmatpush2.msra.mxu0 0.0
    %2911 = vmatprep.mubr.f32.mxu0 0.0
    %2912 = vmatmul.mubr.f32.gmra.mxu0 %v2842
    %v2913 = vpop.f32.mrf.mxu0
    %v2914 = vadd.f32 %v2833, %v2913
    %v2915 = vpop.f32.mrf.mxu0
    %2916 = vmatprep.mubr.f32.mxu0 0.0
    %2917 = vmatmul.mubr.f32.gmra.mxu0 %v2845
    %v2918 = vpop.f32.mrf.mxu0
    %v2919 = vadd.f32 %v2838, %v2918
    %v2920 = vpop.f32.mrf.mxu0
    %2921 = vdwg.mxu0
    %2922 = vrot.lane.b32.xlu0 %v2513, 112
    %v2923 = vpop.permute.xlu0 %2922
    %2924 = vrot.lane.b32.xlu0 %v2514, 80
    %v2925 = vpop.permute.xlu0 %2924
    %v2927 = vsel %vm225, %v2923, 0
    %v2930 = vsel %vm225, %v2925, 0
    %2932 = vmatprep.subr.bf16.mxu0 0
    %2933 = vmatpush1.bf16.xpose.msra.mxu0 0
    %2934 = vmatprep.subr.bf16.mxu0 0
    %2935 = vmatpush1.bf16.xpose.msra.mxu0 0
    %2936 = vmatprep.subr.bf16.mxu0 0
    %2937 = vmatpush1.bf16.xpose.msra.mxu0 0
    %2938 = vmatprep.subr.bf16.mxu0 0
    %2939 = vmatpush1.bf16.xpose.msra.mxu0 0
    %2940 = vmatprep.subr.bf16.mxu0 0
    %2941 = vmatpush1.bf16.xpose.msra.mxu0 0
    %2942 = vmatprep.subr.bf16.mxu0 0
    %2943 = vmatpush1.bf16.xpose.msra.mxu0 0
    %2944 = vmatprep.subr.bf16.mxu0 0
    %2945 = vmatpush1.bf16.xpose.msra.mxu0 0
    %2946 = vmatprep.subr.bf16.mxu0 0
    %2947 = vmatpush1.bf16.xpose.msra.mxu0 %v2930
    %2948 = vmatprep.subr.bf16.mxu0 0
    %2949 = vmatpush2.bf16.xpose.msra.mxu0 0
    %2950 = vmatprep.subr.bf16.mxu0 0
    %2951 = vmatpush2.bf16.xpose.msra.mxu0 0
    %2952 = vmatprep.subr.bf16.mxu0 0
    %2953 = vmatpush2.bf16.xpose.msra.mxu0 0
    %2954 = vmatprep.subr.bf16.mxu0 0
    %2955 = vmatpush2.bf16.xpose.msra.mxu0 0
    %2956 = vmatprep.subr.bf16.mxu0 0
    %2957 = vmatpush2.bf16.xpose.msra.mxu0 0
    %2958 = vmatprep.subr.bf16.mxu0 0
    %2959 = vmatpush2.bf16.xpose.msra.mxu0 0
    %2960 = vmatprep.subr.bf16.mxu0 0
    %2961 = vmatpush2.bf16.xpose.msra.mxu0 0
    %2962 = vmatprep.subr.bf16.mxu0 0
    %2963 = vmatpush2.bf16.xpose.msra.mxu0 0
    %2964 = vmatprep.mubr.bf16.mxu0 0
    %2965 = vmatmul.mubr.bf16.gmra.mxu0 %v2927
    %v2966 = vpop.f32.mrf.mxu0
    %v2967 = vadd.f32 %v84, %v2966
    %v2968 = vpop.f32.mrf.mxu0
    %v2969 = vpop.f32.mrf.mxu0
    %v2970 = vadd.f32 %v85, %v2969
    %v2971 = vpop.f32.mrf.mxu0
    %2972 = vdwg.mxu0
    %v2973 = vsel %vm273, %v2967, -inf
    %2974 = vmax.xlane.f32.xlu0 %v2973
    %v2975 = vpop.xlane.xlu0 %2974
    %v2976 = vsel %vm273, %v2970, -inf
    %2977 = vmax.xlane.f32.xlu0 %v2976
    %v2978 = vpop.xlane.xlu0 %2977
    %v2979 = vsub.f32 %v2967, %v2975
    %v2980 = vsub.f32 %v2970, %v2978
    %v2981 = vmul.f32 %v2979, 1.442695
    %v2982 = vpow.pop %v2981
    %v2983 = vmul.f32 %v2980, 1.442695
    %v2984 = vpow.pop %v2983
    %v2985 = vsel %vm273, %v2982, 0.0
    %2986 = vadd.xlane.f32.xlu0 %v2985
    %v2987 = vpop.xlane.xlu0 %2986
    %v2988 = vsel %vm273, %v2984, 0.0
    %2989 = vadd.xlane.f32.xlu0 %v2988
    %v2990 = vpop.xlane.xlu0 %2989
    %v2991 = vrcp.pop %v2987
    %v2992 = vrcp.pop %v2990
    %v2993 = vmul.f32 %v2982, %v2991
    %v2994 = vmul.f32 %v2984, %v2992
    %v2995 = vpack.c.bf16 %v2994, %v2993
    %2996 = vrot.lane.b32.xlu0 %v2515, 112
    %v2997 = vpop.permute.xlu0 %2996
    %v3000 = vsel %vm273, %v2995, 0
    %3002 = vmatprep.subr.bf16.mxu0 0
    %3003 = vmatpush1.bf16.msra.mxu0 0
    %3004 = vmatprep.subr.bf16.mxu0 0
    %3005 = vmatpush1.bf16.msra.mxu0 0
    %3006 = vmatprep.subr.bf16.mxu0 0
    %3007 = vmatpush1.bf16.msra.mxu0 0
    %3008 = vmatprep.subr.bf16.mxu0 0
    %3009 = vmatpush1.bf16.msra.mxu0 0
    %3010 = vmatprep.subr.bf16.mxu0 0
    %3011 = vmatpush1.bf16.msra.mxu0 0
    %3012 = vmatprep.subr.bf16.mxu0 0
    %3013 = vmatpush1.bf16.msra.mxu0 0
    %3014 = vmatprep.subr.bf16.mxu0 0
    %3015 = vmatpush1.bf16.msra.mxu0 0
    %3016 = vmatprep.subr.bf16.mxu0 0
    %3017 = vmatpush1.bf16.msra.mxu0 %v2997
    %3018 = vmatprep.subr.bf16.mxu0 0
    %3019 = vmatpush2.bf16.msra.mxu0 0
    %3020 = vmatprep.subr.bf16.mxu0 0
    %3021 = vmatpush2.bf16.msra.mxu0 0
    %3022 = vmatprep.subr.bf16.mxu0 0
    %3023 = vmatpush2.bf16.msra.mxu0 0
    %3024 = vmatprep.subr.bf16.mxu0 0
    %3025 = vmatpush2.bf16.msra.mxu0 0
    %3026 = vmatprep.subr.bf16.mxu0 0
    %3027 = vmatpush2.bf16.msra.mxu0 0
    %3028 = vmatprep.subr.bf16.mxu0 0
    %3029 = vmatpush2.bf16.msra.mxu0 0
    %3030 = vmatprep.subr.bf16.mxu0 0
    %3031 = vmatpush2.bf16.msra.mxu0 0
    %3032 = vmatprep.subr.bf16.mxu0 0
    %3033 = vmatpush2.bf16.msra.mxu0 0
    %3034 = vmatprep.mubr.bf16.mxu0 0
    %3035 = vmatmul.mubr.bf16.gmra.mxu0 %v3000
    %v3036 = vpop.f32.mrf.mxu0
    %v3037 = vadd.f32 0.0, %v3036
    %v3038 = vpop.f32.mrf.mxu0
    %v3039 = vpop.f32.mrf.mxu0
    %v3040 = vadd.f32 0.0, %v3039
    %v3041 = vpop.f32.mrf.mxu0
    %3042 = vdwg.mxu0
    %s3043 = scalar_lea.vmem %s4, 80
    %v3044 = vld [vmem:[%s3043] sm:$0xff]
    %v3046 = vsel %vm225, %v3037, 0
    %v3049 = vsel %vm225, %v3040, 0
    %3051 = vmatprep.subr.mxu0 0.0
    %3052 = vmatpush1.msra.mxu0 0.0
    %3053 = vmatprep.subr.mxu0 0.0
    %3054 = vmatpush1.msra.mxu0 0.0
    %3055 = vmatprep.subr.mxu0 0.0
    %3056 = vmatpush1.msra.mxu0 0.0
    %3057 = vmatprep.subr.mxu0 0.0
    %3058 = vmatpush1.msra.mxu0 0.0
    %3059 = vmatprep.subr.mxu0 0.0
    %3060 = vmatpush1.msra.mxu0 0.0
    %3061 = vmatprep.subr.mxu0 0.0
    %3062 = vmatpush1.msra.mxu0 0.0
    %3063 = vmatprep.subr.mxu0 0.0
    %3064 = vmatpush1.msra.mxu0 0.0
    %3065 = vmatprep.subr.mxu0 0.0
    %3066 = vmatpush1.msra.mxu0 0.0
    %3067 = vmatprep.subr.mxu0 0.0
    %3068 = vmatpush1.msra.mxu0 0.0
    %3069 = vmatprep.subr.mxu0 0.0
    %3070 = vmatpush1.msra.mxu0 0.0
    %3071 = vmatprep.subr.mxu0 0.0
    %3072 = vmatpush1.msra.mxu0 0.0
    %3073 = vmatprep.subr.mxu0 0.0
    %3074 = vmatpush1.msra.mxu0 0.0
    %3075 = vmatprep.subr.mxu0 0.0
    %3076 = vmatpush1.msra.mxu0 0.0
    %3077 = vmatprep.subr.mxu0 0.0
    %3078 = vmatpush1.msra.mxu0 0.0
    %3079 = vmatprep.subr.mxu0 0.0
    %3080 = vmatpush1.msra.mxu0 0.0
    %3081 = vmatprep.subr.mxu0 0.0
    %3082 = vmatpush1.msra.mxu0 %v3044
    %3083 = vmatprep.subr.mxu0 0.0
    %3084 = vmatpush2.msra.mxu0 0.0
    %3085 = vmatprep.subr.mxu0 0.0
    %3086 = vmatpush2.msra.mxu0 0.0
    %3087 = vmatprep.subr.mxu0 0.0
    %3088 = vmatpush2.msra.mxu0 0.0
    %3089 = vmatprep.subr.mxu0 0.0
    %3090 = vmatpush2.msra.mxu0 0.0
    %3091 = vmatprep.subr.mxu0 0.0
    %3092 = vmatpush2.msra.mxu0 0.0
    %3093 = vmatprep.subr.mxu0 0.0
    %3094 = vmatpush2.msra.mxu0 0.0
    %3095 = vmatprep.subr.mxu0 0.0
    %3096 = vmatpush2.msra.mxu0 0.0
    %3097 = vmatprep.subr.mxu0 0.0
    %3098 = vmatpush2.msra.mxu0 0.0
    %3099 = vmatprep.subr.mxu0 0.0
    %3100 = vmatpush2.msra.mxu0 0.0
    %3101 = vmatprep.subr.mxu0 0.0
    %3102 = vmatpush2.msra.mxu0 0.0
    %3103 = vmatprep.subr.mxu0 0.0
    %3104 = vmatpush2.msra.mxu0 0.0
    %3105 = vmatprep.subr.mxu0 0.0
    %3106 = vmatpush2.msra.mxu0 0.0
    %3107 = vmatprep.subr.mxu0 0.0
    %3108 = vmatpush2.msra.mxu0 0.0
    %3109 = vmatprep.subr.mxu0 0.0
    %3110 = vmatpush2.msra.mxu0 0.0
    %3111 = vmatprep.subr.mxu0 0.0
    %3112 = vmatpush2.msra.mxu0 0.0
    %3113 = vmatprep.subr.mxu0 0.0
    %3114 = vmatpush2.msra.mxu0 0.0
    %3115 = vmatprep.mubr.f32.mxu0 0.0
    %3116 = vmatmul.mubr.f32.gmra.mxu0 %v3046
    %v3117 = vpop.f32.mrf.mxu0
    %v3118 = vadd.f32 0.0, %v3117
    %v3119 = vpop.f32.mrf.mxu0
    %3120 = vmatprep.mubr.f32.mxu0 0.0
    %3121 = vmatmul.mubr.f32.gmra.mxu0 %v3049
    %v3122 = vpop.f32.mrf.mxu0
    %v3123 = vadd.f32 0.0, %v3122
    %v3124 = vpop.f32.mrf.mxu0
    %3125 = vdwg.mxu0
    %v3126 = vadd.f32 %v2914, %v3118
    %v3127 = vadd.f32 %v2919, %v3123
    %3128 = vrot.lane.b32.xlu0 %v2513, 104
    %v3129 = vpop.permute.xlu0 %3128
    %3130 = vrot.lane.b32.xlu0 %v2514, 72
    %v3131 = vpop.permute.xlu0 %3130
    %v3133 = vsel %vm225, %v3129, 0
    %v3136 = vsel %vm225, %v3131, 0
    %3138 = vmatprep.subr.bf16.mxu0 0
    %3139 = vmatpush1.bf16.xpose.msra.mxu0 0
    %3140 = vmatprep.subr.bf16.mxu0 0
    %3141 = vmatpush1.bf16.xpose.msra.mxu0 0
    %3142 = vmatprep.subr.bf16.mxu0 0
    %3143 = vmatpush1.bf16.xpose.msra.mxu0 0
    %3144 = vmatprep.subr.bf16.mxu0 0
    %3145 = vmatpush1.bf16.xpose.msra.mxu0 0
    %3146 = vmatprep.subr.bf16.mxu0 0
    %3147 = vmatpush1.bf16.xpose.msra.mxu0 0
    %3148 = vmatprep.subr.bf16.mxu0 0
    %3149 = vmatpush1.bf16.xpose.msra.mxu0 0
    %3150 = vmatprep.subr.bf16.mxu0 0
    %3151 = vmatpush1.bf16.xpose.msra.mxu0 0
    %3152 = vmatprep.subr.bf16.mxu0 0
    %3153 = vmatpush1.bf16.xpose.msra.mxu0 %v3136
    %3154 = vmatprep.subr.bf16.mxu0 0
    %3155 = vmatpush2.bf16.xpose.msra.mxu0 0
    %3156 = vmatprep.subr.bf16.mxu0 0
    %3157 = vmatpush2.bf16.xpose.msra.mxu0 0
    %3158 = vmatprep.subr.bf16.mxu0 0
    %3159 = vmatpush2.bf16.xpose.msra.mxu0 0
    %3160 = vmatprep.subr.bf16.mxu0 0
    %3161 = vmatpush2.bf16.xpose.msra.mxu0 0
    %3162 = vmatprep.subr.bf16.mxu0 0
    %3163 = vmatpush2.bf16.xpose.msra.mxu0 0
    %3164 = vmatprep.subr.bf16.mxu0 0
    %3165 = vmatpush2.bf16.xpose.msra.mxu0 0
    %3166 = vmatprep.subr.bf16.mxu0 0
    %3167 = vmatpush2.bf16.xpose.msra.mxu0 0
    %3168 = vmatprep.subr.bf16.mxu0 0
    %3169 = vmatpush2.bf16.xpose.msra.mxu0 0
    %3170 = vmatprep.mubr.bf16.mxu0 0
    %3171 = vmatmul.mubr.bf16.gmra.mxu0 %v3133
    %v3172 = vpop.f32.mrf.mxu0
    %v3173 = vadd.f32 %v84, %v3172
    %v3174 = vpop.f32.mrf.mxu0
    %v3175 = vpop.f32.mrf.mxu0
    %v3176 = vadd.f32 %v85, %v3175
    %v3177 = vpop.f32.mrf.mxu0
    %3178 = vdwg.mxu0
    %v3179 = vsel %vm273, %v3173, -inf
    %3180 = vmax.xlane.f32.xlu0 %v3179
    %v3181 = vpop.xlane.xlu0 %3180
    %v3182 = vsel %vm273, %v3176, -inf
    %3183 = vmax.xlane.f32.xlu0 %v3182
    %v3184 = vpop.xlane.xlu0 %3183
    %v3185 = vsub.f32 %v3173, %v3181
    %v3186 = vsub.f32 %v3176, %v3184
    %v3187 = vmul.f32 %v3185, 1.442695
    %v3188 = vpow.pop %v3187
    %v3189 = vmul.f32 %v3186, 1.442695
    %v3190 = vpow.pop %v3189
    %v3191 = vsel %vm273, %v3188, 0.0
    %3192 = vadd.xlane.f32.xlu0 %v3191
    %v3193 = vpop.xlane.xlu0 %3192
    %v3194 = vsel %vm273, %v3190, 0.0
    %3195 = vadd.xlane.f32.xlu0 %v3194
    %v3196 = vpop.xlane.xlu0 %3195
    %v3197 = vrcp.pop %v3193
    %v3198 = vrcp.pop %v3196
    %v3199 = vmul.f32 %v3188, %v3197
    %v3200 = vmul.f32 %v3190, %v3198
    %v3201 = vpack.c.bf16 %v3200, %v3199
    %3202 = vrot.lane.b32.xlu0 %v2515, 104
    %v3203 = vpop.permute.xlu0 %3202
    %v3206 = vsel %vm273, %v3201, 0
    %3208 = vmatprep.subr.bf16.mxu0 0
    %3209 = vmatpush1.bf16.msra.mxu0 0
    %3210 = vmatprep.subr.bf16.mxu0 0
    %3211 = vmatpush1.bf16.msra.mxu0 0
    %3212 = vmatprep.subr.bf16.mxu0 0
    %3213 = vmatpush1.bf16.msra.mxu0 0
    %3214 = vmatprep.subr.bf16.mxu0 0
    %3215 = vmatpush1.bf16.msra.mxu0 0
    %3216 = vmatprep.subr.bf16.mxu0 0
    %3217 = vmatpush1.bf16.msra.mxu0 0
    %3218 = vmatprep.subr.bf16.mxu0 0
    %3219 = vmatpush1.bf16.msra.mxu0 0
    %3220 = vmatprep.subr.bf16.mxu0 0
    %3221 = vmatpush1.bf16.msra.mxu0 0
    %3222 = vmatprep.subr.bf16.mxu0 0
    %3223 = vmatpush1.bf16.msra.mxu0 %v3203
    %3224 = vmatprep.subr.bf16.mxu0 0
    %3225 = vmatpush2.bf16.msra.mxu0 0
    %3226 = vmatprep.subr.bf16.mxu0 0
    %3227 = vmatpush2.bf16.msra.mxu0 0
    %3228 = vmatprep.subr.bf16.mxu0 0
    %3229 = vmatpush2.bf16.msra.mxu0 0
    %3230 = vmatprep.subr.bf16.mxu0 0
    %3231 = vmatpush2.bf16.msra.mxu0 0
    %3232 = vmatprep.subr.bf16.mxu0 0
    %3233 = vmatpush2.bf16.msra.mxu0 0
    %3234 = vmatprep.subr.bf16.mxu0 0
    %3235 = vmatpush2.bf16.msra.mxu0 0
    %3236 = vmatprep.subr.bf16.mxu0 0
    %3237 = vmatpush2.bf16.msra.mxu0 0
    %3238 = vmatprep.subr.bf16.mxu0 0
    %3239 = vmatpush2.bf16.msra.mxu0 0
    %3240 = vmatprep.mubr.bf16.mxu0 0
    %3241 = vmatmul.mubr.bf16.gmra.mxu0 %v3206
    %v3242 = vpop.f32.mrf.mxu0
    %v3243 = vadd.f32 0.0, %v3242
    %v3244 = vpop.f32.mrf.mxu0
    %v3245 = vpop.f32.mrf.mxu0
    %v3246 = vadd.f32 0.0, %v3245
    %v3247 = vpop.f32.mrf.mxu0
    %3248 = vdwg.mxu0
    %s3249 = scalar_lea.vmem %s4, 88
    %v3250 = vld [vmem:[%s3249] sm:$0xff]
    %v3252 = vsel %vm225, %v3243, 0
    %v3255 = vsel %vm225, %v3246, 0
    %3257 = vmatprep.subr.mxu0 0.0
    %3258 = vmatpush1.msra.mxu0 0.0
    %3259 = vmatprep.subr.mxu0 0.0
    %3260 = vmatpush1.msra.mxu0 0.0
    %3261 = vmatprep.subr.mxu0 0.0
    %3262 = vmatpush1.msra.mxu0 0.0
    %3263 = vmatprep.subr.mxu0 0.0
    %3264 = vmatpush1.msra.mxu0 0.0
    %3265 = vmatprep.subr.mxu0 0.0
    %3266 = vmatpush1.msra.mxu0 0.0
    %3267 = vmatprep.subr.mxu0 0.0
    %3268 = vmatpush1.msra.mxu0 0.0
    %3269 = vmatprep.subr.mxu0 0.0
    %3270 = vmatpush1.msra.mxu0 0.0
    %3271 = vmatprep.subr.mxu0 0.0
    %3272 = vmatpush1.msra.mxu0 0.0
    %3273 = vmatprep.subr.mxu0 0.0
    %3274 = vmatpush1.msra.mxu0 0.0
    %3275 = vmatprep.subr.mxu0 0.0
    %3276 = vmatpush1.msra.mxu0 0.0
    %3277 = vmatprep.subr.mxu0 0.0
    %3278 = vmatpush1.msra.mxu0 0.0
    %3279 = vmatprep.subr.mxu0 0.0
    %3280 = vmatpush1.msra.mxu0 0.0
    %3281 = vmatprep.subr.mxu0 0.0
    %3282 = vmatpush1.msra.mxu0 0.0
    %3283 = vmatprep.subr.mxu0 0.0
    %3284 = vmatpush1.msra.mxu0 0.0
    %3285 = vmatprep.subr.mxu0 0.0
    %3286 = vmatpush1.msra.mxu0 0.0
    %3287 = vmatprep.subr.mxu0 0.0
    %3288 = vmatpush1.msra.mxu0 %v3250
    %3289 = vmatprep.subr.mxu0 0.0
    %3290 = vmatpush2.msra.mxu0 0.0
    %3291 = vmatprep.subr.mxu0 0.0
    %3292 = vmatpush2.msra.mxu0 0.0
    %3293 = vmatprep.subr.mxu0 0.0
    %3294 = vmatpush2.msra.mxu0 0.0
    %3295 = vmatprep.subr.mxu0 0.0
    %3296 = vmatpush2.msra.mxu0 0.0
    %3297 = vmatprep.subr.mxu0 0.0
    %3298 = vmatpush2.msra.mxu0 0.0
    %3299 = vmatprep.subr.mxu0 0.0
    %3300 = vmatpush2.msra.mxu0 0.0
    %3301 = vmatprep.subr.mxu0 0.0
    %3302 = vmatpush2.msra.mxu0 0.0
    %3303 = vmatprep.subr.mxu0 0.0
    %3304 = vmatpush2.msra.mxu0 0.0
    %3305 = vmatprep.subr.mxu0 0.0
    %3306 = vmatpush2.msra.mxu0 0.0
    %3307 = vmatprep.subr.mxu0 0.0
    %3308 = vmatpush2.msra.mxu0 0.0
    %3309 = vmatprep.subr.mxu0 0.0
    %3310 = vmatpush2.msra.mxu0 0.0
    %3311 = vmatprep.subr.mxu0 0.0
    %3312 = vmatpush2.msra.mxu0 0.0
    %3313 = vmatprep.subr.mxu0 0.0
    %3314 = vmatpush2.msra.mxu0 0.0
    %3315 = vmatprep.subr.mxu0 0.0
    %3316 = vmatpush2.msra.mxu0 0.0
    %3317 = vmatprep.subr.mxu0 0.0
    %3318 = vmatpush2.msra.mxu0 0.0
    %3319 = vmatprep.subr.mxu0 0.0
    %3320 = vmatpush2.msra.mxu0 0.0
    %3321 = vmatprep.mubr.f32.mxu0 0.0
    %3322 = vmatmul.mubr.f32.gmra.mxu0 %v3252
    %v3323 = vpop.f32.mrf.mxu0
    %v3324 = vadd.f32 0.0, %v3323
    %v3325 = vpop.f32.mrf.mxu0
    %3326 = vmatprep.mubr.f32.mxu0 0.0
    %3327 = vmatmul.mubr.f32.gmra.mxu0 %v3255
    %v3328 = vpop.f32.mrf.mxu0
    %v3329 = vadd.f32 0.0, %v3328
    %v3330 = vpop.f32.mrf.mxu0
    %3331 = vdwg.mxu0
    %v3332 = vadd.f32 %v3126, %v3324
    %v3333 = vadd.f32 %v3127, %v3329
    %v3334 = vlaneseq
    %v3335 = vshrl.u32 %v3334, 7
    %v3336 = vsub.s32 2, %v3335
    %v3337 = vrot.slane %v2386, %v3336
    %v3338 = vadd.f32 %v3332, %v3337
    %v3339 = vadd.f32 %v3333, %v3337
    %v3340 = vadd.f32 %v2383, %v3338
    %v3341 = vadd.f32 %v2384, %v3339
    %v3342 = vsel %vm114, %v3340, 0.0
    %3343 = vadd.xlane.f32.xlu0 %v3342
    %v3344 = vpop.xlane.xlu0 %3343
    %v3345 = vsel %vm114, %v3341, 0.0
    %3346 = vadd.xlane.f32.xlu0 %v3345
    %v3347 = vpop.xlane.xlu0 %3346
    %v3348 = vmul.f32 %v3344, %v1055
    %v3349 = vmul.f32 %v3347, %v1055
    %v3350 = vmul.f32 %v3340, %v3340
    %v3351 = vmul.f32 %v3341, %v3341
    %v3352 = vsel %vm114, %v3350, 0.0
    %3353 = vadd.xlane.f32.xlu0 %v3352
    %v3354 = vpop.xlane.xlu0 %3353
    %v3355 = vsel %vm114, %v3351, 0.0
    %3356 = vadd.xlane.f32.xlu0 %v3355
    %v3357 = vpop.xlane.xlu0 %3356
    %v3358 = vmul.f32 %v3354, %v1055
    %v3359 = vmul.f32 %v3357, %v1055
    %v3360 = vmul.f32 %v3348, %v3348
    %v3361 = vmul.f32 %v3349, %v3349
    %v3362 = vsub.f32 %v3358, %v3360
    %v3363 = vsub.f32 %v3359, %v3361
    %v3364 = vmax.f32 %v3362, 0.0
    %v3365 = vmax.f32 %v3363, 0.0
    %v3366 = vsub.f32 %v3340, %v3348
    %v3367 = vsub.f32 %v3341, %v3349
    %v3368 = vadd.f32 %v3364, 1e-05
    %v3369 = vadd.f32 %v3365, 1e-05
    %v3370 = vrsqrt.pop %v3368
    %v3371 = vrsqrt.pop %v3369
    %v3372 = vmul.f32 %v3366, %v3370
    %v3373 = vmul.f32 %v3367, %v3371
    %v3374 = vlaneseq
    %v3375 = vshrl.u32 %v3374, 7
    %v3376 = vsub.s32 6, %v3375
    %v3377 = vrot.slane %v2386, %v3376
    %v3378 = vmul.f32 %v3372, %v3377
    %v3379 = vmul.f32 %v3373, %v3377
    %v3380 = vlaneseq
    %v3381 = vshrl.u32 %v3380, 7
    %v3382 = vsub.s32 7, %v3381
    %v3383 = vrot.slane %v2386, %v3382
    %v3384 = vadd.f32 %v3378, %v3383
    %v3385 = vadd.f32 %v3379, %v3383
    %v3386 = vadd.f32 %v3384, %v74
    %v3387 = vadd.f32 %v3385, %v75
    %v3388 = vpack.c.bf16 %v3387, %v3386
    %s3389 = scalar_lea.vmem %s3, 48
    %v3390 = vld [vmem:[%s3389] sm:$0xf]
    %v3391 = vld [vmem:[%s3389 + $0x4] sm:$0xf]
    %v3392 = vld [vmem:[%s3389 + $0x8] sm:$0xf]
    %v3393 = vld [vmem:[%s3389 + $0xc] sm:$0xf]
    %v3394 = vlaneseq
    %v3395 = vshrl.u32 %v3394, 7
    %v3396 = vsub.s32 1, %v3395
    %v3397 = vrot.slane %v2386, %v3396
    %v3402 = vunpack.c.l.b16 %v3390
    %v3403 = vunpack.c.l.b16 %v3391
    %v3404 = vunpack.c.l.b16 %v3392
    %v3405 = vunpack.c.l.b16 %v3393
    %v3406 = vpack.c.b16 %v3403, %v3402
    %v3407 = vpack.c.b16 %v3405, %v3404
    %v3411 = vsel %vm114, %v3388, 0
    %3413 = vmatprep.subr.bf16.mxu0 0
    %3414 = vmatpush1.bf16.msra.mxu0 0
    %3415 = vmatprep.subr.bf16.mxu0 0
    %3416 = vmatpush1.bf16.msra.mxu0 0
    %3417 = vmatprep.subr.bf16.mxu0 0
    %3418 = vmatpush1.bf16.msra.mxu0 0
    %3419 = vmatprep.subr.bf16.mxu0 0
    %3420 = vmatpush1.bf16.msra.mxu0 0
    %3421 = vmatprep.subr.bf16.mxu0 0
    %3422 = vmatpush1.bf16.msra.mxu0 0
    %3423 = vmatprep.subr.bf16.mxu0 0
    %3424 = vmatpush1.bf16.msra.mxu0 0
    %3425 = vmatprep.subr.bf16.mxu0 0
    %3426 = vmatpush1.bf16.msra.mxu0 %v3407
    %3427 = vmatprep.subr.bf16.mxu0 0
    %3428 = vmatpush1.bf16.msra.mxu0 %v3406
    %3429 = vmatprep.subr.bf16.mxu0 0
    %3430 = vmatpush2.bf16.msra.mxu0 0
    %3431 = vmatprep.subr.bf16.mxu0 0
    %3432 = vmatpush2.bf16.msra.mxu0 0
    %3433 = vmatprep.subr.bf16.mxu0 0
    %3434 = vmatpush2.bf16.msra.mxu0 0
    %3435 = vmatprep.subr.bf16.mxu0 0
    %3436 = vmatpush2.bf16.msra.mxu0 0
    %3437 = vmatprep.subr.bf16.mxu0 0
    %3438 = vmatpush2.bf16.msra.mxu0 0
    %3439 = vmatprep.subr.bf16.mxu0 0
    %3440 = vmatpush2.bf16.msra.mxu0 0
    %3441 = vmatprep.subr.bf16.mxu0 0
    %3442 = vmatpush2.bf16.msra.mxu0 0
    %3443 = vmatprep.subr.bf16.mxu0 0
    %3444 = vmatpush2.bf16.msra.mxu0 0
    %3445 = vmatprep.mubr.bf16.mxu0 0
    %3446 = vmatmul.mubr.bf16.gmra.mxu0 %v3411
    %v3447 = vpop.f32.mrf.mxu0
    %v3448 = vadd.f32 %v3397, %v3447
    %v3449 = vpop.f32.mrf.mxu0
    %v3450 = vpop.f32.mrf.mxu0
    %v3451 = vadd.f32 %v3397, %v3450
    %v3452 = vpop.f32.mrf.mxu0
    %3453 = vdwg.mxu0
    %3454 = vrot.lane.b32.xlu0 %v3406, 96
    %v3455 = vpop.permute.xlu0 %3454
    %3456 = vrot.lane.b32.xlu0 %v3407, 96
    %v3457 = vpop.permute.xlu0 %3456
    %3460 = vmatprep.subr.bf16.mxu0 0
    %3461 = vmatpush1.bf16.msra.mxu0 0
    %3462 = vmatprep.subr.bf16.mxu0 0
    %3463 = vmatpush1.bf16.msra.mxu0 0
    %3464 = vmatprep.subr.bf16.mxu0 0
    %3465 = vmatpush1.bf16.msra.mxu0 0
    %3466 = vmatprep.subr.bf16.mxu0 0
    %3467 = vmatpush1.bf16.msra.mxu0 0
    %3468 = vmatprep.subr.bf16.mxu0 0
    %3469 = vmatpush1.bf16.msra.mxu0 0
    %3470 = vmatprep.subr.bf16.mxu0 0
    %3471 = vmatpush1.bf16.msra.mxu0 0
    %3472 = vmatprep.subr.bf16.mxu0 0
    %3473 = vmatpush1.bf16.msra.mxu0 %v3457
    %3474 = vmatprep.subr.bf16.mxu0 0
    %3475 = vmatpush1.bf16.msra.mxu0 %v3455
    %3476 = vmatprep.subr.bf16.mxu0 0
    %3477 = vmatpush2.bf16.msra.mxu0 0
    %3478 = vmatprep.subr.bf16.mxu0 0
    %3479 = vmatpush2.bf16.msra.mxu0 0
    %3480 = vmatprep.subr.bf16.mxu0 0
    %3481 = vmatpush2.bf16.msra.mxu0 0
    %3482 = vmatprep.subr.bf16.mxu0 0
    %3483 = vmatpush2.bf16.msra.mxu0 0
    %3484 = vmatprep.subr.bf16.mxu0 0
    %3485 = vmatpush2.bf16.msra.mxu0 0
    %3486 = vmatprep.subr.bf16.mxu0 0
    %3487 = vmatpush2.bf16.msra.mxu0 0
    %3488 = vmatprep.subr.bf16.mxu0 0
    %3489 = vmatpush2.bf16.msra.mxu0 0
    %3490 = vmatprep.subr.bf16.mxu0 0
    %3491 = vmatpush2.bf16.msra.mxu0 0
    %3492 = vmatprep.mubr.bf16.mxu0 0
    %3493 = vmatmul.mubr.bf16.gmra.mxu0 %v1169
    %v3494 = vpop.f32.mrf.mxu0
    %v3495 = vadd.f32 0.0, %v3494
    %v3496 = vpop.f32.mrf.mxu0
    %v3497 = vpop.f32.mrf.mxu0
    %v3498 = vadd.f32 0.0, %v3497
    %v3499 = vpop.f32.mrf.mxu0
    %3500 = vmatprep.mubr.bf16.mxu0 0
    %3501 = vmatmul.mubr.bf16.gmra.mxu0 %v1172
    %v3502 = vpop.f32.mrf.mxu0
    %v3503 = vadd.f32 0.0, %v3502
    %v3504 = vpop.f32.mrf.mxu0
    %v3505 = vpop.f32.mrf.mxu0
    %v3506 = vadd.f32 0.0, %v3505
    %v3507 = vpop.f32.mrf.mxu0
    %3508 = vdwg.mxu0
    %3509 = vrot.lane.b32.xlu0 %v3406, 64
    %v3510 = vpop.permute.xlu0 %3509
    %3511 = vrot.lane.b32.xlu0 %v3407, 64
    %v3512 = vpop.permute.xlu0 %3511
    %3516 = vrot.lane.b32.xlu0 %v3397, 64
    %v3517 = vpop.permute.xlu0 %3516
    %3519 = vmatprep.subr.bf16.mxu0 0
    %3520 = vmatpush1.bf16.msra.mxu0 0
    %3521 = vmatprep.subr.bf16.mxu0 0
    %3522 = vmatpush1.bf16.msra.mxu0 0
    %3523 = vmatprep.subr.bf16.mxu0 0
    %3524 = vmatpush1.bf16.msra.mxu0 0
    %3525 = vmatprep.subr.bf16.mxu0 0
    %3526 = vmatpush1.bf16.msra.mxu0 0
    %3527 = vmatprep.subr.bf16.mxu0 0
    %3528 = vmatpush1.bf16.msra.mxu0 0
    %3529 = vmatprep.subr.bf16.mxu0 0
    %3530 = vmatpush1.bf16.msra.mxu0 0
    %3531 = vmatprep.subr.bf16.mxu0 0
    %3532 = vmatpush1.bf16.msra.mxu0 %v3512
    %3533 = vmatprep.subr.bf16.mxu0 0
    %3534 = vmatpush1.bf16.msra.mxu0 %v3510
    %3535 = vmatprep.subr.bf16.mxu0 0
    %3536 = vmatpush2.bf16.msra.mxu0 0
    %3537 = vmatprep.subr.bf16.mxu0 0
    %3538 = vmatpush2.bf16.msra.mxu0 0
    %3539 = vmatprep.subr.bf16.mxu0 0
    %3540 = vmatpush2.bf16.msra.mxu0 0
    %3541 = vmatprep.subr.bf16.mxu0 0
    %3542 = vmatpush2.bf16.msra.mxu0 0
    %3543 = vmatprep.subr.bf16.mxu0 0
    %3544 = vmatpush2.bf16.msra.mxu0 0
    %3545 = vmatprep.subr.bf16.mxu0 0
    %3546 = vmatpush2.bf16.msra.mxu0 0
    %3547 = vmatprep.subr.bf16.mxu0 0
    %3548 = vmatpush2.bf16.msra.mxu0 0
    %3549 = vmatprep.subr.bf16.mxu0 0
    %3550 = vmatpush2.bf16.msra.mxu0 0
    %3551 = vmatprep.mubr.bf16.mxu0 0
    %3552 = vmatmul.mubr.bf16.gmra.mxu0 %v1234
    %v3553 = vpop.f32.mrf.mxu0
    %v3554 = vadd.f32 %v3517, %v3553
    %v3555 = vpop.f32.mrf.mxu0
    %v3556 = vpop.f32.mrf.mxu0
    %v3557 = vadd.f32 %v3517, %v3556
    %v3558 = vpop.f32.mrf.mxu0
    %3559 = vmatprep.mubr.bf16.mxu0 0
    %3560 = vmatmul.mubr.bf16.gmra.mxu0 %v1237
    %v3561 = vpop.f32.mrf.mxu0
    %v3562 = vadd.f32 %v3517, %v3561
    %v3563 = vpop.f32.mrf.mxu0
    %v3564 = vpop.f32.mrf.mxu0
    %v3565 = vadd.f32 %v3517, %v3564
    %v3566 = vpop.f32.mrf.mxu0
    %3567 = vdwg.mxu0
    %v3568 = vpack.c.bf16 %v3451, %v3448
    %v3569 = vpack.c.bf16 %v3498, %v3495
    %v3570 = vpack.c.bf16 %v3506, %v3503
    %v3571 = vpack.c.bf16 %v3557, %v3554
    %v3572 = vpack.c.bf16 %v3565, %v3562
    %v3574 = vsel %vm225, %v3568, 0
    %v3577 = vsel %vm225, %v3569, 0
    %v3580 = vsel %vm225, %v3570, 0
    %3582 = vmatprep.subr.bf16.mxu0 0
    %3583 = vmatpush1.bf16.xpose.msra.mxu0 0
    %3584 = vmatprep.subr.bf16.mxu0 0
    %3585 = vmatpush1.bf16.xpose.msra.mxu0 0
    %3586 = vmatprep.subr.bf16.mxu0 0
    %3587 = vmatpush1.bf16.xpose.msra.mxu0 0
    %3588 = vmatprep.subr.bf16.mxu0 0
    %3589 = vmatpush1.bf16.xpose.msra.mxu0 0
    %3590 = vmatprep.subr.bf16.mxu0 0
    %3591 = vmatpush1.bf16.xpose.msra.mxu0 0
    %3592 = vmatprep.subr.bf16.mxu0 0
    %3593 = vmatpush1.bf16.xpose.msra.mxu0 0
    %3594 = vmatprep.subr.bf16.mxu0 0
    %3595 = vmatpush1.bf16.xpose.msra.mxu0 %v3580
    %3596 = vmatprep.subr.bf16.mxu0 0
    %3597 = vmatpush1.bf16.xpose.msra.mxu0 %v3577
    %3598 = vmatprep.subr.bf16.mxu0 0
    %3599 = vmatpush2.bf16.xpose.msra.mxu0 0
    %3600 = vmatprep.subr.bf16.mxu0 0
    %3601 = vmatpush2.bf16.xpose.msra.mxu0 0
    %3602 = vmatprep.subr.bf16.mxu0 0
    %3603 = vmatpush2.bf16.xpose.msra.mxu0 0
    %3604 = vmatprep.subr.bf16.mxu0 0
    %3605 = vmatpush2.bf16.xpose.msra.mxu0 0
    %3606 = vmatprep.subr.bf16.mxu0 0
    %3607 = vmatpush2.bf16.xpose.msra.mxu0 0
    %3608 = vmatprep.subr.bf16.mxu0 0
    %3609 = vmatpush2.bf16.xpose.msra.mxu0 0
    %3610 = vmatprep.subr.bf16.mxu0 0
    %3611 = vmatpush2.bf16.xpose.msra.mxu0 0
    %3612 = vmatprep.subr.bf16.mxu0 0
    %3613 = vmatpush2.bf16.xpose.msra.mxu0 0
    %3614 = vmatprep.mubr.bf16.mxu0 0
    %3615 = vmatmul.mubr.bf16.gmra.mxu0 %v3574
    %v3616 = vpop.f32.mrf.mxu0
    %v3617 = vadd.f32 %v86, %v3616
    %v3618 = vpop.f32.mrf.mxu0
    %v3619 = vpop.f32.mrf.mxu0
    %v3620 = vadd.f32 %v87, %v3619
    %v3621 = vpop.f32.mrf.mxu0
    %3622 = vdwg.mxu0
    %v3623 = vsel %vm114, %v3617, -inf
    %3624 = vmax.xlane.f32.xlu0 %v3623
    %v3625 = vpop.xlane.xlu0 %3624
    %v3626 = vsel %vm114, %v3620, -inf
    %3627 = vmax.xlane.f32.xlu0 %v3626
    %v3628 = vpop.xlane.xlu0 %3627
    %v3629 = vsub.f32 %v3617, %v3625
    %v3630 = vsub.f32 %v3620, %v3628
    %v3631 = vmul.f32 %v3629, 1.442695
    %v3632 = vpow.pop %v3631
    %v3633 = vmul.f32 %v3630, 1.442695
    %v3634 = vpow.pop %v3633
    %v3635 = vsel %vm114, %v3632, 0.0
    %3636 = vadd.xlane.f32.xlu0 %v3635
    %v3637 = vpop.xlane.xlu0 %3636
    %v3638 = vsel %vm114, %v3634, 0.0
    %3639 = vadd.xlane.f32.xlu0 %v3638
    %v3640 = vpop.xlane.xlu0 %3639
    %v3641 = vrcp.pop %v3637
    %v3642 = vrcp.pop %v3640
    %v3643 = vmul.f32 %v3632, %v3641
    %v3644 = vmul.f32 %v3634, %v3642
    %v3645 = vpack.c.bf16 %v3644, %v3643
    %v3647 = vsel %vm114, %v3645, 0
    %3649 = vmatprep.subr.bf16.mxu0 0
    %3650 = vmatpush1.bf16.msra.mxu0 0
    %3651 = vmatprep.subr.bf16.mxu0 0
    %3652 = vmatpush1.bf16.msra.mxu0 0
    %3653 = vmatprep.subr.bf16.mxu0 0
    %3654 = vmatpush1.bf16.msra.mxu0 0
    %3655 = vmatprep.subr.bf16.mxu0 0
    %3656 = vmatpush1.bf16.msra.mxu0 0
    %3657 = vmatprep.subr.bf16.mxu0 0
    %3658 = vmatpush1.bf16.msra.mxu0 0
    %3659 = vmatprep.subr.bf16.mxu0 0
    %3660 = vmatpush1.bf16.msra.mxu0 0
    %3661 = vmatprep.subr.bf16.mxu0 0
    %3662 = vmatpush1.bf16.msra.mxu0 %v3572
    %3663 = vmatprep.subr.bf16.mxu0 0
    %3664 = vmatpush1.bf16.msra.mxu0 %v3571
    %3665 = vmatprep.subr.bf16.mxu0 0
    %3666 = vmatpush2.bf16.msra.mxu0 0
    %3667 = vmatprep.subr.bf16.mxu0 0
    %3668 = vmatpush2.bf16.msra.mxu0 0
    %3669 = vmatprep.subr.bf16.mxu0 0
    %3670 = vmatpush2.bf16.msra.mxu0 0
    %3671 = vmatprep.subr.bf16.mxu0 0
    %3672 = vmatpush2.bf16.msra.mxu0 0
    %3673 = vmatprep.subr.bf16.mxu0 0
    %3674 = vmatpush2.bf16.msra.mxu0 0
    %3675 = vmatprep.subr.bf16.mxu0 0
    %3676 = vmatpush2.bf16.msra.mxu0 0
    %3677 = vmatprep.subr.bf16.mxu0 0
    %3678 = vmatpush2.bf16.msra.mxu0 0
    %3679 = vmatprep.subr.bf16.mxu0 0
    %3680 = vmatpush2.bf16.msra.mxu0 0
    %3681 = vmatprep.mubr.bf16.mxu0 0
    %3682 = vmatmul.mubr.bf16.gmra.mxu0 %v3647
    %v3683 = vpop.f32.mrf.mxu0
    %v3684 = vadd.f32 0.0, %v3683
    %v3685 = vpop.f32.mrf.mxu0
    %v3686 = vpop.f32.mrf.mxu0
    %v3687 = vadd.f32 0.0, %v3686
    %v3688 = vpop.f32.mrf.mxu0
    %3689 = vdwg.mxu0
    %s3690 = scalar_lea.vmem %s4, 96
    %v3691 = vld [vmem:[%s3690] sm:$0xff]
    %3693 = vrot.lane.b32.xlu0 %v3568, 120
    %v3694 = vpop.permute.xlu0 %3693
    %3697 = vrot.lane.b32.xlu0 %v3569, 120
    %v3698 = vpop.permute.xlu0 %3697
    %3699 = vrot.lane.b32.xlu0 %v3570, 120
    %v3700 = vpop.permute.xlu0 %3699
    %v3702 = vsel %vm225, %v3694, 0
    %v3705 = vsel %vm225, %v3698, 0
    %v3708 = vsel %vm225, %v3700, 0
    %3710 = vmatprep.subr.bf16.mxu0 0
    %3711 = vmatpush1.bf16.xpose.msra.mxu0 0
    %3712 = vmatprep.subr.bf16.mxu0 0
    %3713 = vmatpush1.bf16.xpose.msra.mxu0 0
    %3714 = vmatprep.subr.bf16.mxu0 0
    %3715 = vmatpush1.bf16.xpose.msra.mxu0 0
    %3716 = vmatprep.subr.bf16.mxu0 0
    %3717 = vmatpush1.bf16.xpose.msra.mxu0 0
    %3718 = vmatprep.subr.bf16.mxu0 0
    %3719 = vmatpush1.bf16.xpose.msra.mxu0 0
    %3720 = vmatprep.subr.bf16.mxu0 0
    %3721 = vmatpush1.bf16.xpose.msra.mxu0 0
    %3722 = vmatprep.subr.bf16.mxu0 0
    %3723 = vmatpush1.bf16.xpose.msra.mxu0 %v3708
    %3724 = vmatprep.subr.bf16.mxu0 0
    %3725 = vmatpush1.bf16.xpose.msra.mxu0 %v3705
    %3726 = vmatprep.subr.bf16.mxu0 0
    %3727 = vmatpush2.bf16.xpose.msra.mxu0 0
    %3728 = vmatprep.subr.bf16.mxu0 0
    %3729 = vmatpush2.bf16.xpose.msra.mxu0 0
    %3730 = vmatprep.subr.bf16.mxu0 0
    %3731 = vmatpush2.bf16.xpose.msra.mxu0 0
    %3732 = vmatprep.subr.bf16.mxu0 0
    %3733 = vmatpush2.bf16.xpose.msra.mxu0 0
    %3734 = vmatprep.subr.bf16.mxu0 0
    %3735 = vmatpush2.bf16.xpose.msra.mxu0 0
    %3736 = vmatprep.subr.bf16.mxu0 0
    %3737 = vmatpush2.bf16.xpose.msra.mxu0 0
    %3738 = vmatprep.subr.bf16.mxu0 0
    %3739 = vmatpush2.bf16.xpose.msra.mxu0 0
    %3740 = vmatprep.subr.bf16.mxu0 0
    %3741 = vmatpush2.bf16.xpose.msra.mxu0 0
    %3742 = vmatprep.mubr.bf16.mxu0 0
    %3743 = vmatmul.mubr.bf16.gmra.mxu0 %v3702
    %v3744 = vpop.f32.mrf.mxu0
    %v3745 = vadd.f32 %v86, %v3744
    %v3746 = vpop.f32.mrf.mxu0
    %v3747 = vpop.f32.mrf.mxu0
    %v3748 = vadd.f32 %v87, %v3747
    %v3749 = vpop.f32.mrf.mxu0
    %3750 = vdwg.mxu0
    %v3751 = vsel %vm114, %v3745, -inf
    %3752 = vmax.xlane.f32.xlu0 %v3751
    %v3753 = vpop.xlane.xlu0 %3752
    %v3754 = vsel %vm114, %v3748, -inf
    %3755 = vmax.xlane.f32.xlu0 %v3754
    %v3756 = vpop.xlane.xlu0 %3755
    %v3757 = vsub.f32 %v3745, %v3753
    %v3758 = vsub.f32 %v3748, %v3756
    %v3759 = vmul.f32 %v3757, 1.442695
    %v3760 = vpow.pop %v3759
    %v3761 = vmul.f32 %v3758, 1.442695
    %v3762 = vpow.pop %v3761
    %v3763 = vsel %vm114, %v3760, 0.0
    %3764 = vadd.xlane.f32.xlu0 %v3763
    %v3765 = vpop.xlane.xlu0 %3764
    %v3766 = vsel %vm114, %v3762, 0.0
    %3767 = vadd.xlane.f32.xlu0 %v3766
    %v3768 = vpop.xlane.xlu0 %3767
    %v3769 = vrcp.pop %v3765
    %v3770 = vrcp.pop %v3768
    %v3771 = vmul.f32 %v3760, %v3769
    %v3772 = vmul.f32 %v3762, %v3770
    %v3773 = vpack.c.bf16 %v3772, %v3771
    %3776 = vrot.lane.b32.xlu0 %v3571, 120
    %v3777 = vpop.permute.xlu0 %3776
    %3778 = vrot.lane.b32.xlu0 %v3572, 120
    %v3779 = vpop.permute.xlu0 %3778
    %v3783 = vsel %vm114, %v3773, 0
    %3785 = vmatprep.subr.bf16.mxu0 0
    %3786 = vmatpush1.bf16.msra.mxu0 0
    %3787 = vmatprep.subr.bf16.mxu0 0
    %3788 = vmatpush1.bf16.msra.mxu0 0
    %3789 = vmatprep.subr.bf16.mxu0 0
    %3790 = vmatpush1.bf16.msra.mxu0 0
    %3791 = vmatprep.subr.bf16.mxu0 0
    %3792 = vmatpush1.bf16.msra.mxu0 0
    %3793 = vmatprep.subr.bf16.mxu0 0
    %3794 = vmatpush1.bf16.msra.mxu0 0
    %3795 = vmatprep.subr.bf16.mxu0 0
    %3796 = vmatpush1.bf16.msra.mxu0 0
    %3797 = vmatprep.subr.bf16.mxu0 0
    %3798 = vmatpush1.bf16.msra.mxu0 %v3779
    %3799 = vmatprep.subr.bf16.mxu0 0
    %3800 = vmatpush1.bf16.msra.mxu0 %v3777
    %3801 = vmatprep.subr.bf16.mxu0 0
    %3802 = vmatpush2.bf16.msra.mxu0 0
    %3803 = vmatprep.subr.bf16.mxu0 0
    %3804 = vmatpush2.bf16.msra.mxu0 0
    %3805 = vmatprep.subr.bf16.mxu0 0
    %3806 = vmatpush2.bf16.msra.mxu0 0
    %3807 = vmatprep.subr.bf16.mxu0 0
    %3808 = vmatpush2.bf16.msra.mxu0 0
    %3809 = vmatprep.subr.bf16.mxu0 0
    %3810 = vmatpush2.bf16.msra.mxu0 0
    %3811 = vmatprep.subr.bf16.mxu0 0
    %3812 = vmatpush2.bf16.msra.mxu0 0
    %3813 = vmatprep.subr.bf16.mxu0 0
    %3814 = vmatpush2.bf16.msra.mxu0 0
    %3815 = vmatprep.subr.bf16.mxu0 0
    %3816 = vmatpush2.bf16.msra.mxu0 0
    %3817 = vmatprep.mubr.bf16.mxu0 0
    %3818 = vmatmul.mubr.bf16.gmra.mxu0 %v3783
    %v3819 = vpop.f32.mrf.mxu0
    %v3820 = vadd.f32 0.0, %v3819
    %v3821 = vpop.f32.mrf.mxu0
    %v3822 = vpop.f32.mrf.mxu0
    %v3823 = vadd.f32 0.0, %v3822
    %v3824 = vpop.f32.mrf.mxu0
    %3825 = vdwg.mxu0
    %s3826 = scalar_lea.vmem %s4, 104
    %v3827 = vld [vmem:[%s3826] sm:$0xff]
    %v3829 = vsel %vm225, %v3820, 0
    %v3832 = vsel %vm225, %v3823, 0
    %3834 = vmatprep.subr.mxu0 0.0
    %3835 = vmatpush1.msra.mxu0 0.0
    %3836 = vmatprep.subr.mxu0 0.0
    %3837 = vmatpush1.msra.mxu0 0.0
    %3838 = vmatprep.subr.mxu0 0.0
    %3839 = vmatpush1.msra.mxu0 0.0
    %3840 = vmatprep.subr.mxu0 0.0
    %3841 = vmatpush1.msra.mxu0 0.0
    %3842 = vmatprep.subr.mxu0 0.0
    %3843 = vmatpush1.msra.mxu0 0.0
    %3844 = vmatprep.subr.mxu0 0.0
    %3845 = vmatpush1.msra.mxu0 0.0
    %3846 = vmatprep.subr.mxu0 0.0
    %3847 = vmatpush1.msra.mxu0 0.0
    %3848 = vmatprep.subr.mxu0 0.0
    %3849 = vmatpush1.msra.mxu0 0.0
    %3850 = vmatprep.subr.mxu0 0.0
    %3851 = vmatpush1.msra.mxu0 0.0
    %3852 = vmatprep.subr.mxu0 0.0
    %3853 = vmatpush1.msra.mxu0 0.0
    %3854 = vmatprep.subr.mxu0 0.0
    %3855 = vmatpush1.msra.mxu0 0.0
    %3856 = vmatprep.subr.mxu0 0.0
    %3857 = vmatpush1.msra.mxu0 0.0
    %3858 = vmatprep.subr.mxu0 0.0
    %3859 = vmatpush1.msra.mxu0 0.0
    %3860 = vmatprep.subr.mxu0 0.0
    %3861 = vmatpush1.msra.mxu0 0.0
    %3862 = vmatprep.subr.mxu0 0.0
    %3863 = vmatpush1.msra.mxu0 0.0
    %3864 = vmatprep.subr.mxu0 0.0
    %3865 = vmatpush1.msra.mxu0 %v3827
    %3866 = vmatprep.subr.mxu0 0.0
    %3867 = vmatpush2.msra.mxu0 0.0
    %3868 = vmatprep.subr.mxu0 0.0
    %3869 = vmatpush2.msra.mxu0 0.0
    %3870 = vmatprep.subr.mxu0 0.0
    %3871 = vmatpush2.msra.mxu0 0.0
    %3872 = vmatprep.subr.mxu0 0.0
    %3873 = vmatpush2.msra.mxu0 0.0
    %3874 = vmatprep.subr.mxu0 0.0
    %3875 = vmatpush2.msra.mxu0 0.0
    %3876 = vmatprep.subr.mxu0 0.0
    %3877 = vmatpush2.msra.mxu0 0.0
    %3878 = vmatprep.subr.mxu0 0.0
    %3879 = vmatpush2.msra.mxu0 0.0
    %3880 = vmatprep.subr.mxu0 0.0
    %3881 = vmatpush2.msra.mxu0 0.0
    %3882 = vmatprep.subr.mxu0 0.0
    %3883 = vmatpush2.msra.mxu0 0.0
    %3884 = vmatprep.subr.mxu0 0.0
    %3885 = vmatpush2.msra.mxu0 0.0
    %3886 = vmatprep.subr.mxu0 0.0
    %3887 = vmatpush2.msra.mxu0 0.0
    %3888 = vmatprep.subr.mxu0 0.0
    %3889 = vmatpush2.msra.mxu0 0.0
    %3890 = vmatprep.subr.mxu0 0.0
    %3891 = vmatpush2.msra.mxu0 0.0
    %3892 = vmatprep.subr.mxu0 0.0
    %3893 = vmatpush2.msra.mxu0 0.0
    %3894 = vmatprep.subr.mxu0 0.0
    %3895 = vmatpush2.msra.mxu0 0.0
    %3896 = vmatprep.subr.mxu0 0.0
    %3897 = vmatpush2.msra.mxu0 0.0
    %3898 = vmatprep.mubr.f32.mxu0 0.0
    %3899 = vmatmul.mubr.f32.gmra.mxu0 %v3829
    %v3900 = vpop.f32.mrf.mxu0
    %v3901 = vadd.f32 0.0, %v3900
    %v3902 = vpop.f32.mrf.mxu0
    %3903 = vmatprep.mubr.f32.mxu0 0.0
    %3904 = vmatmul.mubr.f32.gmra.mxu0 %v3832
    %v3905 = vpop.f32.mrf.mxu0
    %v3906 = vadd.f32 0.0, %v3905
    %v3907 = vpop.f32.mrf.mxu0
    %3908 = vdwg.mxu0
    %v3910 = vsel %vm225, %v3684, 0
    %v3913 = vsel %vm225, %v3687, 0
    %3915 = vmatprep.subr.mxu0 0.0
    %3916 = vmatpush1.msra.mxu0 0.0
    %3917 = vmatprep.subr.mxu0 0.0
    %3918 = vmatpush1.msra.mxu0 0.0
    %3919 = vmatprep.subr.mxu0 0.0
    %3920 = vmatpush1.msra.mxu0 0.0
    %3921 = vmatprep.subr.mxu0 0.0
    %3922 = vmatpush1.msra.mxu0 0.0
    %3923 = vmatprep.subr.mxu0 0.0
    %3924 = vmatpush1.msra.mxu0 0.0
    %3925 = vmatprep.subr.mxu0 0.0
    %3926 = vmatpush1.msra.mxu0 0.0
    %3927 = vmatprep.subr.mxu0 0.0
    %3928 = vmatpush1.msra.mxu0 0.0
    %3929 = vmatprep.subr.mxu0 0.0
    %3930 = vmatpush1.msra.mxu0 0.0
    %3931 = vmatprep.subr.mxu0 0.0
    %3932 = vmatpush1.msra.mxu0 0.0
    %3933 = vmatprep.subr.mxu0 0.0
    %3934 = vmatpush1.msra.mxu0 0.0
    %3935 = vmatprep.subr.mxu0 0.0
    %3936 = vmatpush1.msra.mxu0 0.0
    %3937 = vmatprep.subr.mxu0 0.0
    %3938 = vmatpush1.msra.mxu0 0.0
    %3939 = vmatprep.subr.mxu0 0.0
    %3940 = vmatpush1.msra.mxu0 0.0
    %3941 = vmatprep.subr.mxu0 0.0
    %3942 = vmatpush1.msra.mxu0 0.0
    %3943 = vmatprep.subr.mxu0 0.0
    %3944 = vmatpush1.msra.mxu0 0.0
    %3945 = vmatprep.subr.mxu0 0.0
    %3946 = vmatpush1.msra.mxu0 %v3691
    %3947 = vmatprep.subr.mxu0 0.0
    %3948 = vmatpush2.msra.mxu0 0.0
    %3949 = vmatprep.subr.mxu0 0.0
    %3950 = vmatpush2.msra.mxu0 0.0
    %3951 = vmatprep.subr.mxu0 0.0
    %3952 = vmatpush2.msra.mxu0 0.0
    %3953 = vmatprep.subr.mxu0 0.0
    %3954 = vmatpush2.msra.mxu0 0.0
    %3955 = vmatprep.subr.mxu0 0.0
    %3956 = vmatpush2.msra.mxu0 0.0
    %3957 = vmatprep.subr.mxu0 0.0
    %3958 = vmatpush2.msra.mxu0 0.0
    %3959 = vmatprep.subr.mxu0 0.0
    %3960 = vmatpush2.msra.mxu0 0.0
    %3961 = vmatprep.subr.mxu0 0.0
    %3962 = vmatpush2.msra.mxu0 0.0
    %3963 = vmatprep.subr.mxu0 0.0
    %3964 = vmatpush2.msra.mxu0 0.0
    %3965 = vmatprep.subr.mxu0 0.0
    %3966 = vmatpush2.msra.mxu0 0.0
    %3967 = vmatprep.subr.mxu0 0.0
    %3968 = vmatpush2.msra.mxu0 0.0
    %3969 = vmatprep.subr.mxu0 0.0
    %3970 = vmatpush2.msra.mxu0 0.0
    %3971 = vmatprep.subr.mxu0 0.0
    %3972 = vmatpush2.msra.mxu0 0.0
    %3973 = vmatprep.subr.mxu0 0.0
    %3974 = vmatpush2.msra.mxu0 0.0
    %3975 = vmatprep.subr.mxu0 0.0
    %3976 = vmatpush2.msra.mxu0 0.0
    %3977 = vmatprep.subr.mxu0 0.0
    %3978 = vmatpush2.msra.mxu0 0.0
    %3979 = vmatprep.mubr.f32.mxu0 0.0
    %3980 = vmatmul.mubr.f32.gmra.mxu0 %v3910
    %v3981 = vpop.f32.mrf.mxu0
    %v3982 = vadd.f32 %v3901, %v3981
    %v3983 = vpop.f32.mrf.mxu0
    %3984 = vmatprep.mubr.f32.mxu0 0.0
    %3985 = vmatmul.mubr.f32.gmra.mxu0 %v3913
    %v3986 = vpop.f32.mrf.mxu0
    %v3987 = vadd.f32 %v3906, %v3986
    %v3988 = vpop.f32.mrf.mxu0
    %3989 = vdwg.mxu0
    %3990 = vrot.lane.b32.xlu0 %v3568, 112
    %v3991 = vpop.permute.xlu0 %3990
    %3992 = vrot.lane.b32.xlu0 %v3569, 112
    %v3993 = vpop.permute.xlu0 %3992
    %3994 = vrot.lane.b32.xlu0 %v3570, 112
    %v3995 = vpop.permute.xlu0 %3994
    %v3997 = vsel %vm225, %v3991, 0
    %v4000 = vsel %vm225, %v3993, 0
    %v4003 = vsel %vm225, %v3995, 0
    %4005 = vmatprep.subr.bf16.mxu0 0
    %4006 = vmatpush1.bf16.xpose.msra.mxu0 0
    %4007 = vmatprep.subr.bf16.mxu0 0
    %4008 = vmatpush1.bf16.xpose.msra.mxu0 0
    %4009 = vmatprep.subr.bf16.mxu0 0
    %4010 = vmatpush1.bf16.xpose.msra.mxu0 0
    %4011 = vmatprep.subr.bf16.mxu0 0
    %4012 = vmatpush1.bf16.xpose.msra.mxu0 0
    %4013 = vmatprep.subr.bf16.mxu0 0
    %4014 = vmatpush1.bf16.xpose.msra.mxu0 0
    %4015 = vmatprep.subr.bf16.mxu0 0
    %4016 = vmatpush1.bf16.xpose.msra.mxu0 0
    %4017 = vmatprep.subr.bf16.mxu0 0
    %4018 = vmatpush1.bf16.xpose.msra.mxu0 %v4003
    %4019 = vmatprep.subr.bf16.mxu0 0
    %4020 = vmatpush1.bf16.xpose.msra.mxu0 %v4000
    %4021 = vmatprep.subr.bf16.mxu0 0
    %4022 = vmatpush2.bf16.xpose.msra.mxu0 0
    %4023 = vmatprep.subr.bf16.mxu0 0
    %4024 = vmatpush2.bf16.xpose.msra.mxu0 0
    %4025 = vmatprep.subr.bf16.mxu0 0
    %4026 = vmatpush2.bf16.xpose.msra.mxu0 0
    %4027 = vmatprep.subr.bf16.mxu0 0
    %4028 = vmatpush2.bf16.xpose.msra.mxu0 0
    %4029 = vmatprep.subr.bf16.mxu0 0
    %4030 = vmatpush2.bf16.xpose.msra.mxu0 0
    %4031 = vmatprep.subr.bf16.mxu0 0
    %4032 = vmatpush2.bf16.xpose.msra.mxu0 0
    %4033 = vmatprep.subr.bf16.mxu0 0
    %4034 = vmatpush2.bf16.xpose.msra.mxu0 0
    %4035 = vmatprep.subr.bf16.mxu0 0
    %4036 = vmatpush2.bf16.xpose.msra.mxu0 0
    %4037 = vmatprep.mubr.bf16.mxu0 0
    %4038 = vmatmul.mubr.bf16.gmra.mxu0 %v3997
    %v4039 = vpop.f32.mrf.mxu0
    %v4040 = vadd.f32 %v86, %v4039
    %v4041 = vpop.f32.mrf.mxu0
    %v4042 = vpop.f32.mrf.mxu0
    %v4043 = vadd.f32 %v87, %v4042
    %v4044 = vpop.f32.mrf.mxu0
    %4045 = vdwg.mxu0
    %v4046 = vsel %vm114, %v4040, -inf
    %4047 = vmax.xlane.f32.xlu0 %v4046
    %v4048 = vpop.xlane.xlu0 %4047
    %v4049 = vsel %vm114, %v4043, -inf
    %4050 = vmax.xlane.f32.xlu0 %v4049
    %v4051 = vpop.xlane.xlu0 %4050
    %v4052 = vsub.f32 %v4040, %v4048
    %v4053 = vsub.f32 %v4043, %v4051
    %v4054 = vmul.f32 %v4052, 1.442695
    %v4055 = vpow.pop %v4054
    %v4056 = vmul.f32 %v4053, 1.442695
    %v4057 = vpow.pop %v4056
    %v4058 = vsel %vm114, %v4055, 0.0
    %4059 = vadd.xlane.f32.xlu0 %v4058
    %v4060 = vpop.xlane.xlu0 %4059
    %v4061 = vsel %vm114, %v4057, 0.0
    %4062 = vadd.xlane.f32.xlu0 %v4061
    %v4063 = vpop.xlane.xlu0 %4062
    %v4064 = vrcp.pop %v4060
    %v4065 = vrcp.pop %v4063
    %v4066 = vmul.f32 %v4055, %v4064
    %v4067 = vmul.f32 %v4057, %v4065
    %v4068 = vpack.c.bf16 %v4067, %v4066
    %4069 = vrot.lane.b32.xlu0 %v3571, 112
    %v4070 = vpop.permute.xlu0 %4069
    %4071 = vrot.lane.b32.xlu0 %v3572, 112
    %v4072 = vpop.permute.xlu0 %4071
    %v4076 = vsel %vm114, %v4068, 0
    %4078 = vmatprep.subr.bf16.mxu0 0
    %4079 = vmatpush1.bf16.msra.mxu0 0
    %4080 = vmatprep.subr.bf16.mxu0 0
    %4081 = vmatpush1.bf16.msra.mxu0 0
    %4082 = vmatprep.subr.bf16.mxu0 0
    %4083 = vmatpush1.bf16.msra.mxu0 0
    %4084 = vmatprep.subr.bf16.mxu0 0
    %4085 = vmatpush1.bf16.msra.mxu0 0
    %4086 = vmatprep.subr.bf16.mxu0 0
    %4087 = vmatpush1.bf16.msra.mxu0 0
    %4088 = vmatprep.subr.bf16.mxu0 0
    %4089 = vmatpush1.bf16.msra.mxu0 0
    %4090 = vmatprep.subr.bf16.mxu0 0
    %4091 = vmatpush1.bf16.msra.mxu0 %v4072
    %4092 = vmatprep.subr.bf16.mxu0 0
    %4093 = vmatpush1.bf16.msra.mxu0 %v4070
    %4094 = vmatprep.subr.bf16.mxu0 0
    %4095 = vmatpush2.bf16.msra.mxu0 0
    %4096 = vmatprep.subr.bf16.mxu0 0
    %4097 = vmatpush2.bf16.msra.mxu0 0
    %4098 = vmatprep.subr.bf16.mxu0 0
    %4099 = vmatpush2.bf16.msra.mxu0 0
    %4100 = vmatprep.subr.bf16.mxu0 0
    %4101 = vmatpush2.bf16.msra.mxu0 0
    %4102 = vmatprep.subr.bf16.mxu0 0
    %4103 = vmatpush2.bf16.msra.mxu0 0
    %4104 = vmatprep.subr.bf16.mxu0 0
    %4105 = vmatpush2.bf16.msra.mxu0 0
    %4106 = vmatprep.subr.bf16.mxu0 0
    %4107 = vmatpush2.bf16.msra.mxu0 0
    %4108 = vmatprep.subr.bf16.mxu0 0
    %4109 = vmatpush2.bf16.msra.mxu0 0
    %4110 = vmatprep.mubr.bf16.mxu0 0
    %4111 = vmatmul.mubr.bf16.gmra.mxu0 %v4076
    %v4112 = vpop.f32.mrf.mxu0
    %v4113 = vadd.f32 0.0, %v4112
    %v4114 = vpop.f32.mrf.mxu0
    %v4115 = vpop.f32.mrf.mxu0
    %v4116 = vadd.f32 0.0, %v4115
    %v4117 = vpop.f32.mrf.mxu0
    %4118 = vdwg.mxu0
    %s4119 = scalar_lea.vmem %s4, 112
    %v4120 = vld [vmem:[%s4119] sm:$0xff]
    %v4122 = vsel %vm225, %v4113, 0
    %v4125 = vsel %vm225, %v4116, 0
    %4127 = vmatprep.subr.mxu0 0.0
    %4128 = vmatpush1.msra.mxu0 0.0
    %4129 = vmatprep.subr.mxu0 0.0
    %4130 = vmatpush1.msra.mxu0 0.0
    %4131 = vmatprep.subr.mxu0 0.0
    %4132 = vmatpush1.msra.mxu0 0.0
    %4133 = vmatprep.subr.mxu0 0.0
    %4134 = vmatpush1.msra.mxu0 0.0
    %4135 = vmatprep.subr.mxu0 0.0
    %4136 = vmatpush1.msra.mxu0 0.0
    %4137 = vmatprep.subr.mxu0 0.0
    %4138 = vmatpush1.msra.mxu0 0.0
    %4139 = vmatprep.subr.mxu0 0.0
    %4140 = vmatpush1.msra.mxu0 0.0
    %4141 = vmatprep.subr.mxu0 0.0
    %4142 = vmatpush1.msra.mxu0 0.0
    %4143 = vmatprep.subr.mxu0 0.0
    %4144 = vmatpush1.msra.mxu0 0.0
    %4145 = vmatprep.subr.mxu0 0.0
    %4146 = vmatpush1.msra.mxu0 0.0
    %4147 = vmatprep.subr.mxu0 0.0
    %4148 = vmatpush1.msra.mxu0 0.0
    %4149 = vmatprep.subr.mxu0 0.0
    %4150 = vmatpush1.msra.mxu0 0.0
    %4151 = vmatprep.subr.mxu0 0.0
    %4152 = vmatpush1.msra.mxu0 0.0
    %4153 = vmatprep.subr.mxu0 0.0
    %4154 = vmatpush1.msra.mxu0 0.0
    %4155 = vmatprep.subr.mxu0 0.0
    %4156 = vmatpush1.msra.mxu0 0.0
    %4157 = vmatprep.subr.mxu0 0.0
    %4158 = vmatpush1.msra.mxu0 %v4120
    %4159 = vmatprep.subr.mxu0 0.0
    %4160 = vmatpush2.msra.mxu0 0.0
    %4161 = vmatprep.subr.mxu0 0.0
    %4162 = vmatpush2.msra.mxu0 0.0
    %4163 = vmatprep.subr.mxu0 0.0
    %4164 = vmatpush2.msra.mxu0 0.0
    %4165 = vmatprep.subr.mxu0 0.0
    %4166 = vmatpush2.msra.mxu0 0.0
    %4167 = vmatprep.subr.mxu0 0.0
    %4168 = vmatpush2.msra.mxu0 0.0
    %4169 = vmatprep.subr.mxu0 0.0
    %4170 = vmatpush2.msra.mxu0 0.0
    %4171 = vmatprep.subr.mxu0 0.0
    %4172 = vmatpush2.msra.mxu0 0.0
    %4173 = vmatprep.subr.mxu0 0.0
    %4174 = vmatpush2.msra.mxu0 0.0
    %4175 = vmatprep.subr.mxu0 0.0
    %4176 = vmatpush2.msra.mxu0 0.0
    %4177 = vmatprep.subr.mxu0 0.0
    %4178 = vmatpush2.msra.mxu0 0.0
    %4179 = vmatprep.subr.mxu0 0.0
    %4180 = vmatpush2.msra.mxu0 0.0
    %4181 = vmatprep.subr.mxu0 0.0
    %4182 = vmatpush2.msra.mxu0 0.0
    %4183 = vmatprep.subr.mxu0 0.0
    %4184 = vmatpush2.msra.mxu0 0.0
    %4185 = vmatprep.subr.mxu0 0.0
    %4186 = vmatpush2.msra.mxu0 0.0
    %4187 = vmatprep.subr.mxu0 0.0
    %4188 = vmatpush2.msra.mxu0 0.0
    %4189 = vmatprep.subr.mxu0 0.0
    %4190 = vmatpush2.msra.mxu0 0.0
    %4191 = vmatprep.mubr.f32.mxu0 0.0
    %4192 = vmatmul.mubr.f32.gmra.mxu0 %v4122
    %v4193 = vpop.f32.mrf.mxu0
    %v4194 = vadd.f32 0.0, %v4193
    %v4195 = vpop.f32.mrf.mxu0
    %4196 = vmatprep.mubr.f32.mxu0 0.0
    %4197 = vmatmul.mubr.f32.gmra.mxu0 %v4125
    %v4198 = vpop.f32.mrf.mxu0
    %v4199 = vadd.f32 0.0, %v4198
    %v4200 = vpop.f32.mrf.mxu0
    %4201 = vdwg.mxu0
    %v4202 = vadd.f32 %v3982, %v4194
    %v4203 = vadd.f32 %v3987, %v4199
    %4204 = vrot.lane.b32.xlu0 %v3568, 104
    %v4205 = vpop.permute.xlu0 %4204
    %4206 = vrot.lane.b32.xlu0 %v3569, 104
    %v4207 = vpop.permute.xlu0 %4206
    %4208 = vrot.lane.b32.xlu0 %v3570, 104
    %v4209 = vpop.permute.xlu0 %4208
    %v4211 = vsel %vm225, %v4205, 0
    %v4214 = vsel %vm225, %v4207, 0
    %v4217 = vsel %vm225, %v4209, 0
    %4219 = vmatprep.subr.bf16.mxu0 0
    %4220 = vmatpush1.bf16.xpose.msra.mxu0 0
    %4221 = vmatprep.subr.bf16.mxu0 0
    %4222 = vmatpush1.bf16.xpose.msra.mxu0 0
    %4223 = vmatprep.subr.bf16.mxu0 0
    %4224 = vmatpush1.bf16.xpose.msra.mxu0 0
    %4225 = vmatprep.subr.bf16.mxu0 0
    %4226 = vmatpush1.bf16.xpose.msra.mxu0 0
    %4227 = vmatprep.subr.bf16.mxu0 0
    %4228 = vmatpush1.bf16.xpose.msra.mxu0 0
    %4229 = vmatprep.subr.bf16.mxu0 0
    %4230 = vmatpush1.bf16.xpose.msra.mxu0 0
    %4231 = vmatprep.subr.bf16.mxu0 0
    %4232 = vmatpush1.bf16.xpose.msra.mxu0 %v4217
    %4233 = vmatprep.subr.bf16.mxu0 0
    %4234 = vmatpush1.bf16.xpose.msra.mxu0 %v4214
    %4235 = vmatprep.subr.bf16.mxu0 0
    %4236 = vmatpush2.bf16.xpose.msra.mxu0 0
    %4237 = vmatprep.subr.bf16.mxu0 0
    %4238 = vmatpush2.bf16.xpose.msra.mxu0 0
    %4239 = vmatprep.subr.bf16.mxu0 0
    %4240 = vmatpush2.bf16.xpose.msra.mxu0 0
    %4241 = vmatprep.subr.bf16.mxu0 0
    %4242 = vmatpush2.bf16.xpose.msra.mxu0 0
    %4243 = vmatprep.subr.bf16.mxu0 0
    %4244 = vmatpush2.bf16.xpose.msra.mxu0 0
    %4245 = vmatprep.subr.bf16.mxu0 0
    %4246 = vmatpush2.bf16.xpose.msra.mxu0 0
    %4247 = vmatprep.subr.bf16.mxu0 0
    %4248 = vmatpush2.bf16.xpose.msra.mxu0 0
    %4249 = vmatprep.subr.bf16.mxu0 0
    %4250 = vmatpush2.bf16.xpose.msra.mxu0 0
    %4251 = vmatprep.mubr.bf16.mxu0 0
    %4252 = vmatmul.mubr.bf16.gmra.mxu0 %v4211
    %v4253 = vpop.f32.mrf.mxu0
    %v4254 = vadd.f32 %v86, %v4253
    %v4255 = vpop.f32.mrf.mxu0
    %v4256 = vpop.f32.mrf.mxu0
    %v4257 = vadd.f32 %v87, %v4256
    %v4258 = vpop.f32.mrf.mxu0
    %4259 = vdwg.mxu0
    %v4260 = vsel %vm114, %v4254, -inf
    %4261 = vmax.xlane.f32.xlu0 %v4260
    %v4262 = vpop.xlane.xlu0 %4261
    %v4263 = vsel %vm114, %v4257, -inf
    %4264 = vmax.xlane.f32.xlu0 %v4263
    %v4265 = vpop.xlane.xlu0 %4264
    %v4266 = vsub.f32 %v4254, %v4262
    %v4267 = vsub.f32 %v4257, %v4265
    %v4268 = vmul.f32 %v4266, 1.442695
    %v4269 = vpow.pop %v4268
    %v4270 = vmul.f32 %v4267, 1.442695
    %v4271 = vpow.pop %v4270
    %v4272 = vsel %vm114, %v4269, 0.0
    %4273 = vadd.xlane.f32.xlu0 %v4272
    %v4274 = vpop.xlane.xlu0 %4273
    %v4275 = vsel %vm114, %v4271, 0.0
    %4276 = vadd.xlane.f32.xlu0 %v4275
    %v4277 = vpop.xlane.xlu0 %4276
    %v4278 = vrcp.pop %v4274
    %v4279 = vrcp.pop %v4277
    %v4280 = vmul.f32 %v4269, %v4278
    %v4281 = vmul.f32 %v4271, %v4279
    %v4282 = vpack.c.bf16 %v4281, %v4280
    %4283 = vrot.lane.b32.xlu0 %v3571, 104
    %v4284 = vpop.permute.xlu0 %4283
    %4285 = vrot.lane.b32.xlu0 %v3572, 104
    %v4286 = vpop.permute.xlu0 %4285
    %v4290 = vsel %vm114, %v4282, 0
    %4292 = vmatprep.subr.bf16.mxu0 0
    %4293 = vmatpush1.bf16.msra.mxu0 0
    %4294 = vmatprep.subr.bf16.mxu0 0
    %4295 = vmatpush1.bf16.msra.mxu0 0
    %4296 = vmatprep.subr.bf16.mxu0 0
    %4297 = vmatpush1.bf16.msra.mxu0 0
    %4298 = vmatprep.subr.bf16.mxu0 0
    %4299 = vmatpush1.bf16.msra.mxu0 0
    %4300 = vmatprep.subr.bf16.mxu0 0
    %4301 = vmatpush1.bf16.msra.mxu0 0
    %4302 = vmatprep.subr.bf16.mxu0 0
    %4303 = vmatpush1.bf16.msra.mxu0 0
    %4304 = vmatprep.subr.bf16.mxu0 0
    %4305 = vmatpush1.bf16.msra.mxu0 %v4286
    %4306 = vmatprep.subr.bf16.mxu0 0
    %4307 = vmatpush1.bf16.msra.mxu0 %v4284
    %4308 = vmatprep.subr.bf16.mxu0 0
    %4309 = vmatpush2.bf16.msra.mxu0 0
    %4310 = vmatprep.subr.bf16.mxu0 0
    %4311 = vmatpush2.bf16.msra.mxu0 0
    %4312 = vmatprep.subr.bf16.mxu0 0
    %4313 = vmatpush2.bf16.msra.mxu0 0
    %4314 = vmatprep.subr.bf16.mxu0 0
    %4315 = vmatpush2.bf16.msra.mxu0 0
    %4316 = vmatprep.subr.bf16.mxu0 0
    %4317 = vmatpush2.bf16.msra.mxu0 0
    %4318 = vmatprep.subr.bf16.mxu0 0
    %4319 = vmatpush2.bf16.msra.mxu0 0
    %4320 = vmatprep.subr.bf16.mxu0 0
    %4321 = vmatpush2.bf16.msra.mxu0 0
    %4322 = vmatprep.subr.bf16.mxu0 0
    %4323 = vmatpush2.bf16.msra.mxu0 0
    %4324 = vmatprep.mubr.bf16.mxu0 0
    %4325 = vmatmul.mubr.bf16.gmra.mxu0 %v4290
    %v4326 = vpop.f32.mrf.mxu0
    %v4327 = vadd.f32 0.0, %v4326
    %v4328 = vpop.f32.mrf.mxu0
    %v4329 = vpop.f32.mrf.mxu0
    %v4330 = vadd.f32 0.0, %v4329
    %v4331 = vpop.f32.mrf.mxu0
    %4332 = vdwg.mxu0
    %s4333 = scalar_lea.vmem %s4, 120
    %v4334 = vld [vmem:[%s4333] sm:$0xff]
    %v4336 = vsel %vm225, %v4327, 0
    %v4339 = vsel %vm225, %v4330, 0
    %4341 = vmatprep.subr.mxu0 0.0
    %4342 = vmatpush1.msra.mxu0 0.0
    %4343 = vmatprep.subr.mxu0 0.0
    %4344 = vmatpush1.msra.mxu0 0.0
    %4345 = vmatprep.subr.mxu0 0.0
    %4346 = vmatpush1.msra.mxu0 0.0
    %4347 = vmatprep.subr.mxu0 0.0
    %4348 = vmatpush1.msra.mxu0 0.0
    %4349 = vmatprep.subr.mxu0 0.0
    %4350 = vmatpush1.msra.mxu0 0.0
    %4351 = vmatprep.subr.mxu0 0.0
    %4352 = vmatpush1.msra.mxu0 0.0
    %4353 = vmatprep.subr.mxu0 0.0
    %4354 = vmatpush1.msra.mxu0 0.0
    %4355 = vmatprep.subr.mxu0 0.0
    %4356 = vmatpush1.msra.mxu0 0.0
    %4357 = vmatprep.subr.mxu0 0.0
    %4358 = vmatpush1.msra.mxu0 0.0
    %4359 = vmatprep.subr.mxu0 0.0
    %4360 = vmatpush1.msra.mxu0 0.0
    %4361 = vmatprep.subr.mxu0 0.0
    %4362 = vmatpush1.msra.mxu0 0.0
    %4363 = vmatprep.subr.mxu0 0.0
    %4364 = vmatpush1.msra.mxu0 0.0
    %4365 = vmatprep.subr.mxu0 0.0
    %4366 = vmatpush1.msra.mxu0 0.0
    %4367 = vmatprep.subr.mxu0 0.0
    %4368 = vmatpush1.msra.mxu0 0.0
    %4369 = vmatprep.subr.mxu0 0.0
    %4370 = vmatpush1.msra.mxu0 0.0
    %4371 = vmatprep.subr.mxu0 0.0
    %4372 = vmatpush1.msra.mxu0 %v4334
    %4373 = vmatprep.subr.mxu0 0.0
    %4374 = vmatpush2.msra.mxu0 0.0
    %4375 = vmatprep.subr.mxu0 0.0
    %4376 = vmatpush2.msra.mxu0 0.0
    %4377 = vmatprep.subr.mxu0 0.0
    %4378 = vmatpush2.msra.mxu0 0.0
    %4379 = vmatprep.subr.mxu0 0.0
    %4380 = vmatpush2.msra.mxu0 0.0
    %4381 = vmatprep.subr.mxu0 0.0
    %4382 = vmatpush2.msra.mxu0 0.0
    %4383 = vmatprep.subr.mxu0 0.0
    %4384 = vmatpush2.msra.mxu0 0.0
    %4385 = vmatprep.subr.mxu0 0.0
    %4386 = vmatpush2.msra.mxu0 0.0
    %4387 = vmatprep.subr.mxu0 0.0
    %4388 = vmatpush2.msra.mxu0 0.0
    %4389 = vmatprep.subr.mxu0 0.0
    %4390 = vmatpush2.msra.mxu0 0.0
    %4391 = vmatprep.subr.mxu0 0.0
    %4392 = vmatpush2.msra.mxu0 0.0
    %4393 = vmatprep.subr.mxu0 0.0
    %4394 = vmatpush2.msra.mxu0 0.0
    %4395 = vmatprep.subr.mxu0 0.0
    %4396 = vmatpush2.msra.mxu0 0.0
    %4397 = vmatprep.subr.mxu0 0.0
    %4398 = vmatpush2.msra.mxu0 0.0
    %4399 = vmatprep.subr.mxu0 0.0
    %4400 = vmatpush2.msra.mxu0 0.0
    %4401 = vmatprep.subr.mxu0 0.0
    %4402 = vmatpush2.msra.mxu0 0.0
    %4403 = vmatprep.subr.mxu0 0.0
    %4404 = vmatpush2.msra.mxu0 0.0
    %4405 = vmatprep.mubr.f32.mxu0 0.0
    %4406 = vmatmul.mubr.f32.gmra.mxu0 %v4336
    %v4407 = vpop.f32.mrf.mxu0
    %v4408 = vadd.f32 0.0, %v4407
    %v4409 = vpop.f32.mrf.mxu0
    %4410 = vmatprep.mubr.f32.mxu0 0.0
    %4411 = vmatmul.mubr.f32.gmra.mxu0 %v4339
    %v4412 = vpop.f32.mrf.mxu0
    %v4413 = vadd.f32 0.0, %v4412
    %v4414 = vpop.f32.mrf.mxu0
    %4415 = vdwg.mxu0
    %v4416 = vadd.f32 %v4202, %v4408
    %v4417 = vadd.f32 %v4203, %v4413
    %v4418 = vlaneseq
    %v4419 = vshrl.u32 %v4418, 7
    %v4420 = vsub.s32 3, %v4419
    %v4421 = vrot.slane %v2386, %v4420
    %v4422 = vadd.f32 %v4416, %v4421
    %v4423 = vadd.f32 %v4417, %v4421
    %v4424 = vadd.f32 %v3384, %v4422
    %v4425 = vadd.f32 %v3385, %v4423
    %v4426 = vsel %vm114, %v4424, 0.0
    %4427 = vadd.xlane.f32.xlu0 %v4426
    %v4428 = vpop.xlane.xlu0 %4427
    %v4429 = vsel %vm114, %v4425, 0.0
    %4430 = vadd.xlane.f32.xlu0 %v4429
    %v4431 = vpop.xlane.xlu0 %4430
    %v4432 = vmul.f32 %v4428, %v1055
    %v4433 = vmul.f32 %v4431, %v1055
    %v4434 = vmul.f32 %v4424, %v4424
    %v4435 = vmul.f32 %v4425, %v4425
    %v4436 = vsel %vm114, %v4434, 0.0
    %4437 = vadd.xlane.f32.xlu0 %v4436
    %v4438 = vpop.xlane.xlu0 %4437
    %v4439 = vsel %vm114, %v4435, 0.0
    %4440 = vadd.xlane.f32.xlu0 %v4439
    %v4441 = vpop.xlane.xlu0 %4440
    %v4442 = vmul.f32 %v4438, %v1055
    %v4443 = vmul.f32 %v4441, %v1055
    %v4444 = vmul.f32 %v4432, %v4432
    %v4445 = vmul.f32 %v4433, %v4433
    %v4446 = vsub.f32 %v4442, %v4444
    %v4447 = vsub.f32 %v4443, %v4445
    %v4448 = vmax.f32 %v4446, 0.0
    %v4449 = vmax.f32 %v4447, 0.0
    %v4450 = vsub.f32 %v4424, %v4432
    %v4451 = vsub.f32 %v4425, %v4433
    %v4452 = vadd.f32 %v4448, 1e-05
    %v4453 = vadd.f32 %v4449, 1e-05
    %v4454 = vrsqrt.pop %v4452
    %v4455 = vrsqrt.pop %v4453
    %v4456 = vmul.f32 %v4450, %v4454
    %v4457 = vmul.f32 %v4451, %v4455
    %v4458 = vlaneseq
    %v4459 = vshrl.u32 %v4458, 7
    %v4460 = vsub.s32 0, %v4459
    %v4461 = vrot.slane %v2387, %v4460
    %v4462 = vmul.f32 %v4456, %v4461
    %v4463 = vmul.f32 %v4457, %v4461
    %v4464 = vlaneseq
    %v4465 = vshrl.u32 %v4464, 7
    %v4466 = vsub.s32 1, %v4465
    %v4467 = vrot.slane %v2387, %v4466
    %v4468 = vadd.f32 %v4462, %v4467
    %v4469 = vadd.f32 %v4463, %v4467
    %v4470 = vpack.c.bf16 %v4469, %v4468
    %s4471 = scalar_lea.vmem %s5, 16
    %v4472 = vld [vmem:[%s4471] sm:$0xf]
    %v4473 = vld [vmem:[%s4471 + $0x4] sm:$0xf]
    %v4474 = vld [vmem:[%s4471 + $0x8] sm:$0xf]
    %v4475 = vld [vmem:[%s4471 + $0xc] sm:$0xf]
    %v4476 = vlaneseq
    %v4477 = vshrl.u32 %v4476, 7
    %v4478 = vsub.s32 4, %v4477
    %v4479 = vrot.slane %v2386, %v4478
    %v4484 = vunpack.c.l.b16 %v4472
    %v4485 = vunpack.c.l.b16 %v4473
    %v4486 = vunpack.c.l.b16 %v4474
    %v4487 = vunpack.c.l.b16 %v4475
    %v4488 = vpack.c.b16 %v4485, %v4484
    %v4489 = vpack.c.b16 %v4487, %v4486
    %v4493 = vsel %vm114, %v4470, 0
    %4495 = vmatprep.subr.bf16.mxu0 0
    %4496 = vmatpush1.bf16.msra.mxu0 0
    %4497 = vmatprep.subr.bf16.mxu0 0
    %4498 = vmatpush1.bf16.msra.mxu0 0
    %4499 = vmatprep.subr.bf16.mxu0 0
    %4500 = vmatpush1.bf16.msra.mxu0 0
    %4501 = vmatprep.subr.bf16.mxu0 0
    %4502 = vmatpush1.bf16.msra.mxu0 0
    %4503 = vmatprep.subr.bf16.mxu0 0
    %4504 = vmatpush1.bf16.msra.mxu0 0
    %4505 = vmatprep.subr.bf16.mxu0 0
    %4506 = vmatpush1.bf16.msra.mxu0 0
    %4507 = vmatprep.subr.bf16.mxu0 0
    %4508 = vmatpush1.bf16.msra.mxu0 %v4489
    %4509 = vmatprep.subr.bf16.mxu0 0
    %4510 = vmatpush1.bf16.msra.mxu0 %v4488
    %4511 = vmatprep.subr.bf16.mxu0 0
    %4512 = vmatpush2.bf16.msra.mxu0 0
    %4513 = vmatprep.subr.bf16.mxu0 0
    %4514 = vmatpush2.bf16.msra.mxu0 0
    %4515 = vmatprep.subr.bf16.mxu0 0
    %4516 = vmatpush2.bf16.msra.mxu0 0
    %4517 = vmatprep.subr.bf16.mxu0 0
    %4518 = vmatpush2.bf16.msra.mxu0 0
    %4519 = vmatprep.subr.bf16.mxu0 0
    %4520 = vmatpush2.bf16.msra.mxu0 0
    %4521 = vmatprep.subr.bf16.mxu0 0
    %4522 = vmatpush2.bf16.msra.mxu0 0
    %4523 = vmatprep.subr.bf16.mxu0 0
    %4524 = vmatpush2.bf16.msra.mxu0 0
    %4525 = vmatprep.subr.bf16.mxu0 0
    %4526 = vmatpush2.bf16.msra.mxu0 0
    %4527 = vmatprep.mubr.bf16.mxu0 0
    %4528 = vmatmul.mubr.bf16.gmra.mxu0 %v4493
    %v4529 = vpop.f32.mrf.mxu0
    %v4530 = vadd.f32 %v4479, %v4529
    %v4531 = vpop.f32.mrf.mxu0
    %v4532 = vpop.f32.mrf.mxu0
    %v4533 = vadd.f32 %v4479, %v4532
    %v4534 = vpop.f32.mrf.mxu0
    %4535 = vdwg.mxu0
    %v4536 = vmax.f32 %v4530, 0.0
    %v4537 = vmax.f32 %v4533, 0.0
    %v4538 = vpack.c.bf16 %v4537, %v4536
    %s4539 = scalar_lea.vmem %s6, 32
    %v4540 = vld [vmem:[%s4539] sm:$0xf]
    %v4541 = vld [vmem:[%s4539 + $0x4] sm:$0xf]
    %v4542 = vld [vmem:[%s4539 + $0x8] sm:$0xf]
    %v4543 = vld [vmem:[%s4539 + $0xc] sm:$0xf]
    %v4544 = vld [vmem:[%s4539 + $0x10] sm:$0xf]
    %v4545 = vld [vmem:[%s4539 + $0x14] sm:$0xf]
    %v4546 = vld [vmem:[%s4539 + $0x18] sm:$0xf]
    %v4547 = vld [vmem:[%s4539 + $0x1c] sm:$0xf]
    %v4548 = vlaneseq
    %v4549 = vshrl.u32 %v4548, 7
    %v4550 = vsub.s32 5, %v4549
    %v4551 = vrot.slane %v2386, %v4550
    %v4560 = vunpack.c.l.b16 %v4540
    %v4561 = vunpack.c.l.b16 %v4541
    %v4562 = vunpack.c.l.b16 %v4542
    %v4563 = vunpack.c.l.b16 %v4543
    %v4564 = vunpack.c.l.b16 %v4544
    %v4565 = vunpack.c.l.b16 %v4545
    %v4566 = vunpack.c.l.b16 %v4546
    %v4567 = vunpack.c.l.b16 %v4547
    %v4568 = vpack.c.b16 %v4561, %v4560
    %v4569 = vpack.c.b16 %v4563, %v4562
    %v4570 = vpack.c.b16 %v4565, %v4564
    %v4571 = vpack.c.b16 %v4567, %v4566
    %v4577 = vsel %vm2294, %v4538, 0
    %4579 = vmatprep.subr.bf16.mxu0 0
    %4580 = vmatpush1.bf16.msra.mxu0 0
    %4581 = vmatprep.subr.bf16.mxu0 0
    %4582 = vmatpush1.bf16.msra.mxu0 0
    %4583 = vmatprep.subr.bf16.mxu0 0
    %4584 = vmatpush1.bf16.msra.mxu0 0
    %4585 = vmatprep.subr.bf16.mxu0 0
    %4586 = vmatpush1.bf16.msra.mxu0 0
    %4587 = vmatprep.subr.bf16.mxu0 0
    %4588 = vmatpush1.bf16.msra.mxu0 %v4571
    %4589 = vmatprep.subr.bf16.mxu0 0
    %4590 = vmatpush1.bf16.msra.mxu0 %v4570
    %4591 = vmatprep.subr.bf16.mxu0 0
    %4592 = vmatpush1.bf16.msra.mxu0 %v4569
    %4593 = vmatprep.subr.bf16.mxu0 0
    %4594 = vmatpush1.bf16.msra.mxu0 %v4568
    %4595 = vmatprep.subr.bf16.mxu0 0
    %4596 = vmatpush2.bf16.msra.mxu0 0
    %4597 = vmatprep.subr.bf16.mxu0 0
    %4598 = vmatpush2.bf16.msra.mxu0 0
    %4599 = vmatprep.subr.bf16.mxu0 0
    %4600 = vmatpush2.bf16.msra.mxu0 0
    %4601 = vmatprep.subr.bf16.mxu0 0
    %4602 = vmatpush2.bf16.msra.mxu0 0
    %4603 = vmatprep.subr.bf16.mxu0 0
    %4604 = vmatpush2.bf16.msra.mxu0 0
    %4605 = vmatprep.subr.bf16.mxu0 0
    %4606 = vmatpush2.bf16.msra.mxu0 0
    %4607 = vmatprep.subr.bf16.mxu0 0
    %4608 = vmatpush2.bf16.msra.mxu0 0
    %4609 = vmatprep.subr.bf16.mxu0 0
    %4610 = vmatpush2.bf16.msra.mxu0 0
    %4611 = vmatprep.mubr.bf16.mxu0 0
    %4612 = vmatmul.mubr.bf16.gmra.mxu0 %v4577
    %v4613 = vpop.f32.mrf.mxu0
    %v4614 = vadd.f32 %v4551, %v4613
    %v4615 = vpop.f32.mrf.mxu0
    %v4616 = vpop.f32.mrf.mxu0
    %v4617 = vadd.f32 %v4551, %v4616
    %v4618 = vpop.f32.mrf.mxu0
    %4619 = vdwg.mxu0
    %v4620 = vadd.f32 %v4468, %v4614
    %v4621 = vadd.f32 %v4469, %v4617
    %v4622 = vsel %vm114, %v4620, 0.0
    %4623 = vadd.xlane.f32.xlu0 %v4622
    %v4624 = vpop.xlane.xlu0 %4623
    %v4625 = vsel %vm114, %v4621, 0.0
    %4626 = vadd.xlane.f32.xlu0 %v4625
    %v4627 = vpop.xlane.xlu0 %4626
    %v4628 = vmul.f32 %v4624, %v1055
    %v4629 = vmul.f32 %v4627, %v1055
    %v4630 = vmul.f32 %v4620, %v4620
    %v4631 = vmul.f32 %v4621, %v4621
    %v4632 = vsel %vm114, %v4630, 0.0
    %4633 = vadd.xlane.f32.xlu0 %v4632
    %v4634 = vpop.xlane.xlu0 %4633
    %v4635 = vsel %vm114, %v4631, 0.0
    %4636 = vadd.xlane.f32.xlu0 %v4635
    %v4637 = vpop.xlane.xlu0 %4636
    %v4638 = vmul.f32 %v4634, %v1055
    %v4639 = vmul.f32 %v4637, %v1055
    %v4640 = vmul.f32 %v4628, %v4628
    %v4641 = vmul.f32 %v4629, %v4629
    %v4642 = vsub.f32 %v4638, %v4640
    %v4643 = vsub.f32 %v4639, %v4641
    %v4644 = vmax.f32 %v4642, 0.0
    %v4645 = vmax.f32 %v4643, 0.0
    %v4646 = vsub.f32 %v4620, %v4628
    %v4647 = vsub.f32 %v4621, %v4629
    %v4648 = vadd.f32 %v4644, 1e-05
    %v4649 = vadd.f32 %v4645, 1e-05
    %v4650 = vrsqrt.pop %v4648
    %v4651 = vrsqrt.pop %v4649
    %v4652 = vmul.f32 %v4646, %v4650
    %v4653 = vmul.f32 %v4647, %v4651
    %v4654 = vlaneseq
    %v4655 = vshrl.u32 %v4654, 7
    %v4656 = vsub.s32 2, %v4655
    %v4657 = vrot.slane %v2387, %v4656
    %v4658 = vmul.f32 %v4652, %v4657
    %v4659 = vmul.f32 %v4653, %v4657
    %v4660 = vlaneseq
    %v4661 = vshrl.u32 %v4660, 7
    %v4662 = vsub.s32 3, %v4661
    %v4663 = vrot.slane %v2387, %v4662
    %v4664 = vadd.f32 %v4658, %v4663
    %v4665 = vadd.f32 %v4659, %v4663
    %s4666 = scalar_lea.vmem [#allocation7], 32
    %v4667 = vld [vmem:[%s4666] sm:$0x1]
    %v4668 = vld [vmem:[%s4666 + $0x1] sm:$0x1]
    %v4669 = vsel %vm114, %v4664, 0.0
    %4670 = vadd.xlane.f32.xlu0 %v4669
    %v4671 = vpop.xlane.xlu0 %4670
    %v4672 = vsel %vm114, %v4665, 0.0
    %4673 = vadd.xlane.f32.xlu0 %v4672
    %v4674 = vpop.xlane.xlu0 %4673
    %v4675 = vmul.f32 %v4671, %v1055
    %v4676 = vmul.f32 %v4674, %v1055
    %v4677 = vmul.f32 %v4664, %v4664
    %v4678 = vmul.f32 %v4665, %v4665
    %v4679 = vsel %vm114, %v4677, 0.0
    %4680 = vadd.xlane.f32.xlu0 %v4679
    %v4681 = vpop.xlane.xlu0 %4680
    %v4682 = vsel %vm114, %v4678, 0.0
    %4683 = vadd.xlane.f32.xlu0 %v4682
    %v4684 = vpop.xlane.xlu0 %4683
    %v4685 = vmul.f32 %v4681, %v1055
    %v4686 = vmul.f32 %v4684, %v1055
    %v4687 = vmul.f32 %v4675, %v4675
    %v4688 = vmul.f32 %v4676, %v4676
    %v4689 = vsub.f32 %v4685, %v4687
    %v4690 = vsub.f32 %v4686, %v4688
    %v4691 = vmax.f32 %v4689, 0.0
    %v4692 = vmax.f32 %v4690, 0.0
    %v4693 = vsub.f32 %v4664, %v4675
    %v4694 = vsub.f32 %v4665, %v4676
    %v4695 = vadd.f32 %v4691, 1e-05
    %v4696 = vadd.f32 %v4692, 1e-05
    %v4697 = vrsqrt.pop %v4695
    %v4698 = vrsqrt.pop %v4696
    %v4699 = vmul.f32 %v4693, %v4697
    %v4700 = vmul.f32 %v4694, %v4698
    %v4701 = vlaneseq
    %v4702 = vshrl.u32 %v4701, 7
    %v4703 = vsub.s32 0, %v4702
    %v4704 = vrot.slane %v4667, %v4703
    %v4705 = vmul.f32 %v4699, %v4704
    %v4706 = vmul.f32 %v4700, %v4704
    %v4707 = vlaneseq
    %v4708 = vshrl.u32 %v4707, 7
    %v4709 = vsub.s32 0, %v4708
    %v4710 = vrot.slane %v4668, %v4709
    %v4711 = vadd.f32 %v4705, %v4710
    %v4712 = vadd.f32 %v4706, %v4710
    %4713 = vst.msk [vmem:[#allocation8] sm:$0xff] %vm114, %v4711
    %4714 = vst.msk [vmem:[#allocation8 + $0x8] sm:$0xff] %vm114, %v4712
    // Predicated region
    $region46: #{tpu_custom_call.1} parent=1 // pred_check
      _
    $region47: #{tpu_custom_call.1} parent=1 // pred_check_branch
      %4716 = sbr.rel (0) target = $region49
    $region48: #{tpu_custom_call.1} parent=1 // pred_region
      %s4718 = ssub.s32 256, 256
      %4719 = vsyncadd [#allocation4], %s4718
      %s4720 = sshll.u32 [#allocation8], 4
      %s4721 = int_to_ptr.vmem [resolvable:$true] %s4720
      %4726 = dma.vmem_to_hbm [thread:$0]  %s4721, 256, %s8, [#allocation4], 128, 128, 8
    $region49: #{tpu_custom_call.1} parent=1 // pred_fallthru
      _
    // Predicated region
    $region50: #{tpu_custom_call.1} parent=1 // pred_check
      _
    $region51: #{tpu_custom_call.1} parent=1 // pred_check_branch
      %4728 = sbr.rel (0) target = $region53
    $region52: #{tpu_custom_call.1} parent=1 // pred_region
      %4729 = dma.done [#allocation4], 256
    $region53: #{tpu_custom_call.1} parent=1 // pred_fallthru
      _
    %4730 = vsyncpa [#allocation3], 1
    %4731 = vsyncpa [#allocation6], 1
    %4732 = vsyncpa [#allocation4], 1

</llo_original>
